<compile_context>
chip_gen: v7x
topology: tpu7x:2x2x1
jax: 0.10.0
libtpu: 0.0.40
codegen_flags: <defaults>
</compile_context>

<pallas_src>
import functools

import jax
import jax.numpy as jnp
from jax.experimental import pallas as pl
from jax.experimental.pallas import tpu as pltpu

# logical (PyTorch) dims
INPUT_SIZE = 500
HID = 350
LATENT = 200

# lane-padded dims (multiples of 128)
IN_P = 512
HID_P = 384
LAT_P = 256
HEAD_P = 2 * LAT_P  # fused [mu | logvar] head


def _round_up(n, m):
    return ((n + m - 1) // m) * m


def _pad_to(a, shape):
    pads = [(0, t - s) for s, t in zip(a.shape, shape)]
    return jnp.pad(a, pads)  # zero padding (required, see module docstring)


# --------------------------------------------------------------------------- #
# kernel
# --------------------------------------------------------------------------- #
def _vae_kernel(x_ref, eps_ref,
                w1_ref, b1_ref, wh_ref, bh_ref, w3_ref, b3_ref, w4_ref, b4_ref,
                recon_ref, mu_ref, logvar_ref, *, eup_bf16):
    # ---- encode: h1 = relu(x @ W1 + b1); bf16 MXU operands, f32 accumulation ----
    x = x_ref[...]                                                    # bf16 [TB, 512]
    h1 = jnp.dot(x, w1_ref[...], preferred_element_type=jnp.float32) + b1_ref[...]
    h1 = jnp.maximum(h1, 0.0)                                         # f32 [TB, 384]

    # ---- fused head: one MXU pass produces [mu | logvar] in 512 lanes ----
    head = jnp.dot(h1.astype(jnp.bfloat16), wh_ref[...],
                   preferred_element_type=jnp.float32) + bh_ref[...]  # f32 [TB, 512]
    mu = head[:, :LAT_P]                                              # f32 [TB, 256]
    logvar = head[:, LAT_P:]                                          # f32 [TB, 256]

    # ---- reparameterize: z = mu + eps * exp(0.5 * logvar) ----
    half_lv = 0.5 * logvar
    if eup_bf16:   # v6e/v7x EUP has a bf16 path (~2x); v5e does not -> keep f32 there
        std = jnp.exp(half_lv.astype(jnp.bfloat16)).astype(jnp.float32)
    else:
        std = jnp.exp(half_lv)
    z = mu + eps_ref[...].astype(jnp.float32) * std                   # f32 [TB, 256]

    # ---- decode: recon = tanh(relu(z @ W3 + b3) @ W4 + b4) ----
    h3 = jnp.dot(z.astype(jnp.bfloat16), w3_ref[...],
                 preferred_element_type=jnp.float32) + b3_ref[...]
    h3 = jnp.maximum(h3, 0.0)                                         # f32 [TB, 384]
    pre4 = jnp.dot(h3.astype(jnp.bfloat16), w4_ref[...],
                   preferred_element_type=jnp.float32) + b4_ref[...]  # f32 [TB, 512]
    if eup_bf16:
        recon = jnp.tanh(pre4.astype(jnp.bfloat16))
    else:
        recon = jnp.tanh(pre4)

    recon_ref[...] = recon.astype(jnp.bfloat16)   # bf16 store: halves write-back
    mu_ref[...] = mu                              # keep f32 (feeds KL loss downstream)
    logvar_ref[...] = logvar                      # keep f32


# --------------------------------------------------------------------------- #
# parameter packing (call ONCE at init, reuse every forward)
# --------------------------------------------------------------------------- #
def pack_params(params):
    """Zero-pad to lane-aligned shapes, fuse mu/logvar head, cast weights to bf16."""
    w1, b1, w21, b21, w22, b22, w3, b3, w4, b4 = params

    w1p = _pad_to(w1, (IN_P, HID_P)).astype(jnp.bfloat16)
    b1p = _pad_to(b1, (1, HID_P)).astype(jnp.float32)

    # fused [mu | logvar]: mu in lanes [0, 256), logvar in lanes [256, 512)
    wh = jnp.zeros((HID_P, HEAD_P), jnp.float32)
    wh = wh.at[:HID, :LATENT].set(w21)
    wh = wh.at[:HID, LAT_P:LAT_P + LATENT].set(w22)
    bh = jnp.zeros((1, HEAD_P), jnp.float32)
    bh = bh.at[:, :LATENT].set(b21[0])
    bh = bh.at[:, LAT_P:LAT_P + LATENT].set(b22[0])

    w3p = _pad_to(w3, (LAT_P, HID_P)).astype(jnp.bfloat16)
    b3p = _pad_to(b3, (1, HID_P)).astype(jnp.float32)
    w4p = _pad_to(w4, (HID_P, IN_P)).astype(jnp.bfloat16)
    b4p = _pad_to(b4, (1, IN_P)).astype(jnp.float32)

    return (w1p, b1p, wh.astype(jnp.bfloat16), bh, w3p, b3p, w4p, b4p)


# --------------------------------------------------------------------------- #
# batch-tile selection & input preparation
# --------------------------------------------------------------------------- #
def choose_tb(batch, *, tb_max=1024, min_steps=2):
    """Batch tile: multiple of 16 (bf16 sublane packing), <=tb_max, and small enough
    that the grid keeps >= min_steps steps (so v7x's 2 TensorCores both get work and
    the pipeline can overlap prefetch/writeback)."""
    tb = min(tb_max, _round_up(pl.cdiv(batch, min_steps), 16))
    return max(16, tb)


def prepare_inputs(x, eps, tb):
    """One-time pad + bf16 cast of the streamed inputs. In production the producer
    should emit these shapes/dtypes directly so the forward pays no extra HBM pass.
    Padding MUST be zeros (eps pad = 0 keeps z pad = 0 -> real lanes stay exact)."""
    B = x.shape[0]
    assert x.shape == (B, INPUT_SIZE) and eps.shape == (B, LATENT)
    B_pad = _round_up(B, tb)
    xp = _pad_to(x.astype(jnp.bfloat16), (B_pad, IN_P))
    epsp = _pad_to(eps.astype(jnp.bfloat16), (B_pad, LAT_P))
    return xp, epsp


def _eup_has_bf16():
    try:
        kind = jax.devices()[0].device_kind.lower()
    except Exception:
        return True
    return "v5" not in kind   # v5e/v5p EUP has no bf16 path


# --------------------------------------------------------------------------- #
# forward (padded in, padded out; no per-call param packing, no output slicing)
# --------------------------------------------------------------------------- #
def vae_forward_padded(xp, epsp, packed, *, tb, eup_bf16=None):
    """xp: [B_pad, 512] bf16 (zero-padded), epsp: [B_pad, 256] bf16 (zero-padded),
    packed: pack_params(...) output.  Returns padded
    (recon [B_pad,512] bf16, mu [B_pad,256] f32, logvar [B_pad,256] f32)."""
    B_pad = xp.shape[0]
    assert xp.shape == (B_pad, IN_P) and xp.dtype == jnp.bfloat16
    assert epsp.shape == (B_pad, LAT_P) and epsp.dtype == jnp.bfloat16
    assert B_pad % tb == 0 and tb % 16 == 0

    if eup_bf16 is None:
        eup_bf16 = _eup_has_bf16()

    grid = (B_pad // tb,)

    def row_spec(n):
        return pl.BlockSpec((tb, n), lambda i: (i, 0))

    def full_spec(shape):
        # weights/biases: same block every grid step (resident in VMEM)
        return pl.BlockSpec(shape, lambda i: (0,) * len(shape))

    in_specs = [row_spec(IN_P), row_spec(LAT_P)] + [full_spec(p.shape) for p in packed]
    out_specs = [row_spec(IN_P), row_spec(LAT_P), row_spec(LAT_P)]
    out_shape = [
        jax.ShapeDtypeStruct((B_pad, IN_P), jnp.bfloat16),   # recon: bf16
        jax.ShapeDtypeStruct((B_pad, LAT_P), jnp.float32),   # mu: f32 (KL)
        jax.ShapeDtypeStruct((B_pad, LAT_P), jnp.float32),   # logvar: f32 (KL)
    ]

    return pl.pallas_call(
        functools.partial(_vae_kernel, eup_bf16=eup_bf16),
        out_shape=out_shape,
        grid_spec=pltpu.PrefetchScalarGridSpec(
            num_scalar_prefetch=0,
            grid=grid,
            in_specs=in_specs,
            out_specs=out_specs,
        ),
        compiler_params=pltpu.CompilerParams(
            dimension_semantics=("parallel",),
            # tb=1024 double-buffered streams + resident weights can exceed v5e's
            # 16 MiB default scoped-VMEM limit; raise it (well under v7x's 64 MiB).
            vmem_limit_bytes=48 * 1024 * 1024,
        ),
    )(xp, epsp, *packed)


# --------------------------------------------------------------------------- #
# init & pure-JAX reference
# --------------------------------------------------------------------------- #
def init_params(key):
    """Deterministic init mimicking PyTorch nn.Linear default (uniform +-1/sqrt(fan_in)).
    Weights are stored as [in, out] (transposed vs. PyTorch), biases as [1, out]."""
    def linear(k, fan_in, fan_out):
        kw, kb = jax.random.split(k)
        bound = 1.0 / jnp.sqrt(fan_in)
        w = jax.random.uniform(kw, (fan_in, fan_out), jnp.float32, -bound, bound)
        b = jax.random.uniform(kb, (1, fan_out), jnp.float32, -bound, bound)
        return w, b

    k1, k21, k22, k3, k4 = jax.random.split(key, 5)
    w1, b1 = linear(k1, INPUT_SIZE, HID)
    w21, b21 = linear(k21, HID, LATENT)
    w22, b22 = linear(k22, HID, LATENT)
    w3, b3 = linear(k3, LATENT, HID)
    w4, b4 = linear(k4, HID, INPUT_SIZE)
    return (w1, b1, w21, b21, w22, b22, w3, b3, w4, b4)


def vae_forward_ref(x, eps, params):
    """Pure-JAX f32 reference (matches the PyTorch module's forward)."""
    w1, b1, w21, b21, w22, b22, w3, b3, w4, b4 = params
    h1 = jnp.maximum(x @ w1 + b1, 0.0)
    mu = h1 @ w21 + b21
    logvar = h1 @ w22 + b22
    z = mu + eps * jnp.exp(0.5 * logvar)
    h3 = jnp.maximum(z @ w3 + b3, 0.0)
    recon = jnp.tanh(h3 @ w4 + b4)
    return recon, mu, logvar


if __name__ == "__main__":
    key = jax.random.PRNGKey(0)
    k_params, k_x, k_eps = jax.random.split(key, 3)

    B = 64
    params = init_params(k_params)
    packed = pack_params(params)          # packed ONCE at init, reused every forward

    x = jax.random.normal(k_x, (B, INPUT_SIZE), jnp.float32)
    eps = jax.random.normal(k_eps, (B, LATENT), jnp.float32)  # torch.randn_like(std)

    # B=64 -> tb=32 -> 2-step grid: exercises the pipelined/parallel path even at
    # this small test size (production default is tb up to 1024).
    tb = choose_tb(B)
    xp, epsp = prepare_inputs(x, eps, tb)

    recon_p, mu_p, logvar_p = jax.block_until_ready(
        vae_forward_padded(xp, epsp, packed, tb=tb))

    # Slice back to logical shapes ONLY for the reference comparison (production
    # consumers keep the padded/bf16 outputs and fuse any slicing downstream).
    recon = recon_p[:B, :INPUT_SIZE].astype(jnp.float32)
    mu = mu_p[:B, :LATENT]
    logvar = logvar_p[:B, :LATENT]

    # correctness check vs. pure-JAX f32 reference (bf16 MXU operands, bf16 eps,
    # bf16 recon store -> tolerances loosened accordingly)
    r_ref, mu_ref, lv_ref = vae_forward_ref(x, eps, params)
    assert recon.shape == (B, INPUT_SIZE) and mu.shape == (B, LATENT) and logvar.shape == (B, LATENT)
    assert jnp.allclose(recon, r_ref, atol=4e-2, rtol=4e-2), float(jnp.max(jnp.abs(recon - r_ref)))
    assert jnp.allclose(mu, mu_ref, atol=4e-2, rtol=4e-2), float(jnp.max(jnp.abs(mu - mu_ref)))
    assert jnp.allclose(logvar, lv_ref, atol=4e-2, rtol=4e-2), float(jnp.max(jnp.abs(logvar - lv_ref)))
    assert jnp.all(jnp.isfinite(recon)) and jnp.all(jnp.isfinite(mu)) and jnp.all(jnp.isfinite(logvar))

    print("KERNEL_OK")
</pallas_src>

<mosaic_0001>
module attributes {stable_mosaic.version = 11 : i64} {
  func.func @_vae_kernel(%arg0: i32, %arg1: memref<32x512xbf16, #tpu.memory_space<vmem>>, %arg2: memref<32x256xbf16, #tpu.memory_space<vmem>>, %arg3: memref<512x384xbf16, #tpu.memory_space<vmem>>, %arg4: memref<1x384xf32, #tpu.memory_space<vmem>>, %arg5: memref<384x512xbf16, #tpu.memory_space<vmem>>, %arg6: memref<1x512xf32, #tpu.memory_space<vmem>>, %arg7: memref<256x384xbf16, #tpu.memory_space<vmem>>, %arg8: memref<1x384xf32, #tpu.memory_space<vmem>>, %arg9: memref<384x512xbf16, #tpu.memory_space<vmem>>, %arg10: memref<1x512xf32, #tpu.memory_space<vmem>>, %arg11: memref<32x512xbf16, #tpu.memory_space<vmem>>, %arg12: memref<32x256xf32, #tpu.memory_space<vmem>>, %arg13: memref<32x256xf32, #tpu.memory_space<vmem>>) attributes {dimension_semantics = [#tpu.dimension_semantics<parallel>], iteration_bounds = array<i64: 2>, scalar_prefetch = 0 : i64, scratch_operands = 0 : i64, tpu.core_type = #tpu.core_type<tc>, window_params = [{transform_indices = @transform_0, window_bounds = array<i64: 32, 512>}, {transform_indices = @transform_1, window_bounds = array<i64: 32, 256>}, {pipeline_mode = #tpu.pipeline_mode<synchronous>, transform_indices = @transform_2, window_bounds = array<i64: 512, 384>}, {pipeline_mode = #tpu.pipeline_mode<synchronous>, transform_indices = @transform_3, window_bounds = array<i64: 1, 384>}, {pipeline_mode = #tpu.pipeline_mode<synchronous>, transform_indices = @transform_4, window_bounds = array<i64: 384, 512>}, {pipeline_mode = #tpu.pipeline_mode<synchronous>, transform_indices = @transform_5, window_bounds = array<i64: 1, 512>}, {pipeline_mode = #tpu.pipeline_mode<synchronous>, transform_indices = @transform_6, window_bounds = array<i64: 256, 384>}, {pipeline_mode = #tpu.pipeline_mode<synchronous>, transform_indices = @transform_7, window_bounds = array<i64: 1, 384>}, {pipeline_mode = #tpu.pipeline_mode<synchronous>, transform_indices = @transform_8, window_bounds = array<i64: 384, 512>}, {pipeline_mode = #tpu.pipeline_mode<synchronous>, transform_indices = @transform_9, window_bounds = array<i64: 1, 512>}, {transform_indices = @transform_10, window_bounds = array<i64: 32, 512>}, {transform_indices = @transform_11, window_bounds = array<i64: 32, 256>}, {transform_indices = @transform_12, window_bounds = array<i64: 32, 256>}]} {
    %c0 = arith.constant 0 : index
    %c0_0 = arith.constant 0 : index
    %0 = vector.load %arg1[%c0, %c0_0] : memref<32x512xbf16, #tpu.memory_space<vmem>>, vector<32x512xbf16>
    %c0_1 = arith.constant 0 : index
    %c0_2 = arith.constant 0 : index
    %1 = vector.load %arg3[%c0_1, %c0_2] : memref<512x384xbf16, #tpu.memory_space<vmem>>, vector<512x384xbf16>
    %cst = arith.constant dense<0.000000e+00> : vector<32x384xf32>
    %2 = tpu.matmul %0, %1, %cst {dimension_numbers = #tpu.dot_dimension_numbers<[1], [0], [0], [1], [0, 0, 1, 1], [], []>} : vector<32x512xbf16>, vector<512x384xbf16>, vector<32x384xf32> -> vector<32x384xf32>
    %c0_3 = arith.constant 0 : index
    %c0_4 = arith.constant 0 : index
    %3 = vector.load %arg4[%c0_3, %c0_4] : memref<1x384xf32, #tpu.memory_space<vmem>>, vector<1x384xf32>
    %4 = vector.broadcast %3 : vector<1x384xf32> to vector<32x384xf32>
    %5 = arith.addf %2, %4 : vector<32x384xf32>
    %cst_5 = arith.constant 0.000000e+00 : f32
    %6 = vector.broadcast %cst_5 : f32 to vector<32x384xf32>
    %7 = arith.maximumf %5, %6 : vector<32x384xf32>
    %8 = arith.truncf %7 : vector<32x384xf32> to vector<32x384xbf16>
    %c0_6 = arith.constant 0 : index
    %c0_7 = arith.constant 0 : index
    %9 = vector.load %arg5[%c0_6, %c0_7] : memref<384x512xbf16, #tpu.memory_space<vmem>>, vector<384x512xbf16>
    %cst_8 = arith.constant dense<0.000000e+00> : vector<32x512xf32>
    %10 = tpu.matmul %8, %9, %cst_8 {dimension_numbers = #tpu.dot_dimension_numbers<[1], [0], [0], [1], [0, 0, 1, 1], [], []>} : vector<32x384xbf16>, vector<384x512xbf16>, vector<32x512xf32> -> vector<32x512xf32>
    %c0_9 = arith.constant 0 : index
    %c0_10 = arith.constant 0 : index
    %11 = vector.load %arg6[%c0_9, %c0_10] : memref<1x512xf32, #tpu.memory_space<vmem>>, vector<1x512xf32>
    %12 = vector.broadcast %11 : vector<1x512xf32> to vector<32x512xf32>
    %13 = arith.addf %10, %12 : vector<32x512xf32>
    %14 = vector.extract_strided_slice %13 {offsets = [0, 0], sizes = [32, 256], strides = [1, 1]} : vector<32x512xf32> to vector<32x256xf32>
    %15 = vector.extract_strided_slice %13 {offsets = [0, 256], sizes = [32, 256], strides = [1, 1]} : vector<32x512xf32> to vector<32x256xf32>
    %cst_11 = arith.constant 5.000000e-01 : f32
    %16 = vector.broadcast %cst_11 : f32 to vector<32x256xf32>
    %17 = arith.mulf %16, %15 : vector<32x256xf32>
    %18 = arith.truncf %17 : vector<32x256xf32> to vector<32x256xbf16>
    %19 = math.exp %18 : vector<32x256xbf16>
    %20 = arith.extf %19 : vector<32x256xbf16> to vector<32x256xf32>
    %c0_12 = arith.constant 0 : index
    %c0_13 = arith.constant 0 : index
    %21 = vector.load %arg2[%c0_12, %c0_13] : memref<32x256xbf16, #tpu.memory_space<vmem>>, vector<32x256xbf16>
    %22 = arith.extf %21 : vector<32x256xbf16> to vector<32x256xf32>
    %23 = arith.mulf %22, %20 : vector<32x256xf32>
    %24 = arith.addf %14, %23 : vector<32x256xf32>
    %25 = arith.truncf %24 : vector<32x256xf32> to vector<32x256xbf16>
    %c0_14 = arith.constant 0 : index
    %c0_15 = arith.constant 0 : index
    %26 = vector.load %arg7[%c0_14, %c0_15] : memref<256x384xbf16, #tpu.memory_space<vmem>>, vector<256x384xbf16>
    %cst_16 = arith.constant dense<0.000000e+00> : vector<32x384xf32>
    %27 = tpu.matmul %25, %26, %cst_16 {dimension_numbers = #tpu.dot_dimension_numbers<[1], [0], [0], [1], [0, 0, 1, 1], [], []>} : vector<32x256xbf16>, vector<256x384xbf16>, vector<32x384xf32> -> vector<32x384xf32>
    %c0_17 = arith.constant 0 : index
    %c0_18 = arith.constant 0 : index
    %28 = vector.load %arg8[%c0_17, %c0_18] : memref<1x384xf32, #tpu.memory_space<vmem>>, vector<1x384xf32>
    %29 = vector.broadcast %28 : vector<1x384xf32> to vector<32x384xf32>
    %30 = arith.addf %27, %29 : vector<32x384xf32>
    %cst_19 = arith.constant 0.000000e+00 : f32
    %31 = vector.broadcast %cst_19 : f32 to vector<32x384xf32>
    %32 = arith.maximumf %30, %31 : vector<32x384xf32>
    %33 = arith.truncf %32 : vector<32x384xf32> to vector<32x384xbf16>
    %c0_20 = arith.constant 0 : index
    %c0_21 = arith.constant 0 : index
    %34 = vector.load %arg9[%c0_20, %c0_21] : memref<384x512xbf16, #tpu.memory_space<vmem>>, vector<384x512xbf16>
    %cst_22 = arith.constant dense<0.000000e+00> : vector<32x512xf32>
    %35 = tpu.matmul %33, %34, %cst_22 {dimension_numbers = #tpu.dot_dimension_numbers<[1], [0], [0], [1], [0, 0, 1, 1], [], []>} : vector<32x384xbf16>, vector<384x512xbf16>, vector<32x512xf32> -> vector<32x512xf32>
    %c0_23 = arith.constant 0 : index
    %c0_24 = arith.constant 0 : index
    %36 = vector.load %arg10[%c0_23, %c0_24] : memref<1x512xf32, #tpu.memory_space<vmem>>, vector<1x512xf32>
    %37 = vector.broadcast %36 : vector<1x512xf32> to vector<32x512xf32>
    %38 = arith.addf %35, %37 : vector<32x512xf32>
    %39 = arith.truncf %38 : vector<32x512xf32> to vector<32x512xbf16>
    %40 = math.tanh %39 : vector<32x512xbf16>
    %c0_25 = arith.constant 0 : index
    %c0_26 = arith.constant 0 : index
    %41 = vector.load %arg11[%c0_25, %c0_26] : memref<32x512xbf16, #tpu.memory_space<vmem>>, vector<32x512xbf16>
    tpu.vector_store %arg11[%c0_25, %c0_26], %40 {strides = array<i32>} : memref<32x512xbf16, #tpu.memory_space<vmem>>, vector<32x512xbf16>,
    %c0_27 = arith.constant 0 : index
    %c0_28 = arith.constant 0 : index
    %42 = vector.load %arg12[%c0_27, %c0_28] : memref<32x256xf32, #tpu.memory_space<vmem>>, vector<32x256xf32>
    tpu.vector_store %arg12[%c0_27, %c0_28], %14 {strides = array<i32>} : memref<32x256xf32, #tpu.memory_space<vmem>>, vector<32x256xf32>,
    %c0_29 = arith.constant 0 : index
    %c0_30 = arith.constant 0 : index
    %43 = vector.load %arg13[%c0_29, %c0_30] : memref<32x256xf32, #tpu.memory_space<vmem>>, vector<32x256xf32>
    tpu.vector_store %arg13[%c0_29, %c0_30], %15 {strides = array<i32>} : memref<32x256xf32, #tpu.memory_space<vmem>>, vector<32x256xf32>,
    return
  }
  func.func @transform_0(%arg0: i32) -> (i32, i32) {
    %c0_i32 = arith.constant 0 : i32
    %c0_i32_0 = arith.constant 0 : i32
    return %arg0, %c0_i32 : i32, i32
  }
  func.func @transform_1(%arg0: i32) -> (i32, i32) {
    %c0_i32 = arith.constant 0 : i32
    %c0_i32_0 = arith.constant 0 : i32
    return %arg0, %c0_i32 : i32, i32
  }
  func.func @transform_2(%arg0: i32) -> (i32, i32) {
    %c0_i32 = arith.constant 0 : i32
    %c0_i32_0 = arith.constant 0 : i32
    %c0_i32_1 = arith.constant 0 : i32
    return %c0_i32, %c0_i32_0 : i32, i32
  }
  func.func @transform_3(%arg0: i32) -> (i32, i32) {
    %c0_i32 = arith.constant 0 : i32
    %c0_i32_0 = arith.constant 0 : i32
    %c0_i32_1 = arith.constant 0 : i32
    return %c0_i32, %c0_i32_0 : i32, i32
  }
  func.func @transform_4(%arg0: i32) -> (i32, i32) {
    %c0_i32 = arith.constant 0 : i32
    %c0_i32_0 = arith.constant 0 : i32
    %c0_i32_1 = arith.constant 0 : i32
    return %c0_i32, %c0_i32_0 : i32, i32
  }
  func.func @transform_5(%arg0: i32) -> (i32, i32) {
    %c0_i32 = arith.constant 0 : i32
    %c0_i32_0 = arith.constant 0 : i32
    %c0_i32_1 = arith.constant 0 : i32
    return %c0_i32, %c0_i32_0 : i32, i32
  }
  func.func @transform_6(%arg0: i32) -> (i32, i32) {
    %c0_i32 = arith.constant 0 : i32
    %c0_i32_0 = arith.constant 0 : i32
    %c0_i32_1 = arith.constant 0 : i32
    return %c0_i32, %c0_i32_0 : i32, i32
  }
  func.func @transform_7(%arg0: i32) -> (i32, i32) {
    %c0_i32 = arith.constant 0 : i32
    %c0_i32_0 = arith.constant 0 : i32
    %c0_i32_1 = arith.constant 0 : i32
    return %c0_i32, %c0_i32_0 : i32, i32
  }
  func.func @transform_8(%arg0: i32) -> (i32, i32) {
    %c0_i32 = arith.constant 0 : i32
    %c0_i32_0 = arith.constant 0 : i32
    %c0_i32_1 = arith.constant 0 : i32
    return %c0_i32, %c0_i32_0 : i32, i32
  }
  func.func @transform_9(%arg0: i32) -> (i32, i32) {
    %c0_i32 = arith.constant 0 : i32
    %c0_i32_0 = arith.constant 0 : i32
    %c0_i32_1 = arith.constant 0 : i32
    return %c0_i32, %c0_i32_0 : i32, i32
  }
  func.func @transform_10(%arg0: i32) -> (i32, i32) {
    %c0_i32 = arith.constant 0 : i32
    %c0_i32_0 = arith.constant 0 : i32
    return %arg0, %c0_i32 : i32, i32
  }
  func.func @transform_11(%arg0: i32) -> (i32, i32) {
    %c0_i32 = arith.constant 0 : i32
    %c0_i32_0 = arith.constant 0 : i32
    return %arg0, %c0_i32 : i32, i32
  }
  func.func @transform_12(%arg0: i32) -> (i32, i32) {
    %c0_i32 = arith.constant 0 : i32
    %c0_i32_0 = arith.constant 0 : i32
    return %arg0, %c0_i32 : i32, i32
  }
}

</mosaic_0001>

<llo_original>
// kernel: tpu_custom_call.1
$region0: #{tpu_custom_call.1}
  #allocation0 [shape = 'u32[]', space=smem, size = 0x4, offset = 0x4, fixed_abs, tag = 'smem constant byte address 0x4 - core index']
  #allocation1 [shape = 'u32[144,128]{1,0:T(1,128)}', space=vmem, size = 0x12000, scoped, tag = 'internal scratch']
  %s0 = inlined_call_operand.hbm [shape: bf16[64,512], index: 0, kind: input, shape index: {}]
  %s1 = inlined_call_operand.hbm [shape: bf16[64,256], index: 1, kind: input, shape index: {}]
  %s2 = inlined_call_operand.hbm [shape: bf16[512,384], index: 2, kind: input, shape index: {}]
  %s3 = inlined_call_operand.vmem [shape: f32[1,384], index: 3, kind: input, shape index: {}]
  %s4 = inlined_call_operand.hbm [shape: bf16[384,512], index: 4, kind: input, shape index: {}]
  %s5 = inlined_call_operand.vmem [shape: f32[1,512], index: 5, kind: input, shape index: {}]
  %s6 = inlined_call_operand.hbm [shape: bf16[256,384], index: 6, kind: input, shape index: {}]
  %s7 = inlined_call_operand.vmem [shape: f32[1,384], index: 7, kind: input, shape index: {}]
  %s8 = inlined_call_operand.hbm [shape: bf16[384,512], index: 8, kind: input, shape index: {}]
  %s9 = inlined_call_operand.vmem [shape: f32[1,512], index: 9, kind: input, shape index: {}]
  %s10 = inlined_call_operand.hbm [shape: bf16[64,512], index: 10, kind: output, shape index: {0}]
  %s11 = inlined_call_operand.hbm [shape: f32[64,256], index: 11, kind: output, shape index: {1}]
  %s12 = inlined_call_operand.hbm [shape: f32[64,256], index: 12, kind: output, shape index: {2}]
  %13 = xla_tuple %s10, %s11, %s12
  %s14 = sld [smem:[#allocation0]]
  $region113: #{tpu_custom_call.1} parent=0
    _
  %s16 = ssub.s32 1, %s14
  %s17 = scalar_select 0, %s16, %s14
  $region1: #{tpu_custom_call.1} parent=0
    #allocation2 [shape = 'u8[65536]{0}', space=vmem, size = 0x10000, scoped, tag = 'input window, operand 0']
    #allocation3 [shape = 's32[2]{0}', space=sflag, size = 0x8, scoped, tag = 'scoped memory for tpu_custom_call.1']
    #allocation4 [shape = 's32[2]{0}', space=sflag, size = 0x8, scoped, tag = 'scoped memory for tpu_custom_call.1']
    #allocation5 [shape = 'u8[32768]{0}', space=vmem, size = 0x8000, scoped, tag = 'input window, operand 1']
    #allocation6 [shape = 's32[2]{0}', space=sflag, size = 0x8, scoped, tag = 'scoped memory for tpu_custom_call.1']
    #allocation7 [shape = 'u8[393216]{0}', space=vmem, size = 0x60000, scoped, tag = 'input window, operand 2, single buffered']
    #allocation8 [shape = 'u8[393216]{0}', space=vmem, size = 0x60000, scoped, tag = 'input window, operand 4, single buffered']
    #allocation9 [shape = 's32[1]{0}', space=sflag, size = 0x4, scoped, tag = 'scoped memory for tpu_custom_call.1']
    #allocation10 [shape = 'u8[196608]{0}', space=vmem, size = 0x30000, scoped, tag = 'input window, operand 6, single buffered']
    #allocation11 [shape = 'u8[393216]{0}', space=vmem, size = 0x60000, scoped, tag = 'input window, operand 8, single buffered']
    #allocation12 [shape = 's32[1]{0}', space=sflag, size = 0x4, scoped, tag = 'scoped memory for tpu_custom_call.1']
    #allocation13 [shape = 'u8[65536]{0}', space=vmem, size = 0x10000, scoped, tag = 'output window, operand 0']
    #allocation14 [shape = 'u8[65536]{0}', space=vmem, size = 0x10000, scoped, tag = 'output window, operand 1']
    #allocation15 [shape = 's32[2]{0}', space=sflag, size = 0x8, scoped, tag = 'scoped memory for tpu_custom_call.1']
    #allocation16 [shape = 'u8[65536]{0}', space=vmem, size = 0x10000, scoped, tag = 'output window, operand 2']
    %18 = vsyncpa [#allocation3], 0
    %s19 = scalar_lea.sflag [#allocation3], 1
    %20 = vsyncpa %s19, 0
    %21 = vsyncpa [#allocation6], 0
    %s22 = scalar_lea.sflag [#allocation6], 1
    %23 = vsyncpa %s22, 0
    %24 = vsyncpa [#allocation9], 0
    %25 = vsyncpa [#allocation12], 0
    %26 = vsyncpa [#allocation4], 0
    %s27 = scalar_lea.sflag [#allocation4], 1
    %28 = vsyncpa %s27, 0
    %29 = vsyncpa [#allocation15], 0
    %s30 = scalar_lea.sflag [#allocation15], 1
    %31 = vsyncpa %s30, 0
    loop: start=0, step=1, limit=4
    $region2: #{tpu_custom_call.1} parent=1 // loop_pre_header
      _
    $region3: #{tpu_custom_call.1} parent=1 // loop_header
      %s33 = sphi 0, %s37
      %p34 = scmp.ge.s32.totalorder %s33, 4
      %s43 = sphi 0, %s45
      %s46 = sphi 0, %s43
      %s47 = sphi 0, %s46
      %s63 = sphi 0, %s47
      %s69 = sphi 0, %s71
      %s72 = sphi 0, %s69
      %s73 = sphi 0, %s72
      %s89 = sphi 0, %s73
      %s93 = sphi 0, %s93
      %s95 = sphi 0, %s93
      %s96 = sphi 0, %s95
      %s110 = sphi 0, %s96
      %s114 = sphi 0, %s114
      %s116 = sphi 0, %s114
      %s117 = sphi 0, %s116
      %s131 = sphi 0, %s117
      %s135 = sphi 0, %s135
      %s137 = sphi 0, %s135
      %s138 = sphi 0, %s137
      %s152 = sphi 0, %s138
      %s156 = sphi 0, %s156
      %s158 = sphi 0, %s156
      %s159 = sphi 0, %s158
      %s173 = sphi 0, %s159
      %s177 = sphi 0, %s177
      %s179 = sphi 0, %s177
      %s180 = sphi 0, %s179
      %s194 = sphi 0, %s180
      %s198 = sphi 0, %s198
      %s200 = sphi 0, %s198
      %s201 = sphi 0, %s200
      %s215 = sphi 0, %s201
      %s219 = sphi 0, %s219
      %s221 = sphi 0, %s219
      %s222 = sphi 0, %s221
      %s236 = sphi 0, %s222
      %s240 = sphi 0, %s240
      %s242 = sphi 0, %s240
      %s243 = sphi 0, %s242
      %s257 = sphi 0, %s243
      %s263 = sphi 0, %s265
      %s266 = sphi 0, %s263
      %s267 = sphi 0, %s266
      %s283 = sphi 0, %s267
      %s289 = sphi 0, %s291
      %s292 = sphi 0, %s289
      %s293 = sphi 0, %s292
      %s309 = sphi 0, %s293
      %s315 = sphi 0, %s317
      %s318 = sphi 0, %s315
      %s319 = sphi 0, %s318
      %s335 = sphi 0, %s319
    $region4: #{tpu_custom_call.1} parent=1 // loop_header_branch
      %36 = sbr.rel (%p34) target = $region8
    $region5: #{tpu_custom_call.1} parent=1 // loop_body
      %s38 = ssub.s32 %s33, 1
      %s39 = ssub.s32 %s33, 2
      %s40 = sadd.s32 %s33, 1
      %s41 = ssub.s32 %s33, %s40
      %p42 = scmp.eq.s32.totalorder %s41, 0
      %s44 = sadd.s32 %s43, 1
      %s45 = scalar_select %p42, %s43, %s44
      %p48 = pneg %p42
      %p49 = scmp.eq.s32.totalorder %s33, 1
      %p50 = por %p48, %p49
      %p51 = scmp.ne.s32.totalorder %s43, %s46
      %p52 = scmp.eq.s32.totalorder %s33, 0
      %p53 = por %p51, %p52
      %p54 = scmp.ne.s32.totalorder %s43, %s46
      %p55 = scmp.eq.s32.totalorder %s38, 1
      %p56 = por %p54, %p55
      %p57 = scmp.ne.s32.totalorder %s46, %s47
      %p58 = scmp.eq.s32.totalorder %s38, 0
      %p59 = por %p57, %p58
      %p60 = scmp.ne.s32.totalorder %s46, %s47
      %p61 = scmp.eq.s32.totalorder %s39, 1
      %p62 = por %p60, %p61
      %p64 = scmp.ne.s32.totalorder %s47, %s63
      %p65 = scmp.eq.s32.totalorder %s39, 0
      %p66 = por %p64, %p65
      %s67 = ssub.s32 %s33, %s40
      %p68 = scmp.eq.s32.totalorder %s67, 0
      %s70 = sadd.s32 %s69, 1
      %s71 = scalar_select %p68, %s69, %s70
      %p74 = pneg %p68
      %p75 = scmp.eq.s32.totalorder %s33, 1
      %p76 = por %p74, %p75
      %p77 = scmp.ne.s32.totalorder %s69, %s72
      %p78 = scmp.eq.s32.totalorder %s33, 0
      %p79 = por %p77, %p78
      %p80 = scmp.ne.s32.totalorder %s69, %s72
      %p81 = scmp.eq.s32.totalorder %s38, 1
      %p82 = por %p80, %p81
      %p83 = scmp.ne.s32.totalorder %s72, %s73
      %p84 = scmp.eq.s32.totalorder %s38, 0
      %p85 = por %p83, %p84
      %p86 = scmp.ne.s32.totalorder %s72, %s73
      %p87 = scmp.eq.s32.totalorder %s39, 1
      %p88 = por %p86, %p87
      %p90 = scmp.ne.s32.totalorder %s73, %s89
      %p91 = scmp.eq.s32.totalorder %s39, 0
      %p92 = por %p90, %p91
      %s94 = sadd.s32 %s93, 1
      %p97 = scmp.eq.s32.totalorder %s33, 1
      %p98 = scmp.ne.s32.totalorder %s93, %s95
      %p99 = scmp.eq.s32.totalorder %s33, 0
      %p100 = por %p98, %p99
      %p101 = scmp.ne.s32.totalorder %s93, %s95
      %p102 = scmp.eq.s32.totalorder %s38, 1
      %p103 = por %p101, %p102
      %p104 = scmp.ne.s32.totalorder %s95, %s96
      %p105 = scmp.eq.s32.totalorder %s38, 0
      %p106 = por %p104, %p105
      %p107 = scmp.ne.s32.totalorder %s95, %s96
      %p108 = scmp.eq.s32.totalorder %s39, 1
      %p109 = por %p107, %p108
      %p111 = scmp.ne.s32.totalorder %s96, %s110
      %p112 = scmp.eq.s32.totalorder %s39, 0
      %p113 = por %p111, %p112
      %s115 = sadd.s32 %s114, 1
      %p118 = scmp.eq.s32.totalorder %s33, 1
      %p119 = scmp.ne.s32.totalorder %s114, %s116
      %p120 = scmp.eq.s32.totalorder %s33, 0
      %p121 = por %p119, %p120
      %p122 = scmp.ne.s32.totalorder %s114, %s116
      %p123 = scmp.eq.s32.totalorder %s38, 1
      %p124 = por %p122, %p123
      %p125 = scmp.ne.s32.totalorder %s116, %s117
      %p126 = scmp.eq.s32.totalorder %s38, 0
      %p127 = por %p125, %p126
      %p128 = scmp.ne.s32.totalorder %s116, %s117
      %p129 = scmp.eq.s32.totalorder %s39, 1
      %p130 = por %p128, %p129
      %p132 = scmp.ne.s32.totalorder %s117, %s131
      %p133 = scmp.eq.s32.totalorder %s39, 0
      %p134 = por %p132, %p133
      %s136 = sadd.s32 %s135, 1
      %p139 = scmp.eq.s32.totalorder %s33, 1
      %p140 = scmp.ne.s32.totalorder %s135, %s137
      %p141 = scmp.eq.s32.totalorder %s33, 0
      %p142 = por %p140, %p141
      %p143 = scmp.ne.s32.totalorder %s135, %s137
      %p144 = scmp.eq.s32.totalorder %s38, 1
      %p145 = por %p143, %p144
      %p146 = scmp.ne.s32.totalorder %s137, %s138
      %p147 = scmp.eq.s32.totalorder %s38, 0
      %p148 = por %p146, %p147
      %p149 = scmp.ne.s32.totalorder %s137, %s138
      %p150 = scmp.eq.s32.totalorder %s39, 1
      %p151 = por %p149, %p150
      %p153 = scmp.ne.s32.totalorder %s138, %s152
      %p154 = scmp.eq.s32.totalorder %s39, 0
      %p155 = por %p153, %p154
      %s157 = sadd.s32 %s156, 1
      %p160 = scmp.eq.s32.totalorder %s33, 1
      %p161 = scmp.ne.s32.totalorder %s156, %s158
      %p162 = scmp.eq.s32.totalorder %s33, 0
      %p163 = por %p161, %p162
      %p164 = scmp.ne.s32.totalorder %s156, %s158
      %p165 = scmp.eq.s32.totalorder %s38, 1
      %p166 = por %p164, %p165
      %p167 = scmp.ne.s32.totalorder %s158, %s159
      %p168 = scmp.eq.s32.totalorder %s38, 0
      %p169 = por %p167, %p168
      %p170 = scmp.ne.s32.totalorder %s158, %s159
      %p171 = scmp.eq.s32.totalorder %s39, 1
      %p172 = por %p170, %p171
      %p174 = scmp.ne.s32.totalorder %s159, %s173
      %p175 = scmp.eq.s32.totalorder %s39, 0
      %p176 = por %p174, %p175
      %s178 = sadd.s32 %s177, 1
      %p181 = scmp.eq.s32.totalorder %s33, 1
      %p182 = scmp.ne.s32.totalorder %s177, %s179
      %p183 = scmp.eq.s32.totalorder %s33, 0
      %p184 = por %p182, %p183
      %p185 = scmp.ne.s32.totalorder %s177, %s179
      %p186 = scmp.eq.s32.totalorder %s38, 1
      %p187 = por %p185, %p186
      %p188 = scmp.ne.s32.totalorder %s179, %s180
      %p189 = scmp.eq.s32.totalorder %s38, 0
      %p190 = por %p188, %p189
      %p191 = scmp.ne.s32.totalorder %s179, %s180
      %p192 = scmp.eq.s32.totalorder %s39, 1
      %p193 = por %p191, %p192
      %p195 = scmp.ne.s32.totalorder %s180, %s194
      %p196 = scmp.eq.s32.totalorder %s39, 0
      %p197 = por %p195, %p196
      %s199 = sadd.s32 %s198, 1
      %p202 = scmp.eq.s32.totalorder %s33, 1
      %p203 = scmp.ne.s32.totalorder %s198, %s200
      %p204 = scmp.eq.s32.totalorder %s33, 0
      %p205 = por %p203, %p204
      %p206 = scmp.ne.s32.totalorder %s198, %s200
      %p207 = scmp.eq.s32.totalorder %s38, 1
      %p208 = por %p206, %p207
      %p209 = scmp.ne.s32.totalorder %s200, %s201
      %p210 = scmp.eq.s32.totalorder %s38, 0
      %p211 = por %p209, %p210
      %p212 = scmp.ne.s32.totalorder %s200, %s201
      %p213 = scmp.eq.s32.totalorder %s39, 1
      %p214 = por %p212, %p213
      %p216 = scmp.ne.s32.totalorder %s201, %s215
      %p217 = scmp.eq.s32.totalorder %s39, 0
      %p218 = por %p216, %p217
      %s220 = sadd.s32 %s219, 1
      %p223 = scmp.eq.s32.totalorder %s33, 1
      %p224 = scmp.ne.s32.totalorder %s219, %s221
      %p225 = scmp.eq.s32.totalorder %s33, 0
      %p226 = por %p224, %p225
      %p227 = scmp.ne.s32.totalorder %s219, %s221
      %p228 = scmp.eq.s32.totalorder %s38, 1
      %p229 = por %p227, %p228
      %p230 = scmp.ne.s32.totalorder %s221, %s222
      %p231 = scmp.eq.s32.totalorder %s38, 0
      %p232 = por %p230, %p231
      %p233 = scmp.ne.s32.totalorder %s221, %s222
      %p234 = scmp.eq.s32.totalorder %s39, 1
      %p235 = por %p233, %p234
      %p237 = scmp.ne.s32.totalorder %s222, %s236
      %p238 = scmp.eq.s32.totalorder %s39, 0
      %p239 = por %p237, %p238
      %s241 = sadd.s32 %s240, 1
      %p244 = scmp.eq.s32.totalorder %s33, 1
      %p245 = scmp.ne.s32.totalorder %s240, %s242
      %p246 = scmp.eq.s32.totalorder %s33, 0
      %p247 = por %p245, %p246
      %p248 = scmp.ne.s32.totalorder %s240, %s242
      %p249 = scmp.eq.s32.totalorder %s38, 1
      %p250 = por %p248, %p249
      %p251 = scmp.ne.s32.totalorder %s242, %s243
      %p252 = scmp.eq.s32.totalorder %s38, 0
      %p253 = por %p251, %p252
      %p254 = scmp.ne.s32.totalorder %s242, %s243
      %p255 = scmp.eq.s32.totalorder %s39, 1
      %p256 = por %p254, %p255
      %p258 = scmp.ne.s32.totalorder %s243, %s257
      %p259 = scmp.eq.s32.totalorder %s39, 0
      %p260 = por %p258, %p259
      %s261 = ssub.s32 %s33, %s40
      %p262 = scmp.eq.s32.totalorder %s261, 0
      %s264 = sadd.s32 %s263, 1
      %s265 = scalar_select %p262, %s263, %s264
      %p268 = pneg %p262
      %p269 = scmp.eq.s32.totalorder %s33, 1
      %p270 = por %p268, %p269
      %p271 = scmp.ne.s32.totalorder %s263, %s266
      %p272 = scmp.eq.s32.totalorder %s33, 0
      %p273 = por %p271, %p272
      %p274 = scmp.ne.s32.totalorder %s263, %s266
      %p275 = scmp.eq.s32.totalorder %s38, 1
      %p276 = por %p274, %p275
      %p277 = scmp.ne.s32.totalorder %s266, %s267
      %p278 = scmp.eq.s32.totalorder %s38, 0
      %p279 = por %p277, %p278
      %p280 = scmp.ne.s32.totalorder %s266, %s267
      %p281 = scmp.eq.s32.totalorder %s39, 1
      %p282 = por %p280, %p281
      %p284 = scmp.ne.s32.totalorder %s267, %s283
      %p285 = scmp.eq.s32.totalorder %s39, 0
      %p286 = por %p284, %p285
      %s287 = ssub.s32 %s33, %s40
      %p288 = scmp.eq.s32.totalorder %s287, 0
      %s290 = sadd.s32 %s289, 1
      %s291 = scalar_select %p288, %s289, %s290
      %p294 = pneg %p288
      %p295 = scmp.eq.s32.totalorder %s33, 1
      %p296 = por %p294, %p295
      %p297 = scmp.ne.s32.totalorder %s289, %s292
      %p298 = scmp.eq.s32.totalorder %s33, 0
      %p299 = por %p297, %p298
      %p300 = scmp.ne.s32.totalorder %s289, %s292
      %p301 = scmp.eq.s32.totalorder %s38, 1
      %p302 = por %p300, %p301
      %p303 = scmp.ne.s32.totalorder %s292, %s293
      %p304 = scmp.eq.s32.totalorder %s38, 0
      %p305 = por %p303, %p304
      %p306 = scmp.ne.s32.totalorder %s292, %s293
      %p307 = scmp.eq.s32.totalorder %s39, 1
      %p308 = por %p306, %p307
      %p310 = scmp.ne.s32.totalorder %s293, %s309
      %p311 = scmp.eq.s32.totalorder %s39, 0
      %p312 = por %p310, %p311
      %s313 = ssub.s32 %s33, %s40
      %p314 = scmp.eq.s32.totalorder %s313, 0
      %s316 = sadd.s32 %s315, 1
      %s317 = scalar_select %p314, %s315, %s316
      %p320 = pneg %p314
      %p321 = scmp.eq.s32.totalorder %s33, 1
      %p322 = por %p320, %p321
      %p323 = scmp.ne.s32.totalorder %s315, %s318
      %p324 = scmp.eq.s32.totalorder %s33, 0
      %p325 = por %p323, %p324
      %p326 = scmp.ne.s32.totalorder %s315, %s318
      %p327 = scmp.eq.s32.totalorder %s38, 1
      %p328 = por %p326, %p327
      %p329 = scmp.ne.s32.totalorder %s318, %s319
      %p330 = scmp.eq.s32.totalorder %s38, 0
      %p331 = por %p329, %p330
      %p332 = scmp.ne.s32.totalorder %s318, %s319
      %p333 = scmp.eq.s32.totalorder %s39, 1
      %p334 = por %p332, %p333
      %p336 = scmp.ne.s32.totalorder %s319, %s335
      %p337 = scmp.eq.s32.totalorder %s39, 0
      %p338 = por %p336, %p337
      %p339 = scmp.le.s32.totalorder 1, %s33
      %p340 = scmp.lt.s32.totalorder %s33, 3
      %p341 = pnand %p339, %p340
      %p342 = pneg %p341
      // Predicated region
      $region9: #{tpu_custom_call.1} parent=5 // pred_check
        _
      $region10: #{tpu_custom_call.1} parent=5 // pred_check_branch
        %344 = sbr.rel (%p341) target = $region12
      $region11: #{tpu_custom_call.1} parent=5 // pred_region
        %s345 = ssub.s32 %s33, 1
        // Predicated region
        $region13: #{tpu_custom_call.1} parent=11 // pred_check
          %p346 = pneg %p106
        $region14: #{tpu_custom_call.1} parent=11 // pred_check_branch
          %348 = sbr.rel (%p346) target = $region16
        $region15: #{tpu_custom_call.1} parent=11 // pred_region
          %s350 = ssub.s32 12288, 12288
          %351 = vsyncadd [#allocation6], %s350
          %s352 = sshll.u32 [#allocation7], 4
          %s353 = int_to_ptr.vmem [resolvable:$true] %s352
          %358 = dma.hbm_to_vmem [thread:$0]  %s2, 12288, %s353, [#allocation6], 192, 192, 12
        $region16: #{tpu_custom_call.1} parent=11 // pred_fallthru
          _
        // Predicated region
        $region17: #{tpu_custom_call.1} parent=11 // pred_check
          %p359 = pneg %p127
        $region18: #{tpu_custom_call.1} parent=11 // pred_check_branch
          %361 = sbr.rel (%p359) target = $region20
        $region19: #{tpu_custom_call.1} parent=11 // pred_region
          _
        $region20: #{tpu_custom_call.1} parent=11 // pred_fallthru
          _
        // Predicated region
        $region21: #{tpu_custom_call.1} parent=11 // pred_check
          %p362 = pneg %p148
        $region22: #{tpu_custom_call.1} parent=11 // pred_check_branch
          %364 = sbr.rel (%p362) target = $region24
        $region23: #{tpu_custom_call.1} parent=11 // pred_region
          %s366 = ssub.s32 12288, 12288
          %367 = vsyncadd [#allocation9], %s366
          %s368 = sshll.u32 [#allocation8], 4
          %s369 = int_to_ptr.vmem [resolvable:$true] %s368
          %374 = dma.hbm_to_vmem [thread:$0]  %s4, 12288, %s369, [#allocation9], 256, 256, 16
        $region24: #{tpu_custom_call.1} parent=11 // pred_fallthru
          _
        // Predicated region
        $region25: #{tpu_custom_call.1} parent=11 // pred_check
          %p375 = pneg %p169
        $region26: #{tpu_custom_call.1} parent=11 // pred_check_branch
          %377 = sbr.rel (%p375) target = $region28
        $region27: #{tpu_custom_call.1} parent=11 // pred_region
          _
        $region28: #{tpu_custom_call.1} parent=11 // pred_fallthru
          _
        // Predicated region
        $region29: #{tpu_custom_call.1} parent=11 // pred_check
          %p378 = pneg %p190
        $region30: #{tpu_custom_call.1} parent=11 // pred_check_branch
          %380 = sbr.rel (%p378) target = $region32
        $region31: #{tpu_custom_call.1} parent=11 // pred_region
          %s382 = ssub.s32 6144, 6144
          %383 = vsyncadd [#allocation9], %s382
          %s384 = sshll.u32 [#allocation10], 4
          %s385 = int_to_ptr.vmem [resolvable:$true] %s384
          %390 = dma.hbm_to_vmem [thread:$0]  %s6, 6144, %s385, [#allocation9], 192, 192, 12
        $region32: #{tpu_custom_call.1} parent=11 // pred_fallthru
          _
        // Predicated region
        $region33: #{tpu_custom_call.1} parent=11 // pred_check
          %p391 = pneg %p211
        $region34: #{tpu_custom_call.1} parent=11 // pred_check_branch
          %393 = sbr.rel (%p391) target = $region36
        $region35: #{tpu_custom_call.1} parent=11 // pred_region
          _
        $region36: #{tpu_custom_call.1} parent=11 // pred_fallthru
          _
        // Predicated region
        $region37: #{tpu_custom_call.1} parent=11 // pred_check
          %p394 = pneg %p232
        $region38: #{tpu_custom_call.1} parent=11 // pred_check_branch
          %396 = sbr.rel (%p394) target = $region40
        $region39: #{tpu_custom_call.1} parent=11 // pred_region
          %s398 = ssub.s32 12288, 12288
          %399 = vsyncadd [#allocation12], %s398
          %s400 = sshll.u32 [#allocation11], 4
          %s401 = int_to_ptr.vmem [resolvable:$true] %s400
          %406 = dma.hbm_to_vmem [thread:$0]  %s8, 12288, %s401, [#allocation12], 256, 256, 16
        $region40: #{tpu_custom_call.1} parent=11 // pred_fallthru
          _
        // Predicated region
        $region41: #{tpu_custom_call.1} parent=11 // pred_check
          %p407 = pneg %p253
        $region42: #{tpu_custom_call.1} parent=11 // pred_check_branch
          %409 = sbr.rel (%p407) target = $region44
        $region43: #{tpu_custom_call.1} parent=11 // pred_region
          _
        $region44: #{tpu_custom_call.1} parent=11 // pred_fallthru
          _
      $region12: #{tpu_custom_call.1} parent=5 // pred_fallthru
        _
      %p410 = scmp.lt.s32.totalorder %s33, 2
      // Predicated region
      $region45: #{tpu_custom_call.1} parent=5 // pred_check
        %p411 = pneg %p410
      $region46: #{tpu_custom_call.1} parent=5 // pred_check_branch
        %413 = sbr.rel (%p411) target = $region48
      $region47: #{tpu_custom_call.1} parent=5 // pred_region
        // Predicated region
        $region49: #{tpu_custom_call.1} parent=47 // pred_check
          %p414 = pneg %p53
        $region50: #{tpu_custom_call.1} parent=47 // pred_check_branch
          %416 = sbr.rel (%p414) target = $region52
        $region51: #{tpu_custom_call.1} parent=47 // pred_region
          %s417 = sand.u32 %s43, 1
          %s418 = scalar_lea.sflag [#allocation3], %s417
          %s419 = sand.u32 %s43, 1
          %s420 = smul.addr %s419, 64
          %s421 = scalar_lea.vmem [#allocation2], %s420
          %s422 = smul.u32 4, %s33
          %s424 = ssub.s32 1024, 1024
          %425 = vsyncadd %s418, %s424
          %s426 = smul.addr %s422, 4
          %s427 = smul.addr %s426, 64
          %s428 = scalar_lea.hbm %s0, %s427
          %s429 = sshll.u32 %s421, 4
          %s430 = int_to_ptr.vmem [resolvable:$true] %s429
          %435 = dma.hbm_to_vmem [thread:$0]  %s428, 1024, %s430, %s418, 256, 256, 16
        $region52: #{tpu_custom_call.1} parent=47 // pred_fallthru
          _
        // Predicated region
        $region53: #{tpu_custom_call.1} parent=47 // pred_check
          %p436 = pneg %p79
        $region54: #{tpu_custom_call.1} parent=47 // pred_check_branch
          %438 = sbr.rel (%p436) target = $region56
        $region55: #{tpu_custom_call.1} parent=47 // pred_region
          %s439 = sand.u32 %s33, 1
          %s440 = scalar_lea.sflag [#allocation6], %s439
          %s441 = sand.u32 %s69, 1
          %s442 = smul.addr %s441, 32
          %s443 = scalar_lea.vmem [#allocation5], %s442
          %s444 = smul.u32 4, %s33
          %s446 = ssub.s32 512, 512
          %447 = vsyncadd %s440, %s446
          %s448 = smul.addr %s444, 2
          %s449 = smul.addr %s448, 64
          %s450 = scalar_lea.hbm %s1, %s449
          %s451 = sshll.u32 %s443, 4
          %s452 = int_to_ptr.vmem [resolvable:$true] %s451
          %457 = dma.hbm_to_vmem [thread:$0]  %s450, 512, %s452, %s440, 128, 128, 8
        $region56: #{tpu_custom_call.1} parent=47 // pred_fallthru
          _
      $region48: #{tpu_custom_call.1} parent=5 // pred_fallthru
        _
      %p458 = scmp.le.s32.totalorder 1, %s33
      %p459 = scmp.lt.s32.totalorder %s33, 3
      %p460 = pnand %p458, %p459
      %p461 = pneg %p460
      // Predicated region
      $region57: #{tpu_custom_call.1} parent=5 // pred_check
        _
      $region58: #{tpu_custom_call.1} parent=5 // pred_check_branch
        %463 = sbr.rel (%p460) target = $region60
      $region59: #{tpu_custom_call.1} parent=5 // pred_region
        %s464 = ssub.s32 %s33, 1
        %s465 = sand.u32 %s46, 1
        %s466 = scalar_lea.sflag [#allocation3], %s465
        %s467 = sand.u32 %s46, 1
        %s468 = smul.addr %s467, 64
        %s469 = scalar_lea.vmem [#allocation2], %s468
        // Predicated region
        $region61: #{tpu_custom_call.1} parent=59 // pred_check
          %p470 = pneg %p59
        $region62: #{tpu_custom_call.1} parent=59 // pred_check_branch
          %472 = sbr.rel (%p470) target = $region64
        $region63: #{tpu_custom_call.1} parent=59 // pred_region
          %473 = dma.done %s466, 1024
        $region64: #{tpu_custom_call.1} parent=59 // pred_fallthru
          _
        %s474 = sand.u32 %s38, 1
        %s475 = scalar_lea.sflag [#allocation6], %s474
        %s476 = sand.u32 %s72, 1
        %s477 = smul.addr %s476, 32
        %s478 = scalar_lea.vmem [#allocation5], %s477
        // Predicated region
        $region65: #{tpu_custom_call.1} parent=59 // pred_check
          %p479 = pneg %p85
        $region66: #{tpu_custom_call.1} parent=59 // pred_check_branch
          %481 = sbr.rel (%p479) target = $region68
        $region67: #{tpu_custom_call.1} parent=59 // pred_region
          %482 = dma.done %s475, 512
        $region68: #{tpu_custom_call.1} parent=59 // pred_fallthru
          _
        // Predicated region
        $region69: #{tpu_custom_call.1} parent=59 // pred_check
          %p483 = pneg %p106
        $region70: #{tpu_custom_call.1} parent=59 // pred_check_branch
          %485 = sbr.rel (%p483) target = $region72
        $region71: #{tpu_custom_call.1} parent=59 // pred_region
          %486 = dma.done [#allocation6], 12288
        $region72: #{tpu_custom_call.1} parent=59 // pred_fallthru
          _
        // Predicated region
        $region73: #{tpu_custom_call.1} parent=59 // pred_check
          %p487 = pneg %p148
        $region74: #{tpu_custom_call.1} parent=59 // pred_check_branch
          %489 = sbr.rel (%p487) target = $region76
        $region75: #{tpu_custom_call.1} parent=59 // pred_region
          %490 = dma.done [#allocation9], 12288
        $region76: #{tpu_custom_call.1} parent=59 // pred_fallthru
          _
        // Predicated region
        $region77: #{tpu_custom_call.1} parent=59 // pred_check
          %p491 = pneg %p190
        $region78: #{tpu_custom_call.1} parent=59 // pred_check_branch
          %493 = sbr.rel (%p491) target = $region80
        $region79: #{tpu_custom_call.1} parent=59 // pred_region
          %494 = dma.done [#allocation9], 6144
        $region80: #{tpu_custom_call.1} parent=59 // pred_fallthru
          _
        // Predicated region
        $region81: #{tpu_custom_call.1} parent=59 // pred_check
          %p495 = pneg %p232
        $region82: #{tpu_custom_call.1} parent=59 // pred_check_branch
          %497 = sbr.rel (%p495) target = $region84
        $region83: #{tpu_custom_call.1} parent=59 // pred_region
          %498 = dma.done [#allocation12], 12288
        $region84: #{tpu_custom_call.1} parent=59 // pred_fallthru
          _
        %s499 = sand.u32 %s46, 1
        %s500 = scalar_lea.sflag [#allocation3], %s499
        %s501 = sand.u32 %s46, 1
        %s502 = smul.addr %s501, 64
        %s503 = scalar_lea.vmem [#allocation2], %s502
        %p504 = pneg %p59
        %p505 = pneg %p56
        %s506 = sand.u32 %s38, 1
        %s507 = scalar_lea.sflag [#allocation6], %s506
        %s508 = sand.u32 %s72, 1
        %s509 = smul.addr %s508, 32
        %s510 = scalar_lea.vmem [#allocation5], %s509
        %p511 = pneg %p85
        %p512 = pneg %p82
        %p513 = pneg %p106
        %p514 = pneg %p103
        %p515 = pneg %p127
        %p516 = pneg %p124
        %p517 = pneg %p148
        %p518 = pneg %p145
        %p519 = pneg %p169
        %p520 = pneg %p166
        %p521 = pneg %p190
        %p522 = pneg %p187
        %p523 = pneg %p211
        %p524 = pneg %p208
        %p525 = pneg %p232
        %p526 = pneg %p229
        %p527 = pneg %p253
        %p528 = pneg %p250
        %p529 = pneg %p279
        %p530 = pneg %p276
        %s531 = sand.u32 %s266, 1
        %s532 = scalar_lea.sflag [#allocation4], %s531
        %s533 = sand.u32 %s266, 1
        %s534 = smul.addr %s533, 64
        %s535 = scalar_lea.vmem [#allocation13], %s534
        %p536 = pneg %p305
        %p537 = pneg %p302
        %s538 = sand.u32 %s38, 1
        %s539 = scalar_lea.sflag [#allocation15], %s538
        %s540 = sand.u32 %s292, 1
        %s541 = smul.addr %s540, 64
        %s542 = scalar_lea.vmem [#allocation14], %s541
        %p543 = pneg %p331
        %p544 = pneg %p328
        %s545 = sand.u32 %s38, 1
        %s546 = scalar_lea.sflag [#allocation15], %s545
        %s547 = sand.u32 %s318, 1
        %s548 = smul.addr %s547, 64
        %s549 = scalar_lea.vmem [#allocation16], %s548
        %s550 = smul.u32 4, %s38
        %s551 = smul.u32 4, %s38
        %s552 = smul.u32 4, %s38
        %s553 = smul.u32 4, %s38
        %s554 = smul.u32 4, %s38
        %v556 = vld [vmem:[%s469] sm:$0xff]
        %v557 = vld [vmem:[%s469 + $0x8] sm:$0xff]
        %v558 = vld [vmem:[%s469 + $0x10] sm:$0xff]
        %v559 = vld [vmem:[%s469 + $0x18] sm:$0xff]
        %v560 = vld [vmem:[%s469 + $0x20] sm:$0xff]
        %v561 = vld [vmem:[%s469 + $0x28] sm:$0xff]
        %v562 = vld [vmem:[%s469 + $0x30] sm:$0xff]
        %v563 = vld [vmem:[%s469 + $0x38] sm:$0xff]
        %v564 = vld [vmem:[#allocation7] sm:$0xff]
        %v565 = vld [vmem:[#allocation7 + $0x8] sm:$0xf]
        %v566 = vld [vmem:[#allocation7 + $0xc] sm:$0xff]
        %v567 = vld [vmem:[#allocation7 + $0x14] sm:$0xf]
        %v568 = vld [vmem:[#allocation7 + $0x18] sm:$0xff]
        %v569 = vld [vmem:[#allocation7 + $0x20] sm:$0xf]
        %v570 = vld [vmem:[#allocation7 + $0x24] sm:$0xff]
        %v571 = vld [vmem:[#allocation7 + $0x2c] sm:$0xf]
        %v572 = vld [vmem:[#allocation7 + $0x30] sm:$0xff]
        %v573 = vld [vmem:[#allocation7 + $0x38] sm:$0xf]
        %v574 = vld [vmem:[#allocation7 + $0x3c] sm:$0xff]
        %v575 = vld [vmem:[#allocation7 + $0x44] sm:$0xf]
        %v576 = vld [vmem:[#allocation7 + $0x48] sm:$0xff]
        %v577 = vld [vmem:[#allocation7 + $0x50] sm:$0xf]
        %v578 = vld [vmem:[#allocation7 + $0x54] sm:$0xff]
        %v579 = vld [vmem:[#allocation7 + $0x5c] sm:$0xf]
        %v580 = vld [vmem:[#allocation7 + $0x60] sm:$0xff]
        %v581 = vld [vmem:[#allocation7 + $0x68] sm:$0xf]
        %v582 = vld [vmem:[#allocation7 + $0x6c] sm:$0xff]
        %v583 = vld [vmem:[#allocation7 + $0x74] sm:$0xf]
        %v584 = vld [vmem:[#allocation7 + $0x78] sm:$0xff]
        %v585 = vld [vmem:[#allocation7 + $0x80] sm:$0xf]
        %v586 = vld [vmem:[#allocation7 + $0x84] sm:$0xff]
        %v587 = vld [vmem:[#allocation7 + $0x8c] sm:$0xf]
        %v588 = vld [vmem:[#allocation7 + $0x90] sm:$0xff]
        %v589 = vld [vmem:[#allocation7 + $0x98] sm:$0xf]
        %v590 = vld [vmem:[#allocation7 + $0x9c] sm:$0xff]
        %v591 = vld [vmem:[#allocation7 + $0xa4] sm:$0xf]
        %v592 = vld [vmem:[#allocation7 + $0xa8] sm:$0xff]
        %v593 = vld [vmem:[#allocation7 + $0xb0] sm:$0xf]
        %v594 = vld [vmem:[#allocation7 + $0xb4] sm:$0xff]
        %v595 = vld [vmem:[#allocation7 + $0xbc] sm:$0xf]
        %v596 = vld [vmem:[#allocation7 + $0xc0] sm:$0xff]
        %v597 = vld [vmem:[#allocation7 + $0xc8] sm:$0xf]
        %v598 = vld [vmem:[#allocation7 + $0xcc] sm:$0xff]
        %v599 = vld [vmem:[#allocation7 + $0xd4] sm:$0xf]
        %v600 = vld [vmem:[#allocation7 + $0xd8] sm:$0xff]
        %v601 = vld [vmem:[#allocation7 + $0xe0] sm:$0xf]
        %v602 = vld [vmem:[#allocation7 + $0xe4] sm:$0xff]
        %v603 = vld [vmem:[#allocation7 + $0xec] sm:$0xf]
        %v604 = vld [vmem:[#allocation7 + $0xf0] sm:$0xff]
        %v605 = vld [vmem:[#allocation7 + $0xf8] sm:$0xf]
        %v606 = vld [vmem:[#allocation7 + $0xfc] sm:$0xff]
        %v607 = vld [vmem:[#allocation7 + $0x104] sm:$0xf]
        %v608 = vld [vmem:[#allocation7 + $0x108] sm:$0xff]
        %v609 = vld [vmem:[#allocation7 + $0x110] sm:$0xf]
        %v610 = vld [vmem:[#allocation7 + $0x114] sm:$0xff]
        %v611 = vld [vmem:[#allocation7 + $0x11c] sm:$0xf]
        %v612 = vld [vmem:[#allocation7 + $0x120] sm:$0xff]
        %v613 = vld [vmem:[#allocation7 + $0x128] sm:$0xf]
        %v614 = vld [vmem:[#allocation7 + $0x12c] sm:$0xff]
        %v615 = vld [vmem:[#allocation7 + $0x134] sm:$0xf]
        %v616 = vld [vmem:[#allocation7 + $0x138] sm:$0xff]
        %v617 = vld [vmem:[#allocation7 + $0x140] sm:$0xf]
        %v618 = vld [vmem:[#allocation7 + $0x144] sm:$0xff]
        %v619 = vld [vmem:[#allocation7 + $0x14c] sm:$0xf]
        %v620 = vld [vmem:[#allocation7 + $0x150] sm:$0xff]
        %v621 = vld [vmem:[#allocation7 + $0x158] sm:$0xf]
        %v622 = vld [vmem:[#allocation7 + $0x15c] sm:$0xff]
        %v623 = vld [vmem:[#allocation7 + $0x164] sm:$0xf]
        %v624 = vld [vmem:[#allocation7 + $0x168] sm:$0xff]
        %v625 = vld [vmem:[#allocation7 + $0x170] sm:$0xf]
        %v626 = vld [vmem:[#allocation7 + $0x174] sm:$0xff]
        %v627 = vld [vmem:[#allocation7 + $0x17c] sm:$0xf]
        %v628 = vld [vmem:[#allocation7 + $0x180] sm:$0xff]
        %v629 = vld [vmem:[#allocation7 + $0x188] sm:$0xf]
        %v630 = vld [vmem:[#allocation7 + $0x18c] sm:$0xff]
        %v631 = vld [vmem:[#allocation7 + $0x194] sm:$0xf]
        %v632 = vld [vmem:[#allocation7 + $0x198] sm:$0xff]
        %v633 = vld [vmem:[#allocation7 + $0x1a0] sm:$0xf]
        %v634 = vld [vmem:[#allocation7 + $0x1a4] sm:$0xff]
        %v635 = vld [vmem:[#allocation7 + $0x1ac] sm:$0xf]
        %v636 = vld [vmem:[#allocation7 + $0x1b0] sm:$0xff]
        %v637 = vld [vmem:[#allocation7 + $0x1b8] sm:$0xf]
        %v638 = vld [vmem:[#allocation7 + $0x1bc] sm:$0xff]
        %v639 = vld [vmem:[#allocation7 + $0x1c4] sm:$0xf]
        %v640 = vld [vmem:[#allocation7 + $0x1c8] sm:$0xff]
        %v641 = vld [vmem:[#allocation7 + $0x1d0] sm:$0xf]
        %v642 = vld [vmem:[#allocation7 + $0x1d4] sm:$0xff]
        %v643 = vld [vmem:[#allocation7 + $0x1dc] sm:$0xf]
        %v644 = vld [vmem:[#allocation7 + $0x1e0] sm:$0xff]
        %v645 = vld [vmem:[#allocation7 + $0x1e8] sm:$0xf]
        %v646 = vld [vmem:[#allocation7 + $0x1ec] sm:$0xff]
        %v647 = vld [vmem:[#allocation7 + $0x1f4] sm:$0xf]
        %v648 = vld [vmem:[#allocation7 + $0x1f8] sm:$0xff]
        %v649 = vld [vmem:[#allocation7 + $0x200] sm:$0xf]
        %v650 = vld [vmem:[#allocation7 + $0x204] sm:$0xff]
        %v651 = vld [vmem:[#allocation7 + $0x20c] sm:$0xf]
        %v652 = vld [vmem:[#allocation7 + $0x210] sm:$0xff]
        %v653 = vld [vmem:[#allocation7 + $0x218] sm:$0xf]
        %v654 = vld [vmem:[#allocation7 + $0x21c] sm:$0xff]
        %v655 = vld [vmem:[#allocation7 + $0x224] sm:$0xf]
        %v656 = vld [vmem:[#allocation7 + $0x228] sm:$0xff]
        %v657 = vld [vmem:[#allocation7 + $0x230] sm:$0xf]
        %v658 = vld [vmem:[#allocation7 + $0x234] sm:$0xff]
        %v659 = vld [vmem:[#allocation7 + $0x23c] sm:$0xf]
        %v660 = vld [vmem:[#allocation7 + $0x240] sm:$0xff]
        %v661 = vld [vmem:[#allocation7 + $0x248] sm:$0xf]
        %v662 = vld [vmem:[#allocation7 + $0x24c] sm:$0xff]
        %v663 = vld [vmem:[#allocation7 + $0x254] sm:$0xf]
        %v664 = vld [vmem:[#allocation7 + $0x258] sm:$0xff]
        %v665 = vld [vmem:[#allocation7 + $0x260] sm:$0xf]
        %v666 = vld [vmem:[#allocation7 + $0x264] sm:$0xff]
        %v667 = vld [vmem:[#allocation7 + $0x26c] sm:$0xf]
        %v668 = vld [vmem:[#allocation7 + $0x270] sm:$0xff]
        %v669 = vld [vmem:[#allocation7 + $0x278] sm:$0xf]
        %v670 = vld [vmem:[#allocation7 + $0x27c] sm:$0xff]
        %v671 = vld [vmem:[#allocation7 + $0x284] sm:$0xf]
        %v672 = vld [vmem:[#allocation7 + $0x288] sm:$0xff]
        %v673 = vld [vmem:[#allocation7 + $0x290] sm:$0xf]
        %v674 = vld [vmem:[#allocation7 + $0x294] sm:$0xff]
        %v675 = vld [vmem:[#allocation7 + $0x29c] sm:$0xf]
        %v676 = vld [vmem:[#allocation7 + $0x2a0] sm:$0xff]
        %v677 = vld [vmem:[#allocation7 + $0x2a8] sm:$0xf]
        %v678 = vld [vmem:[#allocation7 + $0x2ac] sm:$0xff]
        %v679 = vld [vmem:[#allocation7 + $0x2b4] sm:$0xf]
        %v680 = vld [vmem:[#allocation7 + $0x2b8] sm:$0xff]
        %v681 = vld [vmem:[#allocation7 + $0x2c0] sm:$0xf]
        %v682 = vld [vmem:[#allocation7 + $0x2c4] sm:$0xff]
        %v683 = vld [vmem:[#allocation7 + $0x2cc] sm:$0xf]
        %v684 = vld [vmem:[#allocation7 + $0x2d0] sm:$0xff]
        %v685 = vld [vmem:[#allocation7 + $0x2d8] sm:$0xf]
        %v686 = vld [vmem:[#allocation7 + $0x2dc] sm:$0xff]
        %v687 = vld [vmem:[#allocation7 + $0x2e4] sm:$0xf]
        %v688 = vld [vmem:[#allocation7 + $0x2e8] sm:$0xff]
        %v689 = vld [vmem:[#allocation7 + $0x2f0] sm:$0xf]
        %v690 = vld [vmem:[#allocation7 + $0x2f4] sm:$0xff]
        %v691 = vld [vmem:[#allocation7 + $0x2fc] sm:$0xf]
        %v692 = vld [vmem:[%s3] sm:$0x7]
        %v694 = vlaneseq
        %v695 = vshrl.u32 %v694, 7
        %v696 = vsub.s32 0, %v695
        %v697 = vrot.slane %v692, %v696
        %v698 = vlaneseq
        %v699 = vshrl.u32 %v698, 7
        %v700 = vsub.s32 1, %v699
        %v701 = vrot.slane %v692, %v700
        %v702 = vlaneseq
        %v703 = vshrl.u32 %v702, 7
        %v704 = vsub.s32 2, %v703
        %v705 = vrot.slane %v692, %v704
        %v717 = vunpack.c.l.b16 %v556
        %v718 = vunpack.c.h.b16 %v556
        %v719 = vunpack.c.l.b16 %v557
        %v720 = vunpack.c.h.b16 %v557
        %v721 = vunpack.c.l.b16 %v558
        %v722 = vunpack.c.h.b16 %v558
        %v723 = vunpack.c.l.b16 %v559
        %v724 = vunpack.c.h.b16 %v559
        %v725 = vunpack.c.l.b16 %v560
        %v726 = vunpack.c.h.b16 %v560
        %v727 = vunpack.c.l.b16 %v561
        %v728 = vunpack.c.h.b16 %v561
        %v729 = vunpack.c.l.b16 %v562
        %v730 = vunpack.c.h.b16 %v562
        %v731 = vunpack.c.l.b16 %v563
        %v732 = vunpack.c.h.b16 %v563
        %v733 = vpack.c.b16 %v721, %v717
        %v734 = vpack.c.b16 %v722, %v718
        %v735 = vpack.c.b16 %v723, %v719
        %v736 = vpack.c.b16 %v724, %v720
        %v737 = vpack.c.b16 %v729, %v725
        %v738 = vpack.c.b16 %v730, %v726
        %v739 = vpack.c.b16 %v731, %v727
        %v740 = vpack.c.b16 %v732, %v728
        %v877 = vunpack.c.l.b16 %v564
        %v878 = vunpack.c.h.b16 %v564
        %v879 = vunpack.c.l.b16 %v565
        %v880 = vunpack.c.l.b16 %v566
        %v881 = vunpack.c.h.b16 %v566
        %v882 = vunpack.c.l.b16 %v567
        %v883 = vunpack.c.l.b16 %v568
        %v884 = vunpack.c.h.b16 %v568
        %v885 = vunpack.c.l.b16 %v569
        %v886 = vunpack.c.l.b16 %v570
        %v887 = vunpack.c.h.b16 %v570
        %v888 = vunpack.c.l.b16 %v571
        %v889 = vunpack.c.l.b16 %v572
        %v890 = vunpack.c.h.b16 %v572
        %v891 = vunpack.c.l.b16 %v573
        %v892 = vunpack.c.l.b16 %v574
        %v893 = vunpack.c.h.b16 %v574
        %v894 = vunpack.c.l.b16 %v575
        %v895 = vunpack.c.l.b16 %v576
        %v896 = vunpack.c.h.b16 %v576
        %v897 = vunpack.c.l.b16 %v577
        %v898 = vunpack.c.l.b16 %v578
        %v899 = vunpack.c.h.b16 %v578
        %v900 = vunpack.c.l.b16 %v579
        %v901 = vunpack.c.l.b16 %v580
        %v902 = vunpack.c.h.b16 %v580
        %v903 = vunpack.c.l.b16 %v581
        %v904 = vunpack.c.l.b16 %v582
        %v905 = vunpack.c.h.b16 %v582
        %v906 = vunpack.c.l.b16 %v583
        %v907 = vunpack.c.l.b16 %v584
        %v908 = vunpack.c.h.b16 %v584
        %v909 = vunpack.c.l.b16 %v585
        %v910 = vunpack.c.l.b16 %v586
        %v911 = vunpack.c.h.b16 %v586
        %v912 = vunpack.c.l.b16 %v587
        %v913 = vunpack.c.l.b16 %v588
        %v914 = vunpack.c.h.b16 %v588
        %v915 = vunpack.c.l.b16 %v589
        %v916 = vunpack.c.l.b16 %v590
        %v917 = vunpack.c.h.b16 %v590
        %v918 = vunpack.c.l.b16 %v591
        %v919 = vunpack.c.l.b16 %v592
        %v920 = vunpack.c.h.b16 %v592
        %v921 = vunpack.c.l.b16 %v593
        %v922 = vunpack.c.l.b16 %v594
        %v923 = vunpack.c.h.b16 %v594
        %v924 = vunpack.c.l.b16 %v595
        %v925 = vunpack.c.l.b16 %v596
        %v926 = vunpack.c.h.b16 %v596
        %v927 = vunpack.c.l.b16 %v597
        %v928 = vunpack.c.l.b16 %v598
        %v929 = vunpack.c.h.b16 %v598
        %v930 = vunpack.c.l.b16 %v599
        %v931 = vunpack.c.l.b16 %v600
        %v932 = vunpack.c.h.b16 %v600
        %v933 = vunpack.c.l.b16 %v601
        %v934 = vunpack.c.l.b16 %v602
        %v935 = vunpack.c.h.b16 %v602
        %v936 = vunpack.c.l.b16 %v603
        %v937 = vunpack.c.l.b16 %v604
        %v938 = vunpack.c.h.b16 %v604
        %v939 = vunpack.c.l.b16 %v605
        %v940 = vunpack.c.l.b16 %v606
        %v941 = vunpack.c.h.b16 %v606
        %v942 = vunpack.c.l.b16 %v607
        %v943 = vunpack.c.l.b16 %v608
        %v944 = vunpack.c.h.b16 %v608
        %v945 = vunpack.c.l.b16 %v609
        %v946 = vunpack.c.l.b16 %v610
        %v947 = vunpack.c.h.b16 %v610
        %v948 = vunpack.c.l.b16 %v611
        %v949 = vunpack.c.l.b16 %v612
        %v950 = vunpack.c.h.b16 %v612
        %v951 = vunpack.c.l.b16 %v613
        %v952 = vunpack.c.l.b16 %v614
        %v953 = vunpack.c.h.b16 %v614
        %v954 = vunpack.c.l.b16 %v615
        %v955 = vunpack.c.l.b16 %v616
        %v956 = vunpack.c.h.b16 %v616
        %v957 = vunpack.c.l.b16 %v617
        %v958 = vunpack.c.l.b16 %v618
        %v959 = vunpack.c.h.b16 %v618
        %v960 = vunpack.c.l.b16 %v619
        %v961 = vunpack.c.l.b16 %v620
        %v962 = vunpack.c.h.b16 %v620
        %v963 = vunpack.c.l.b16 %v621
        %v964 = vunpack.c.l.b16 %v622
        %v965 = vunpack.c.h.b16 %v622
        %v966 = vunpack.c.l.b16 %v623
        %v967 = vunpack.c.l.b16 %v624
        %v968 = vunpack.c.h.b16 %v624
        %v969 = vunpack.c.l.b16 %v625
        %v970 = vunpack.c.l.b16 %v626
        %v971 = vunpack.c.h.b16 %v626
        %v972 = vunpack.c.l.b16 %v627
        %v973 = vunpack.c.l.b16 %v628
        %v974 = vunpack.c.h.b16 %v628
        %v975 = vunpack.c.l.b16 %v629
        %v976 = vunpack.c.l.b16 %v630
        %v977 = vunpack.c.h.b16 %v630
        %v978 = vunpack.c.l.b16 %v631
        %v979 = vunpack.c.l.b16 %v632
        %v980 = vunpack.c.h.b16 %v632
        %v981 = vunpack.c.l.b16 %v633
        %v982 = vunpack.c.l.b16 %v634
        %v983 = vunpack.c.h.b16 %v634
        %v984 = vunpack.c.l.b16 %v635
        %v985 = vunpack.c.l.b16 %v636
        %v986 = vunpack.c.h.b16 %v636
        %v987 = vunpack.c.l.b16 %v637
        %v988 = vunpack.c.l.b16 %v638
        %v989 = vunpack.c.h.b16 %v638
        %v990 = vunpack.c.l.b16 %v639
        %v991 = vunpack.c.l.b16 %v640
        %v992 = vunpack.c.h.b16 %v640
        %v993 = vunpack.c.l.b16 %v641
        %v994 = vunpack.c.l.b16 %v642
        %v995 = vunpack.c.h.b16 %v642
        %v996 = vunpack.c.l.b16 %v643
        %v997 = vunpack.c.l.b16 %v644
        %v998 = vunpack.c.h.b16 %v644
        %v999 = vunpack.c.l.b16 %v645
        %v1000 = vunpack.c.l.b16 %v646
        %v1001 = vunpack.c.h.b16 %v646
        %v1002 = vunpack.c.l.b16 %v647
        %v1003 = vunpack.c.l.b16 %v648
        %v1004 = vunpack.c.h.b16 %v648
        %v1005 = vunpack.c.l.b16 %v649
        %v1006 = vunpack.c.l.b16 %v650
        %v1007 = vunpack.c.h.b16 %v650
        %v1008 = vunpack.c.l.b16 %v651
        %v1009 = vunpack.c.l.b16 %v652
        %v1010 = vunpack.c.h.b16 %v652
        %v1011 = vunpack.c.l.b16 %v653
        %v1012 = vunpack.c.l.b16 %v654
        %v1013 = vunpack.c.h.b16 %v654
        %v1014 = vunpack.c.l.b16 %v655
        %v1015 = vunpack.c.l.b16 %v656
        %v1016 = vunpack.c.h.b16 %v656
        %v1017 = vunpack.c.l.b16 %v657
        %v1018 = vunpack.c.l.b16 %v658
        %v1019 = vunpack.c.h.b16 %v658
        %v1020 = vunpack.c.l.b16 %v659
        %v1021 = vunpack.c.l.b16 %v660
        %v1022 = vunpack.c.h.b16 %v660
        %v1023 = vunpack.c.l.b16 %v661
        %v1024 = vunpack.c.l.b16 %v662
        %v1025 = vunpack.c.h.b16 %v662
        %v1026 = vunpack.c.l.b16 %v663
        %v1027 = vunpack.c.l.b16 %v664
        %v1028 = vunpack.c.h.b16 %v664
        %v1029 = vunpack.c.l.b16 %v665
        %v1030 = vunpack.c.l.b16 %v666
        %v1031 = vunpack.c.h.b16 %v666
        %v1032 = vunpack.c.l.b16 %v667
        %v1033 = vunpack.c.l.b16 %v668
        %v1034 = vunpack.c.h.b16 %v668
        %v1035 = vunpack.c.l.b16 %v669
        %v1036 = vunpack.c.l.b16 %v670
        %v1037 = vunpack.c.h.b16 %v670
        %v1038 = vunpack.c.l.b16 %v671
        %v1039 = vunpack.c.l.b16 %v672
        %v1040 = vunpack.c.h.b16 %v672
        %v1041 = vunpack.c.l.b16 %v673
        %v1042 = vunpack.c.l.b16 %v674
        %v1043 = vunpack.c.h.b16 %v674
        %v1044 = vunpack.c.l.b16 %v675
        %v1045 = vunpack.c.l.b16 %v676
        %v1046 = vunpack.c.h.b16 %v676
        %v1047 = vunpack.c.l.b16 %v677
        %v1048 = vunpack.c.l.b16 %v678
        %v1049 = vunpack.c.h.b16 %v678
        %v1050 = vunpack.c.l.b16 %v679
        %v1051 = vunpack.c.l.b16 %v680
        %v1052 = vunpack.c.h.b16 %v680
        %v1053 = vunpack.c.l.b16 %v681
        %v1054 = vunpack.c.l.b16 %v682
        %v1055 = vunpack.c.h.b16 %v682
        %v1056 = vunpack.c.l.b16 %v683
        %v1057 = vunpack.c.l.b16 %v684
        %v1058 = vunpack.c.h.b16 %v684
        %v1059 = vunpack.c.l.b16 %v685
        %v1060 = vunpack.c.l.b16 %v686
        %v1061 = vunpack.c.h.b16 %v686
        %v1062 = vunpack.c.l.b16 %v687
        %v1063 = vunpack.c.l.b16 %v688
        %v1064 = vunpack.c.h.b16 %v688
        %v1065 = vunpack.c.l.b16 %v689
        %v1066 = vunpack.c.l.b16 %v690
        %v1067 = vunpack.c.h.b16 %v690
        %v1068 = vunpack.c.l.b16 %v691
        %v1069 = vpack.c.b16 %v880, %v877
        %v1070 = vpack.c.b16 %v881, %v878
        %v1071 = vpack.c.b16 %v882, %v879
        %v1072 = vpack.c.b16 %v886, %v883
        %v1073 = vpack.c.b16 %v887, %v884
        %v1074 = vpack.c.b16 %v888, %v885
        %v1075 = vpack.c.b16 %v892, %v889
        %v1076 = vpack.c.b16 %v893, %v890
        %v1077 = vpack.c.b16 %v894, %v891
        %v1078 = vpack.c.b16 %v898, %v895
        %v1079 = vpack.c.b16 %v899, %v896
        %v1080 = vpack.c.b16 %v900, %v897
        %v1081 = vpack.c.b16 %v904, %v901
        %v1082 = vpack.c.b16 %v905, %v902
        %v1083 = vpack.c.b16 %v906, %v903
        %v1084 = vpack.c.b16 %v910, %v907
        %v1085 = vpack.c.b16 %v911, %v908
        %v1086 = vpack.c.b16 %v912, %v909
        %v1087 = vpack.c.b16 %v916, %v913
        %v1088 = vpack.c.b16 %v917, %v914
        %v1089 = vpack.c.b16 %v918, %v915
        %v1090 = vpack.c.b16 %v922, %v919
        %v1091 = vpack.c.b16 %v923, %v920
        %v1092 = vpack.c.b16 %v924, %v921
        %v1093 = vpack.c.b16 %v928, %v925
        %v1094 = vpack.c.b16 %v929, %v926
        %v1095 = vpack.c.b16 %v930, %v927
        %v1096 = vpack.c.b16 %v934, %v931
        %v1097 = vpack.c.b16 %v935, %v932
        %v1098 = vpack.c.b16 %v936, %v933
        %v1099 = vpack.c.b16 %v940, %v937
        %v1100 = vpack.c.b16 %v941, %v938
        %v1101 = vpack.c.b16 %v942, %v939
        %v1102 = vpack.c.b16 %v946, %v943
        %v1103 = vpack.c.b16 %v947, %v944
        %v1104 = vpack.c.b16 %v948, %v945
        %v1105 = vpack.c.b16 %v952, %v949
        %v1106 = vpack.c.b16 %v953, %v950
        %v1107 = vpack.c.b16 %v954, %v951
        %v1108 = vpack.c.b16 %v958, %v955
        %v1109 = vpack.c.b16 %v959, %v956
        %v1110 = vpack.c.b16 %v960, %v957
        %v1111 = vpack.c.b16 %v964, %v961
        %v1112 = vpack.c.b16 %v965, %v962
        %v1113 = vpack.c.b16 %v966, %v963
        %v1114 = vpack.c.b16 %v970, %v967
        %v1115 = vpack.c.b16 %v971, %v968
        %v1116 = vpack.c.b16 %v972, %v969
        %v1117 = vpack.c.b16 %v976, %v973
        %v1118 = vpack.c.b16 %v977, %v974
        %v1119 = vpack.c.b16 %v978, %v975
        %v1120 = vpack.c.b16 %v982, %v979
        %v1121 = vpack.c.b16 %v983, %v980
        %v1122 = vpack.c.b16 %v984, %v981
        %v1123 = vpack.c.b16 %v988, %v985
        %v1124 = vpack.c.b16 %v989, %v986
        %v1125 = vpack.c.b16 %v990, %v987
        %v1126 = vpack.c.b16 %v994, %v991
        %v1127 = vpack.c.b16 %v995, %v992
        %v1128 = vpack.c.b16 %v996, %v993
        %v1129 = vpack.c.b16 %v1000, %v997
        %v1130 = vpack.c.b16 %v1001, %v998
        %v1131 = vpack.c.b16 %v1002, %v999
        %v1132 = vpack.c.b16 %v1006, %v1003
        %v1133 = vpack.c.b16 %v1007, %v1004
        %v1134 = vpack.c.b16 %v1008, %v1005
        %v1135 = vpack.c.b16 %v1012, %v1009
        %v1136 = vpack.c.b16 %v1013, %v1010
        %v1137 = vpack.c.b16 %v1014, %v1011
        %v1138 = vpack.c.b16 %v1018, %v1015
        %v1139 = vpack.c.b16 %v1019, %v1016
        %v1140 = vpack.c.b16 %v1020, %v1017
        %v1141 = vpack.c.b16 %v1024, %v1021
        %v1142 = vpack.c.b16 %v1025, %v1022
        %v1143 = vpack.c.b16 %v1026, %v1023
        %v1144 = vpack.c.b16 %v1030, %v1027
        %v1145 = vpack.c.b16 %v1031, %v1028
        %v1146 = vpack.c.b16 %v1032, %v1029
        %v1147 = vpack.c.b16 %v1036, %v1033
        %v1148 = vpack.c.b16 %v1037, %v1034
        %v1149 = vpack.c.b16 %v1038, %v1035
        %v1150 = vpack.c.b16 %v1042, %v1039
        %v1151 = vpack.c.b16 %v1043, %v1040
        %v1152 = vpack.c.b16 %v1044, %v1041
        %v1153 = vpack.c.b16 %v1048, %v1045
        %v1154 = vpack.c.b16 %v1049, %v1046
        %v1155 = vpack.c.b16 %v1050, %v1047
        %v1156 = vpack.c.b16 %v1054, %v1051
        %v1157 = vpack.c.b16 %v1055, %v1052
        %v1158 = vpack.c.b16 %v1056, %v1053
        %v1159 = vpack.c.b16 %v1060, %v1057
        %v1160 = vpack.c.b16 %v1061, %v1058
        %v1161 = vpack.c.b16 %v1062, %v1059
        %v1162 = vpack.c.b16 %v1066, %v1063
        %v1163 = vpack.c.b16 %v1067, %v1064
        %v1164 = vpack.c.b16 %v1068, %v1065
        %1261 = vmatprep.subr.bf16.mxu0 %v1070
        %1262 = vmatpush1.bf16.msra.mxu0 %v1069
        %1263 = vmatprep.subr.bf16.mxu0 %v1073
        %1264 = vmatpush1.bf16.msra.mxu0 %v1072
        %1265 = vmatprep.subr.bf16.mxu0 %v1076
        %1266 = vmatpush1.bf16.msra.mxu0 %v1075
        %1267 = vmatprep.subr.bf16.mxu0 %v1079
        %1268 = vmatpush1.bf16.msra.mxu0 %v1078
        %1269 = vmatprep.subr.bf16.mxu0 %v1082
        %1270 = vmatpush1.bf16.msra.mxu0 %v1081
        %1271 = vmatprep.subr.bf16.mxu0 %v1085
        %1272 = vmatpush1.bf16.msra.mxu0 %v1084
        %1273 = vmatprep.subr.bf16.mxu0 %v1088
        %1274 = vmatpush1.bf16.msra.mxu0 %v1087
        %1275 = vmatprep.subr.bf16.mxu0 %v1091
        %1276 = vmatpush1.bf16.msra.mxu0 %v1090
        %1277 = vmatprep.subr.bf16.mxu0 %v1094
        %1278 = vmatpush1.bf16.msra.mxu0 %v1093
        %1279 = vmatprep.subr.bf16.mxu0 %v1097
        %1280 = vmatpush1.bf16.msra.mxu0 %v1096
        %1281 = vmatprep.subr.bf16.mxu0 %v1100
        %1282 = vmatpush1.bf16.msra.mxu0 %v1099
        %1283 = vmatprep.subr.bf16.mxu0 %v1103
        %1284 = vmatpush1.bf16.msra.mxu0 %v1102
        %1285 = vmatprep.subr.bf16.mxu0 %v1106
        %1286 = vmatpush1.bf16.msra.mxu0 %v1105
        %1287 = vmatprep.subr.bf16.mxu0 %v1109
        %1288 = vmatpush1.bf16.msra.mxu0 %v1108
        %1289 = vmatprep.subr.bf16.mxu0 %v1112
        %1290 = vmatpush1.bf16.msra.mxu0 %v1111
        %1291 = vmatprep.subr.bf16.mxu0 %v1115
        %1292 = vmatpush1.bf16.msra.mxu0 %v1114
        %1293 = vmatprep.mubr.bf16.mxu0 %v734
        %1294 = vmatmul.mubr.bf16.gmra.mrb[0].mxu0 %v733
        %v1295 = vpop.f32.mrb[0].mxu0
        %v1296 = vadd.f32 %v697, %v1295
        %v1297 = vpop.f32.mrb[0].mxu0
        %v1298 = vadd.f32 %v701, %v1297
        %v1299 = vpop.f32.mrb[0].mxu0
        %v1300 = vadd.f32 %v697, %v1299
        %v1301 = vpop.f32.mrb[0].mxu0
        %v1302 = vadd.f32 %v701, %v1301
        %1303 = vmatprep.mubr.bf16.mxu0 %v738
        %1304 = vmatmul.mubr.bf16.gmra.mrb[0].mxu0 %v737
        %v1305 = vpop.f32.mrb[0].mxu0
        %v1306 = vadd.f32 %v697, %v1305
        %v1307 = vpop.f32.mrb[0].mxu0
        %v1308 = vadd.f32 %v701, %v1307
        %v1309 = vpop.f32.mrb[0].mxu0
        %v1310 = vadd.f32 %v697, %v1309
        %v1311 = vpop.f32.mrb[0].mxu0
        %v1312 = vadd.f32 %v701, %v1311
        %1313 = vdwg.mxu0
        %1314 = vmatprep.subr.bf16.mxu0 %v1118
        %1315 = vmatpush1.bf16.msra.mxu0 %v1117
        %1316 = vmatprep.subr.bf16.mxu0 %v1121
        %1317 = vmatpush1.bf16.msra.mxu0 %v1120
        %1318 = vmatprep.subr.bf16.mxu0 %v1124
        %1319 = vmatpush1.bf16.msra.mxu0 %v1123
        %1320 = vmatprep.subr.bf16.mxu0 %v1127
        %1321 = vmatpush1.bf16.msra.mxu0 %v1126
        %1322 = vmatprep.subr.bf16.mxu0 %v1130
        %1323 = vmatpush1.bf16.msra.mxu0 %v1129
        %1324 = vmatprep.subr.bf16.mxu0 %v1133
        %1325 = vmatpush1.bf16.msra.mxu0 %v1132
        %1326 = vmatprep.subr.bf16.mxu0 %v1136
        %1327 = vmatpush1.bf16.msra.mxu0 %v1135
        %1328 = vmatprep.subr.bf16.mxu0 %v1139
        %1329 = vmatpush1.bf16.msra.mxu0 %v1138
        %1330 = vmatprep.subr.bf16.mxu0 %v1142
        %1331 = vmatpush1.bf16.msra.mxu0 %v1141
        %1332 = vmatprep.subr.bf16.mxu0 %v1145
        %1333 = vmatpush1.bf16.msra.mxu0 %v1144
        %1334 = vmatprep.subr.bf16.mxu0 %v1148
        %1335 = vmatpush1.bf16.msra.mxu0 %v1147
        %1336 = vmatprep.subr.bf16.mxu0 %v1151
        %1337 = vmatpush1.bf16.msra.mxu0 %v1150
        %1338 = vmatprep.subr.bf16.mxu0 %v1154
        %1339 = vmatpush1.bf16.msra.mxu0 %v1153
        %1340 = vmatprep.subr.bf16.mxu0 %v1157
        %1341 = vmatpush1.bf16.msra.mxu0 %v1156
        %1342 = vmatprep.subr.bf16.mxu0 %v1160
        %1343 = vmatpush1.bf16.msra.mxu0 %v1159
        %1344 = vmatprep.subr.bf16.mxu0 %v1163
        %1345 = vmatpush1.bf16.msra.mxu0 %v1162
        %1346 = vmatprep.mubr.bf16.mxu0 %v736
        %1347 = vmatmul.mubr.bf16.gmra.mrb[0].mxu0 %v735
        %v1348 = vpop.f32.mrb[0].mxu0
        %v1349 = vadd.f32 %v1296, %v1348
        %v1350 = vpop.f32.mrb[0].mxu0
        %v1351 = vadd.f32 %v1298, %v1350
        %v1352 = vpop.f32.mrb[0].mxu0
        %v1353 = vadd.f32 %v1300, %v1352
        %v1354 = vpop.f32.mrb[0].mxu0
        %v1355 = vadd.f32 %v1302, %v1354
        %1356 = vmatprep.mubr.bf16.mxu0 %v740
        %1357 = vmatmul.mubr.bf16.gmra.mrb[0].mxu0 %v739
        %v1358 = vpop.f32.mrb[0].mxu0
        %v1359 = vadd.f32 %v1306, %v1358
        %v1360 = vpop.f32.mrb[0].mxu0
        %v1361 = vadd.f32 %v1308, %v1360
        %v1362 = vpop.f32.mrb[0].mxu0
        %v1363 = vadd.f32 %v1310, %v1362
        %v1364 = vpop.f32.mrb[0].mxu0
        %v1365 = vadd.f32 %v1312, %v1364
        %1366 = vdwg.mxu0
        %1367 = vmatprep.subr.bf16.mxu0 0
        %1368 = vmatpush1.bf16.msra.mxu0 %v1071
        %1369 = vmatprep.subr.bf16.mxu0 0
        %1370 = vmatpush1.bf16.msra.mxu0 %v1074
        %1371 = vmatprep.subr.bf16.mxu0 0
        %1372 = vmatpush1.bf16.msra.mxu0 %v1077
        %1373 = vmatprep.subr.bf16.mxu0 0
        %1374 = vmatpush1.bf16.msra.mxu0 %v1080
        %1375 = vmatprep.subr.bf16.mxu0 0
        %1376 = vmatpush1.bf16.msra.mxu0 %v1083
        %1377 = vmatprep.subr.bf16.mxu0 0
        %1378 = vmatpush1.bf16.msra.mxu0 %v1086
        %1379 = vmatprep.subr.bf16.mxu0 0
        %1380 = vmatpush1.bf16.msra.mxu0 %v1089
        %1381 = vmatprep.subr.bf16.mxu0 0
        %1382 = vmatpush1.bf16.msra.mxu0 %v1092
        %1383 = vmatprep.subr.bf16.mxu0 0
        %1384 = vmatpush1.bf16.msra.mxu0 %v1095
        %1385 = vmatprep.subr.bf16.mxu0 0
        %1386 = vmatpush1.bf16.msra.mxu0 %v1098
        %1387 = vmatprep.subr.bf16.mxu0 0
        %1388 = vmatpush1.bf16.msra.mxu0 %v1101
        %1389 = vmatprep.subr.bf16.mxu0 0
        %1390 = vmatpush1.bf16.msra.mxu0 %v1104
        %1391 = vmatprep.subr.bf16.mxu0 0
        %1392 = vmatpush1.bf16.msra.mxu0 %v1107
        %1393 = vmatprep.subr.bf16.mxu0 0
        %1394 = vmatpush1.bf16.msra.mxu0 %v1110
        %1395 = vmatprep.subr.bf16.mxu0 0
        %1396 = vmatpush1.bf16.msra.mxu0 %v1113
        %1397 = vmatprep.subr.bf16.mxu0 0
        %1398 = vmatpush1.bf16.msra.mxu0 %v1116
        %1399 = vmatprep.mubr.bf16.mxu0 %v734
        %1400 = vmatmul.mubr.bf16.gmra.mrb[0].mxu0 %v733
        %v1401 = vpop.f32.mrb[0].mxu0
        %v1402 = vadd.f32 %v705, %v1401
        %v1403 = vpop.f32.mrb[0].mxu0
        %v1404 = vpop.f32.mrb[0].mxu0
        %v1405 = vadd.f32 %v705, %v1404
        %v1406 = vpop.f32.mrb[0].mxu0
        %1407 = vmatprep.mubr.bf16.mxu0 %v738
        %1408 = vmatmul.mubr.bf16.gmra.mrb[0].mxu0 %v737
        %v1409 = vpop.f32.mrb[0].mxu0
        %v1410 = vadd.f32 %v705, %v1409
        %v1411 = vpop.f32.mrb[0].mxu0
        %v1412 = vpop.f32.mrb[0].mxu0
        %v1413 = vadd.f32 %v705, %v1412
        %v1414 = vpop.f32.mrb[0].mxu0
        %1415 = vdwg.mxu0
        %1416 = vmatprep.subr.bf16.mxu0 0
        %1417 = vmatpush1.bf16.msra.mxu0 %v1119
        %1418 = vmatprep.subr.bf16.mxu0 0
        %1419 = vmatpush1.bf16.msra.mxu0 %v1122
        %1420 = vmatprep.subr.bf16.mxu0 0
        %1421 = vmatpush1.bf16.msra.mxu0 %v1125
        %1422 = vmatprep.subr.bf16.mxu0 0
        %1423 = vmatpush1.bf16.msra.mxu0 %v1128
        %1424 = vmatprep.subr.bf16.mxu0 0
        %1425 = vmatpush1.bf16.msra.mxu0 %v1131
        %1426 = vmatprep.subr.bf16.mxu0 0
        %1427 = vmatpush1.bf16.msra.mxu0 %v1134
        %1428 = vmatprep.subr.bf16.mxu0 0
        %1429 = vmatpush1.bf16.msra.mxu0 %v1137
        %1430 = vmatprep.subr.bf16.mxu0 0
        %1431 = vmatpush1.bf16.msra.mxu0 %v1140
        %1432 = vmatprep.subr.bf16.mxu0 0
        %1433 = vmatpush1.bf16.msra.mxu0 %v1143
        %1434 = vmatprep.subr.bf16.mxu0 0
        %1435 = vmatpush1.bf16.msra.mxu0 %v1146
        %1436 = vmatprep.subr.bf16.mxu0 0
        %1437 = vmatpush1.bf16.msra.mxu0 %v1149
        %1438 = vmatprep.subr.bf16.mxu0 0
        %1439 = vmatpush1.bf16.msra.mxu0 %v1152
        %1440 = vmatprep.subr.bf16.mxu0 0
        %1441 = vmatpush1.bf16.msra.mxu0 %v1155
        %1442 = vmatprep.subr.bf16.mxu0 0
        %1443 = vmatpush1.bf16.msra.mxu0 %v1158
        %1444 = vmatprep.subr.bf16.mxu0 0
        %1445 = vmatpush1.bf16.msra.mxu0 %v1161
        %1446 = vmatprep.subr.bf16.mxu0 0
        %1447 = vmatpush1.bf16.msra.mxu0 %v1164
        %1448 = vmatprep.mubr.bf16.mxu0 %v736
        %1449 = vmatmul.mubr.bf16.gmra.mrb[0].mxu0 %v735
        %v1450 = vpop.f32.mrb[0].mxu0
        %v1451 = vadd.f32 %v1402, %v1450
        %v1452 = vpop.f32.mrb[0].mxu0
        %v1453 = vpop.f32.mrb[0].mxu0
        %v1454 = vadd.f32 %v1405, %v1453
        %v1455 = vpop.f32.mrb[0].mxu0
        %1456 = vmatprep.mubr.bf16.mxu0 %v740
        %1457 = vmatmul.mubr.bf16.gmra.mrb[0].mxu0 %v739
        %v1458 = vpop.f32.mrb[0].mxu0
        %v1459 = vadd.f32 %v1410, %v1458
        %v1460 = vpop.f32.mrb[0].mxu0
        %v1461 = vpop.f32.mrb[0].mxu0
        %v1462 = vadd.f32 %v1413, %v1461
        %v1463 = vpop.f32.mrb[0].mxu0
        %1464 = vdwg.mxu0
        %v1465 = vmax.f32 %v1349, 0.0
        %v1466 = vmax.f32 %v1351, 0.0
        %v1467 = vmax.f32 %v1451, 0.0
        %v1468 = vmax.f32 %v1353, 0.0
        %v1469 = vmax.f32 %v1355, 0.0
        %v1470 = vmax.f32 %v1454, 0.0
        %v1471 = vmax.f32 %v1359, 0.0
        %v1472 = vmax.f32 %v1361, 0.0
        %v1473 = vmax.f32 %v1459, 0.0
        %v1474 = vmax.f32 %v1363, 0.0
        %v1475 = vmax.f32 %v1365, 0.0
        %v1476 = vmax.f32 %v1462, 0.0
        %v1477 = vpack.c.bf16 %v1468, %v1465
        %v1478 = vpack.c.bf16 %v1469, %v1466
        %v1479 = vpack.c.bf16 %v1470, %v1467
        %v1480 = vpack.c.bf16 %v1474, %v1471
        %v1481 = vpack.c.bf16 %v1475, %v1472
        %v1482 = vpack.c.bf16 %v1476, %v1473
        %v1483 = vld [vmem:[#allocation8] sm:$0xff]
        %v1484 = vld [vmem:[#allocation8 + $0x8] sm:$0xff]
        %v1485 = vld [vmem:[#allocation8 + $0x10] sm:$0xff]
        %v1486 = vld [vmem:[#allocation8 + $0x18] sm:$0xff]
        %v1487 = vld [vmem:[#allocation8 + $0x20] sm:$0xff]
        %v1488 = vld [vmem:[#allocation8 + $0x28] sm:$0xff]
        %v1489 = vld [vmem:[#allocation8 + $0x30] sm:$0xff]
        %v1490 = vld [vmem:[#allocation8 + $0x38] sm:$0xff]
        %v1491 = vld [vmem:[#allocation8 + $0x40] sm:$0xff]
        %v1492 = vld [vmem:[#allocation8 + $0x48] sm:$0xff]
        %v1493 = vld [vmem:[#allocation8 + $0x50] sm:$0xff]
        %v1494 = vld [vmem:[#allocation8 + $0x58] sm:$0xff]
        %v1495 = vld [vmem:[#allocation8 + $0x60] sm:$0xff]
        %v1496 = vld [vmem:[#allocation8 + $0x68] sm:$0xff]
        %v1497 = vld [vmem:[#allocation8 + $0x70] sm:$0xff]
        %v1498 = vld [vmem:[#allocation8 + $0x78] sm:$0xff]
        %v1499 = vld [vmem:[#allocation8 + $0x80] sm:$0xff]
        %v1500 = vld [vmem:[#allocation8 + $0x88] sm:$0xff]
        %v1501 = vld [vmem:[#allocation8 + $0x90] sm:$0xff]
        %v1502 = vld [vmem:[#allocation8 + $0x98] sm:$0xff]
        %v1503 = vld [vmem:[#allocation8 + $0xa0] sm:$0xff]
        %v1504 = vld [vmem:[#allocation8 + $0xa8] sm:$0xff]
        %v1505 = vld [vmem:[#allocation8 + $0xb0] sm:$0xff]
        %v1506 = vld [vmem:[#allocation8 + $0xb8] sm:$0xff]
        %v1507 = vld [vmem:[#allocation8 + $0xc0] sm:$0xff]
        %v1508 = vld [vmem:[#allocation8 + $0xc8] sm:$0xff]
        %v1509 = vld [vmem:[#allocation8 + $0xd0] sm:$0xff]
        %v1510 = vld [vmem:[#allocation8 + $0xd8] sm:$0xff]
        %v1511 = vld [vmem:[#allocation8 + $0xe0] sm:$0xff]
        %v1512 = vld [vmem:[#allocation8 + $0xe8] sm:$0xff]
        %v1513 = vld [vmem:[#allocation8 + $0xf0] sm:$0xff]
        %v1514 = vld [vmem:[#allocation8 + $0xf8] sm:$0xff]
        %v1515 = vld [vmem:[#allocation8 + $0x100] sm:$0xff]
        %v1516 = vld [vmem:[#allocation8 + $0x108] sm:$0xff]
        %v1517 = vld [vmem:[#allocation8 + $0x110] sm:$0xff]
        %v1518 = vld [vmem:[#allocation8 + $0x118] sm:$0xff]
        %v1519 = vld [vmem:[#allocation8 + $0x120] sm:$0xff]
        %v1520 = vld [vmem:[#allocation8 + $0x128] sm:$0xff]
        %v1521 = vld [vmem:[#allocation8 + $0x130] sm:$0xff]
        %v1522 = vld [vmem:[#allocation8 + $0x138] sm:$0xff]
        %v1523 = vld [vmem:[#allocation8 + $0x140] sm:$0xff]
        %v1524 = vld [vmem:[#allocation8 + $0x148] sm:$0xff]
        %v1525 = vld [vmem:[#allocation8 + $0x150] sm:$0xff]
        %v1526 = vld [vmem:[#allocation8 + $0x158] sm:$0xff]
        %v1527 = vld [vmem:[#allocation8 + $0x160] sm:$0xff]
        %v1528 = vld [vmem:[#allocation8 + $0x168] sm:$0xff]
        %v1529 = vld [vmem:[#allocation8 + $0x170] sm:$0xff]
        %v1530 = vld [vmem:[#allocation8 + $0x178] sm:$0xff]
        %v1531 = vld [vmem:[#allocation8 + $0x180] sm:$0xff]
        %v1532 = vld [vmem:[#allocation8 + $0x188] sm:$0xff]
        %v1533 = vld [vmem:[#allocation8 + $0x190] sm:$0xff]
        %v1534 = vld [vmem:[#allocation8 + $0x198] sm:$0xff]
        %v1535 = vld [vmem:[#allocation8 + $0x1a0] sm:$0xff]
        %v1536 = vld [vmem:[#allocation8 + $0x1a8] sm:$0xff]
        %v1537 = vld [vmem:[#allocation8 + $0x1b0] sm:$0xff]
        %v1538 = vld [vmem:[#allocation8 + $0x1b8] sm:$0xff]
        %v1539 = vld [vmem:[#allocation8 + $0x1c0] sm:$0xff]
        %v1540 = vld [vmem:[#allocation8 + $0x1c8] sm:$0xff]
        %v1541 = vld [vmem:[#allocation8 + $0x1d0] sm:$0xff]
        %v1542 = vld [vmem:[#allocation8 + $0x1d8] sm:$0xff]
        %v1543 = vld [vmem:[#allocation8 + $0x1e0] sm:$0xff]
        %v1544 = vld [vmem:[#allocation8 + $0x1e8] sm:$0xff]
        %v1545 = vld [vmem:[#allocation8 + $0x1f0] sm:$0xff]
        %v1546 = vld [vmem:[#allocation8 + $0x1f8] sm:$0xff]
        %v1547 = vld [vmem:[#allocation8 + $0x200] sm:$0xff]
        %v1548 = vld [vmem:[#allocation8 + $0x208] sm:$0xff]
        %v1549 = vld [vmem:[#allocation8 + $0x210] sm:$0xff]
        %v1550 = vld [vmem:[#allocation8 + $0x218] sm:$0xff]
        %v1551 = vld [vmem:[#allocation8 + $0x220] sm:$0xff]
        %v1552 = vld [vmem:[#allocation8 + $0x228] sm:$0xff]
        %v1553 = vld [vmem:[#allocation8 + $0x230] sm:$0xff]
        %v1554 = vld [vmem:[#allocation8 + $0x238] sm:$0xff]
        %v1555 = vld [vmem:[#allocation8 + $0x240] sm:$0xff]
        %v1556 = vld [vmem:[#allocation8 + $0x248] sm:$0xff]
        %v1557 = vld [vmem:[#allocation8 + $0x250] sm:$0xff]
        %v1558 = vld [vmem:[#allocation8 + $0x258] sm:$0xff]
        %v1559 = vld [vmem:[#allocation8 + $0x260] sm:$0xff]
        %v1560 = vld [vmem:[#allocation8 + $0x268] sm:$0xff]
        %v1561 = vld [vmem:[#allocation8 + $0x270] sm:$0xff]
        %v1562 = vld [vmem:[#allocation8 + $0x278] sm:$0xff]
        %v1563 = vld [vmem:[#allocation8 + $0x280] sm:$0xff]
        %v1564 = vld [vmem:[#allocation8 + $0x288] sm:$0xff]
        %v1565 = vld [vmem:[#allocation8 + $0x290] sm:$0xff]
        %v1566 = vld [vmem:[#allocation8 + $0x298] sm:$0xff]
        %v1567 = vld [vmem:[#allocation8 + $0x2a0] sm:$0xff]
        %v1568 = vld [vmem:[#allocation8 + $0x2a8] sm:$0xff]
        %v1569 = vld [vmem:[#allocation8 + $0x2b0] sm:$0xff]
        %v1570 = vld [vmem:[#allocation8 + $0x2b8] sm:$0xff]
        %v1571 = vld [vmem:[#allocation8 + $0x2c0] sm:$0xff]
        %v1572 = vld [vmem:[#allocation8 + $0x2c8] sm:$0xff]
        %v1573 = vld [vmem:[#allocation8 + $0x2d0] sm:$0xff]
        %v1574 = vld [vmem:[#allocation8 + $0x2d8] sm:$0xff]
        %v1575 = vld [vmem:[#allocation8 + $0x2e0] sm:$0xff]
        %v1576 = vld [vmem:[#allocation8 + $0x2e8] sm:$0xff]
        %v1577 = vld [vmem:[#allocation8 + $0x2f0] sm:$0xff]
        %v1578 = vld [vmem:[#allocation8 + $0x2f8] sm:$0xff]
        %v1579 = vld [vmem:[%s5] sm:$0xf]
        %v1581 = vlaneseq
        %v1582 = vshrl.u32 %v1581, 7
        %v1583 = vsub.s32 0, %v1582
        %v1584 = vrot.slane %v1579, %v1583
        %v1585 = vlaneseq
        %v1586 = vshrl.u32 %v1585, 7
        %v1587 = vsub.s32 1, %v1586
        %v1588 = vrot.slane %v1579, %v1587
        %v1589 = vlaneseq
        %v1590 = vshrl.u32 %v1589, 7
        %v1591 = vsub.s32 2, %v1590
        %v1592 = vrot.slane %v1579, %v1591
        %v1593 = vlaneseq
        %v1594 = vshrl.u32 %v1593, 7
        %v1595 = vsub.s32 3, %v1594
        %v1596 = vrot.slane %v1579, %v1595
        %v1697 = vunpack.c.l.b16 %v1483
        %v1698 = vunpack.c.h.b16 %v1483
        %v1699 = vunpack.c.l.b16 %v1484
        %v1700 = vunpack.c.h.b16 %v1484
        %v1701 = vunpack.c.l.b16 %v1485
        %v1702 = vunpack.c.h.b16 %v1485
        %v1703 = vunpack.c.l.b16 %v1486
        %v1704 = vunpack.c.h.b16 %v1486
        %v1705 = vunpack.c.l.b16 %v1487
        %v1706 = vunpack.c.h.b16 %v1487
        %v1707 = vunpack.c.l.b16 %v1488
        %v1708 = vunpack.c.h.b16 %v1488
        %v1709 = vunpack.c.l.b16 %v1489
        %v1710 = vunpack.c.h.b16 %v1489
        %v1711 = vunpack.c.l.b16 %v1490
        %v1712 = vunpack.c.h.b16 %v1490
        %v1713 = vunpack.c.l.b16 %v1491
        %v1714 = vunpack.c.h.b16 %v1491
        %v1715 = vunpack.c.l.b16 %v1492
        %v1716 = vunpack.c.h.b16 %v1492
        %v1717 = vunpack.c.l.b16 %v1493
        %v1718 = vunpack.c.h.b16 %v1493
        %v1719 = vunpack.c.l.b16 %v1494
        %v1720 = vunpack.c.h.b16 %v1494
        %v1721 = vunpack.c.l.b16 %v1495
        %v1722 = vunpack.c.h.b16 %v1495
        %v1723 = vunpack.c.l.b16 %v1496
        %v1724 = vunpack.c.h.b16 %v1496
        %v1725 = vunpack.c.l.b16 %v1497
        %v1726 = vunpack.c.h.b16 %v1497
        %v1727 = vunpack.c.l.b16 %v1498
        %v1728 = vunpack.c.h.b16 %v1498
        %v1729 = vunpack.c.l.b16 %v1499
        %v1730 = vunpack.c.h.b16 %v1499
        %v1731 = vunpack.c.l.b16 %v1500
        %v1732 = vunpack.c.h.b16 %v1500
        %v1733 = vunpack.c.l.b16 %v1501
        %v1734 = vunpack.c.h.b16 %v1501
        %v1735 = vunpack.c.l.b16 %v1502
        %v1736 = vunpack.c.h.b16 %v1502
        %v1737 = vunpack.c.l.b16 %v1503
        %v1738 = vunpack.c.h.b16 %v1503
        %v1739 = vunpack.c.l.b16 %v1504
        %v1740 = vunpack.c.h.b16 %v1504
        %v1741 = vunpack.c.l.b16 %v1505
        %v1742 = vunpack.c.h.b16 %v1505
        %v1743 = vunpack.c.l.b16 %v1506
        %v1744 = vunpack.c.h.b16 %v1506
        %v1745 = vunpack.c.l.b16 %v1507
        %v1746 = vunpack.c.h.b16 %v1507
        %v1747 = vunpack.c.l.b16 %v1508
        %v1748 = vunpack.c.h.b16 %v1508
        %v1749 = vunpack.c.l.b16 %v1509
        %v1750 = vunpack.c.h.b16 %v1509
        %v1751 = vunpack.c.l.b16 %v1510
        %v1752 = vunpack.c.h.b16 %v1510
        %v1753 = vunpack.c.l.b16 %v1511
        %v1754 = vunpack.c.h.b16 %v1511
        %v1755 = vunpack.c.l.b16 %v1512
        %v1756 = vunpack.c.h.b16 %v1512
        %v1757 = vunpack.c.l.b16 %v1513
        %v1758 = vunpack.c.h.b16 %v1513
        %v1759 = vunpack.c.l.b16 %v1514
        %v1760 = vunpack.c.h.b16 %v1514
        %v1761 = vunpack.c.l.b16 %v1515
        %v1762 = vunpack.c.h.b16 %v1515
        %v1763 = vunpack.c.l.b16 %v1516
        %v1764 = vunpack.c.h.b16 %v1516
        %v1765 = vunpack.c.l.b16 %v1517
        %v1766 = vunpack.c.h.b16 %v1517
        %v1767 = vunpack.c.l.b16 %v1518
        %v1768 = vunpack.c.h.b16 %v1518
        %v1769 = vunpack.c.l.b16 %v1519
        %v1770 = vunpack.c.h.b16 %v1519
        %v1771 = vunpack.c.l.b16 %v1520
        %v1772 = vunpack.c.h.b16 %v1520
        %v1773 = vunpack.c.l.b16 %v1521
        %v1774 = vunpack.c.h.b16 %v1521
        %v1775 = vunpack.c.l.b16 %v1522
        %v1776 = vunpack.c.h.b16 %v1522
        %v1777 = vunpack.c.l.b16 %v1523
        %v1778 = vunpack.c.h.b16 %v1523
        %v1779 = vunpack.c.l.b16 %v1524
        %v1780 = vunpack.c.h.b16 %v1524
        %v1781 = vunpack.c.l.b16 %v1525
        %v1782 = vunpack.c.h.b16 %v1525
        %v1783 = vunpack.c.l.b16 %v1526
        %v1784 = vunpack.c.h.b16 %v1526
        %v1785 = vunpack.c.l.b16 %v1527
        %v1786 = vunpack.c.h.b16 %v1527
        %v1787 = vunpack.c.l.b16 %v1528
        %v1788 = vunpack.c.h.b16 %v1528
        %v1789 = vunpack.c.l.b16 %v1529
        %v1790 = vunpack.c.h.b16 %v1529
        %v1791 = vunpack.c.l.b16 %v1530
        %v1792 = vunpack.c.h.b16 %v1530
        %v1793 = vunpack.c.l.b16 %v1531
        %v1794 = vunpack.c.h.b16 %v1531
        %v1795 = vunpack.c.l.b16 %v1532
        %v1796 = vunpack.c.h.b16 %v1532
        %v1797 = vunpack.c.l.b16 %v1533
        %v1798 = vunpack.c.h.b16 %v1533
        %v1799 = vunpack.c.l.b16 %v1534
        %v1800 = vunpack.c.h.b16 %v1534
        %v1801 = vunpack.c.l.b16 %v1535
        %v1802 = vunpack.c.h.b16 %v1535
        %v1803 = vunpack.c.l.b16 %v1536
        %v1804 = vunpack.c.h.b16 %v1536
        %v1805 = vunpack.c.l.b16 %v1537
        %v1806 = vunpack.c.h.b16 %v1537
        %v1807 = vunpack.c.l.b16 %v1538
        %v1808 = vunpack.c.h.b16 %v1538
        %v1809 = vunpack.c.l.b16 %v1539
        %v1810 = vunpack.c.h.b16 %v1539
        %v1811 = vunpack.c.l.b16 %v1540
        %v1812 = vunpack.c.h.b16 %v1540
        %v1813 = vunpack.c.l.b16 %v1541
        %v1814 = vunpack.c.h.b16 %v1541
        %v1815 = vunpack.c.l.b16 %v1542
        %v1816 = vunpack.c.h.b16 %v1542
        %v1817 = vunpack.c.l.b16 %v1543
        %v1818 = vunpack.c.h.b16 %v1543
        %v1819 = vunpack.c.l.b16 %v1544
        %v1820 = vunpack.c.h.b16 %v1544
        %v1821 = vunpack.c.l.b16 %v1545
        %v1822 = vunpack.c.h.b16 %v1545
        %v1823 = vunpack.c.l.b16 %v1546
        %v1824 = vunpack.c.h.b16 %v1546
        %v1825 = vunpack.c.l.b16 %v1547
        %v1826 = vunpack.c.h.b16 %v1547
        %v1827 = vunpack.c.l.b16 %v1548
        %v1828 = vunpack.c.h.b16 %v1548
        %v1829 = vunpack.c.l.b16 %v1549
        %v1830 = vunpack.c.h.b16 %v1549
        %v1831 = vunpack.c.l.b16 %v1550
        %v1832 = vunpack.c.h.b16 %v1550
        %v1833 = vunpack.c.l.b16 %v1551
        %v1834 = vunpack.c.h.b16 %v1551
        %v1835 = vunpack.c.l.b16 %v1552
        %v1836 = vunpack.c.h.b16 %v1552
        %v1837 = vunpack.c.l.b16 %v1553
        %v1838 = vunpack.c.h.b16 %v1553
        %v1839 = vunpack.c.l.b16 %v1554
        %v1840 = vunpack.c.h.b16 %v1554
        %v1841 = vunpack.c.l.b16 %v1555
        %v1842 = vunpack.c.h.b16 %v1555
        %v1843 = vunpack.c.l.b16 %v1556
        %v1844 = vunpack.c.h.b16 %v1556
        %v1845 = vunpack.c.l.b16 %v1557
        %v1846 = vunpack.c.h.b16 %v1557
        %v1847 = vunpack.c.l.b16 %v1558
        %v1848 = vunpack.c.h.b16 %v1558
        %v1849 = vunpack.c.l.b16 %v1559
        %v1850 = vunpack.c.h.b16 %v1559
        %v1851 = vunpack.c.l.b16 %v1560
        %v1852 = vunpack.c.h.b16 %v1560
        %v1853 = vunpack.c.l.b16 %v1561
        %v1854 = vunpack.c.h.b16 %v1561
        %v1855 = vunpack.c.l.b16 %v1562
        %v1856 = vunpack.c.h.b16 %v1562
        %v1857 = vunpack.c.l.b16 %v1563
        %v1858 = vunpack.c.h.b16 %v1563
        %v1859 = vunpack.c.l.b16 %v1564
        %v1860 = vunpack.c.h.b16 %v1564
        %v1861 = vunpack.c.l.b16 %v1565
        %v1862 = vunpack.c.h.b16 %v1565
        %v1863 = vunpack.c.l.b16 %v1566
        %v1864 = vunpack.c.h.b16 %v1566
        %v1865 = vunpack.c.l.b16 %v1567
        %v1866 = vunpack.c.h.b16 %v1567
        %v1867 = vunpack.c.l.b16 %v1568
        %v1868 = vunpack.c.h.b16 %v1568
        %v1869 = vunpack.c.l.b16 %v1569
        %v1870 = vunpack.c.h.b16 %v1569
        %v1871 = vunpack.c.l.b16 %v1570
        %v1872 = vunpack.c.h.b16 %v1570
        %v1873 = vunpack.c.l.b16 %v1571
        %v1874 = vunpack.c.h.b16 %v1571
        %v1875 = vunpack.c.l.b16 %v1572
        %v1876 = vunpack.c.h.b16 %v1572
        %v1877 = vunpack.c.l.b16 %v1573
        %v1878 = vunpack.c.h.b16 %v1573
        %v1879 = vunpack.c.l.b16 %v1574
        %v1880 = vunpack.c.h.b16 %v1574
        %v1881 = vunpack.c.l.b16 %v1575
        %v1882 = vunpack.c.h.b16 %v1575
        %v1883 = vunpack.c.l.b16 %v1576
        %v1884 = vunpack.c.h.b16 %v1576
        %v1885 = vunpack.c.l.b16 %v1577
        %v1886 = vunpack.c.h.b16 %v1577
        %v1887 = vunpack.c.l.b16 %v1578
        %v1888 = vunpack.c.h.b16 %v1578
        %v1889 = vpack.c.b16 %v1701, %v1697
        %v1890 = vpack.c.b16 %v1702, %v1698
        %v1891 = vpack.c.b16 %v1703, %v1699
        %v1892 = vpack.c.b16 %v1704, %v1700
        %v1893 = vpack.c.b16 %v1709, %v1705
        %v1894 = vpack.c.b16 %v1710, %v1706
        %v1895 = vpack.c.b16 %v1711, %v1707
        %v1896 = vpack.c.b16 %v1712, %v1708
        %v1897 = vpack.c.b16 %v1717, %v1713
        %v1898 = vpack.c.b16 %v1718, %v1714
        %v1899 = vpack.c.b16 %v1719, %v1715
        %v1900 = vpack.c.b16 %v1720, %v1716
        %v1901 = vpack.c.b16 %v1725, %v1721
        %v1902 = vpack.c.b16 %v1726, %v1722
        %v1903 = vpack.c.b16 %v1727, %v1723
        %v1904 = vpack.c.b16 %v1728, %v1724
        %v1905 = vpack.c.b16 %v1733, %v1729
        %v1906 = vpack.c.b16 %v1734, %v1730
        %v1907 = vpack.c.b16 %v1735, %v1731
        %v1908 = vpack.c.b16 %v1736, %v1732
        %v1909 = vpack.c.b16 %v1741, %v1737
        %v1910 = vpack.c.b16 %v1742, %v1738
        %v1911 = vpack.c.b16 %v1743, %v1739
        %v1912 = vpack.c.b16 %v1744, %v1740
        %v1913 = vpack.c.b16 %v1749, %v1745
        %v1914 = vpack.c.b16 %v1750, %v1746
        %v1915 = vpack.c.b16 %v1751, %v1747
        %v1916 = vpack.c.b16 %v1752, %v1748
        %v1917 = vpack.c.b16 %v1757, %v1753
        %v1918 = vpack.c.b16 %v1758, %v1754
        %v1919 = vpack.c.b16 %v1759, %v1755
        %v1920 = vpack.c.b16 %v1760, %v1756
        %v1921 = vpack.c.b16 %v1765, %v1761
        %v1922 = vpack.c.b16 %v1766, %v1762
        %v1923 = vpack.c.b16 %v1767, %v1763
        %v1924 = vpack.c.b16 %v1768, %v1764
        %v1925 = vpack.c.b16 %v1773, %v1769
        %v1926 = vpack.c.b16 %v1774, %v1770
        %v1927 = vpack.c.b16 %v1775, %v1771
        %v1928 = vpack.c.b16 %v1776, %v1772
        %v1929 = vpack.c.b16 %v1781, %v1777
        %v1930 = vpack.c.b16 %v1782, %v1778
        %v1931 = vpack.c.b16 %v1783, %v1779
        %v1932 = vpack.c.b16 %v1784, %v1780
        %v1933 = vpack.c.b16 %v1789, %v1785
        %v1934 = vpack.c.b16 %v1790, %v1786
        %v1935 = vpack.c.b16 %v1791, %v1787
        %v1936 = vpack.c.b16 %v1792, %v1788
        %v1937 = vpack.c.b16 %v1797, %v1793
        %v1938 = vpack.c.b16 %v1798, %v1794
        %v1939 = vpack.c.b16 %v1799, %v1795
        %v1940 = vpack.c.b16 %v1800, %v1796
        %v1941 = vpack.c.b16 %v1805, %v1801
        %v1942 = vpack.c.b16 %v1806, %v1802
        %v1943 = vpack.c.b16 %v1807, %v1803
        %v1944 = vpack.c.b16 %v1808, %v1804
        %v1945 = vpack.c.b16 %v1813, %v1809
        %v1946 = vpack.c.b16 %v1814, %v1810
        %v1947 = vpack.c.b16 %v1815, %v1811
        %v1948 = vpack.c.b16 %v1816, %v1812
        %v1949 = vpack.c.b16 %v1821, %v1817
        %v1950 = vpack.c.b16 %v1822, %v1818
        %v1951 = vpack.c.b16 %v1823, %v1819
        %v1952 = vpack.c.b16 %v1824, %v1820
        %v1953 = vpack.c.b16 %v1829, %v1825
        %v1954 = vpack.c.b16 %v1830, %v1826
        %v1955 = vpack.c.b16 %v1831, %v1827
        %v1956 = vpack.c.b16 %v1832, %v1828
        %v1957 = vpack.c.b16 %v1837, %v1833
        %v1958 = vpack.c.b16 %v1838, %v1834
        %v1959 = vpack.c.b16 %v1839, %v1835
        %v1960 = vpack.c.b16 %v1840, %v1836
        %v1961 = vpack.c.b16 %v1845, %v1841
        %v1962 = vpack.c.b16 %v1846, %v1842
        %v1963 = vpack.c.b16 %v1847, %v1843
        %v1964 = vpack.c.b16 %v1848, %v1844
        %v1965 = vpack.c.b16 %v1853, %v1849
        %v1966 = vpack.c.b16 %v1854, %v1850
        %v1967 = vpack.c.b16 %v1855, %v1851
        %v1968 = vpack.c.b16 %v1856, %v1852
        %v1969 = vpack.c.b16 %v1861, %v1857
        %v1970 = vpack.c.b16 %v1862, %v1858
        %v1971 = vpack.c.b16 %v1863, %v1859
        %v1972 = vpack.c.b16 %v1864, %v1860
        %v1973 = vpack.c.b16 %v1869, %v1865
        %v1974 = vpack.c.b16 %v1870, %v1866
        %v1975 = vpack.c.b16 %v1871, %v1867
        %v1976 = vpack.c.b16 %v1872, %v1868
        %v1977 = vpack.c.b16 %v1877, %v1873
        %v1978 = vpack.c.b16 %v1878, %v1874
        %v1979 = vpack.c.b16 %v1879, %v1875
        %v1980 = vpack.c.b16 %v1880, %v1876
        %v1981 = vpack.c.b16 %v1885, %v1881
        %v1982 = vpack.c.b16 %v1886, %v1882
        %v1983 = vpack.c.b16 %v1887, %v1883
        %v1984 = vpack.c.b16 %v1888, %v1884
        %2081 = vmatprep.subr.bf16.mxu0 %v1890
        %2082 = vmatpush1.bf16.msra.mxu0 %v1889
        %2083 = vmatprep.subr.bf16.mxu0 %v1894
        %2084 = vmatpush1.bf16.msra.mxu0 %v1893
        %2085 = vmatprep.subr.bf16.mxu0 %v1898
        %2086 = vmatpush1.bf16.msra.mxu0 %v1897
        %2087 = vmatprep.subr.bf16.mxu0 %v1902
        %2088 = vmatpush1.bf16.msra.mxu0 %v1901
        %2089 = vmatprep.subr.bf16.mxu0 %v1906
        %2090 = vmatpush1.bf16.msra.mxu0 %v1905
        %2091 = vmatprep.subr.bf16.mxu0 %v1910
        %2092 = vmatpush1.bf16.msra.mxu0 %v1909
        %2093 = vmatprep.subr.bf16.mxu0 %v1914
        %2094 = vmatpush1.bf16.msra.mxu0 %v1913
        %2095 = vmatprep.subr.bf16.mxu0 %v1918
        %2096 = vmatpush1.bf16.msra.mxu0 %v1917
        %2097 = vmatprep.subr.bf16.mxu0 %v1922
        %2098 = vmatpush1.bf16.msra.mxu0 %v1921
        %2099 = vmatprep.subr.bf16.mxu0 %v1926
        %2100 = vmatpush1.bf16.msra.mxu0 %v1925
        %2101 = vmatprep.subr.bf16.mxu0 %v1930
        %2102 = vmatpush1.bf16.msra.mxu0 %v1929
        %2103 = vmatprep.subr.bf16.mxu0 %v1934
        %2104 = vmatpush1.bf16.msra.mxu0 %v1933
        %2105 = vmatprep.subr.bf16.mxu0 %v1938
        %2106 = vmatpush1.bf16.msra.mxu0 %v1937
        %2107 = vmatprep.subr.bf16.mxu0 %v1942
        %2108 = vmatpush1.bf16.msra.mxu0 %v1941
        %2109 = vmatprep.subr.bf16.mxu0 %v1946
        %2110 = vmatpush1.bf16.msra.mxu0 %v1945
        %2111 = vmatprep.subr.bf16.mxu0 %v1950
        %2112 = vmatpush1.bf16.msra.mxu0 %v1949
        %2113 = vmatprep.mubr.bf16.mxu0 %v1478
        %2114 = vmatmul.mubr.bf16.gmra.mrb[0].mxu0 %v1477
        %v2115 = vpop.f32.mrb[0].mxu0
        %v2116 = vadd.f32 %v1584, %v2115
        %v2117 = vpop.f32.mrb[0].mxu0
        %v2118 = vadd.f32 %v1588, %v2117
        %v2119 = vpop.f32.mrb[0].mxu0
        %v2120 = vadd.f32 %v1584, %v2119
        %v2121 = vpop.f32.mrb[0].mxu0
        %v2122 = vadd.f32 %v1588, %v2121
        %2123 = vmatprep.mubr.bf16.mxu0 %v1481
        %2124 = vmatmul.mubr.bf16.gmra.mrb[0].mxu0 %v1480
        %v2125 = vpop.f32.mrb[0].mxu0
        %v2126 = vadd.f32 %v1584, %v2125
        %v2127 = vpop.f32.mrb[0].mxu0
        %v2128 = vadd.f32 %v1588, %v2127
        %v2129 = vpop.f32.mrb[0].mxu0
        %v2130 = vadd.f32 %v1584, %v2129
        %v2131 = vpop.f32.mrb[0].mxu0
        %v2132 = vadd.f32 %v1588, %v2131
        %2133 = vdwg.mxu0
        %2134 = vmatprep.subr.bf16.mxu0 %v1954
        %2135 = vmatpush1.bf16.msra.mxu0 %v1953
        %2136 = vmatprep.subr.bf16.mxu0 %v1958
        %2137 = vmatpush1.bf16.msra.mxu0 %v1957
        %2138 = vmatprep.subr.bf16.mxu0 %v1962
        %2139 = vmatpush1.bf16.msra.mxu0 %v1961
        %2140 = vmatprep.subr.bf16.mxu0 %v1966
        %2141 = vmatpush1.bf16.msra.mxu0 %v1965
        %2142 = vmatprep.subr.bf16.mxu0 %v1970
        %2143 = vmatpush1.bf16.msra.mxu0 %v1969
        %2144 = vmatprep.subr.bf16.mxu0 %v1974
        %2145 = vmatpush1.bf16.msra.mxu0 %v1973
        %2146 = vmatprep.subr.bf16.mxu0 %v1978
        %2147 = vmatpush1.bf16.msra.mxu0 %v1977
        %2148 = vmatprep.subr.bf16.mxu0 %v1982
        %2149 = vmatpush1.bf16.msra.mxu0 %v1981
        %2150 = vmatprep.subr.bf16.mxu0 0
        %2151 = vmatpush1.bf16.msra.mxu0 0
        %2152 = vmatprep.subr.bf16.mxu0 0
        %2153 = vmatpush1.bf16.msra.mxu0 0
        %2154 = vmatprep.subr.bf16.mxu0 0
        %2155 = vmatpush1.bf16.msra.mxu0 0
        %2156 = vmatprep.subr.bf16.mxu0 0
        %2157 = vmatpush1.bf16.msra.mxu0 0
        %2158 = vmatprep.subr.bf16.mxu0 0
        %2159 = vmatpush1.bf16.msra.mxu0 0
        %2160 = vmatprep.subr.bf16.mxu0 0
        %2161 = vmatpush1.bf16.msra.mxu0 0
        %2162 = vmatprep.subr.bf16.mxu0 0
        %2163 = vmatpush1.bf16.msra.mxu0 0
        %2164 = vmatprep.subr.bf16.mxu0 0
        %2165 = vmatpush1.bf16.msra.mxu0 0
        %2166 = vmatprep.mubr.bf16.mxu0 0
        %2167 = vmatmul.mubr.bf16.gmra.mrb[0].mxu0 %v1479
        %v2168 = vpop.f32.mrb[0].mxu0
        %v2169 = vadd.f32 %v2116, %v2168
        %v2170 = vpop.f32.mrb[0].mxu0
        %v2171 = vadd.f32 %v2118, %v2170
        %v2172 = vpop.f32.mrb[0].mxu0
        %v2173 = vadd.f32 %v2120, %v2172
        %v2174 = vpop.f32.mrb[0].mxu0
        %v2175 = vadd.f32 %v2122, %v2174
        %2176 = vmatprep.mubr.bf16.mxu0 0
        %2177 = vmatmul.mubr.bf16.gmra.mrb[0].mxu0 %v1482
        %v2178 = vpop.f32.mrb[0].mxu0
        %v2179 = vadd.f32 %v2126, %v2178
        %v2180 = vpop.f32.mrb[0].mxu0
        %v2181 = vadd.f32 %v2128, %v2180
        %v2182 = vpop.f32.mrb[0].mxu0
        %v2183 = vadd.f32 %v2130, %v2182
        %v2184 = vpop.f32.mrb[0].mxu0
        %v2185 = vadd.f32 %v2132, %v2184
        %2186 = vdwg.mxu0
        %2187 = vmatprep.subr.bf16.mxu0 %v1892
        %2188 = vmatpush1.bf16.msra.mxu0 %v1891
        %2189 = vmatprep.subr.bf16.mxu0 %v1896
        %2190 = vmatpush1.bf16.msra.mxu0 %v1895
        %2191 = vmatprep.subr.bf16.mxu0 %v1900
        %2192 = vmatpush1.bf16.msra.mxu0 %v1899
        %2193 = vmatprep.subr.bf16.mxu0 %v1904
        %2194 = vmatpush1.bf16.msra.mxu0 %v1903
        %2195 = vmatprep.subr.bf16.mxu0 %v1908
        %2196 = vmatpush1.bf16.msra.mxu0 %v1907
        %2197 = vmatprep.subr.bf16.mxu0 %v1912
        %2198 = vmatpush1.bf16.msra.mxu0 %v1911
        %2199 = vmatprep.subr.bf16.mxu0 %v1916
        %2200 = vmatpush1.bf16.msra.mxu0 %v1915
        %2201 = vmatprep.subr.bf16.mxu0 %v1920
        %2202 = vmatpush1.bf16.msra.mxu0 %v1919
        %2203 = vmatprep.subr.bf16.mxu0 %v1924
        %2204 = vmatpush1.bf16.msra.mxu0 %v1923
        %2205 = vmatprep.subr.bf16.mxu0 %v1928
        %2206 = vmatpush1.bf16.msra.mxu0 %v1927
        %2207 = vmatprep.subr.bf16.mxu0 %v1932
        %2208 = vmatpush1.bf16.msra.mxu0 %v1931
        %2209 = vmatprep.subr.bf16.mxu0 %v1936
        %2210 = vmatpush1.bf16.msra.mxu0 %v1935
        %2211 = vmatprep.subr.bf16.mxu0 %v1940
        %2212 = vmatpush1.bf16.msra.mxu0 %v1939
        %2213 = vmatprep.subr.bf16.mxu0 %v1944
        %2214 = vmatpush1.bf16.msra.mxu0 %v1943
        %2215 = vmatprep.subr.bf16.mxu0 %v1948
        %2216 = vmatpush1.bf16.msra.mxu0 %v1947
        %2217 = vmatprep.subr.bf16.mxu0 %v1952
        %2218 = vmatpush1.bf16.msra.mxu0 %v1951
        %2219 = vmatprep.mubr.bf16.mxu0 %v1478
        %2220 = vmatmul.mubr.bf16.gmra.mrb[0].mxu0 %v1477
        %v2221 = vpop.f32.mrb[0].mxu0
        %v2222 = vadd.f32 %v1592, %v2221
        %v2223 = vpop.f32.mrb[0].mxu0
        %v2224 = vadd.f32 %v1596, %v2223
        %v2225 = vpop.f32.mrb[0].mxu0
        %v2226 = vadd.f32 %v1592, %v2225
        %v2227 = vpop.f32.mrb[0].mxu0
        %v2228 = vadd.f32 %v1596, %v2227
        %2229 = vmatprep.mubr.bf16.mxu0 %v1481
        %2230 = vmatmul.mubr.bf16.gmra.mrb[0].mxu0 %v1480
        %v2231 = vpop.f32.mrb[0].mxu0
        %v2232 = vadd.f32 %v1592, %v2231
        %v2233 = vpop.f32.mrb[0].mxu0
        %v2234 = vadd.f32 %v1596, %v2233
        %v2235 = vpop.f32.mrb[0].mxu0
        %v2236 = vadd.f32 %v1592, %v2235
        %v2237 = vpop.f32.mrb[0].mxu0
        %v2238 = vadd.f32 %v1596, %v2237
        %2239 = vdwg.mxu0
        %2240 = vmatprep.subr.bf16.mxu0 %v1956
        %2241 = vmatpush1.bf16.msra.mxu0 %v1955
        %2242 = vmatprep.subr.bf16.mxu0 %v1960
        %2243 = vmatpush1.bf16.msra.mxu0 %v1959
        %2244 = vmatprep.subr.bf16.mxu0 %v1964
        %2245 = vmatpush1.bf16.msra.mxu0 %v1963
        %2246 = vmatprep.subr.bf16.mxu0 %v1968
        %2247 = vmatpush1.bf16.msra.mxu0 %v1967
        %2248 = vmatprep.subr.bf16.mxu0 %v1972
        %2249 = vmatpush1.bf16.msra.mxu0 %v1971
        %2250 = vmatprep.subr.bf16.mxu0 %v1976
        %2251 = vmatpush1.bf16.msra.mxu0 %v1975
        %2252 = vmatprep.subr.bf16.mxu0 %v1980
        %2253 = vmatpush1.bf16.msra.mxu0 %v1979
        %2254 = vmatprep.subr.bf16.mxu0 %v1984
        %2255 = vmatpush1.bf16.msra.mxu0 %v1983
        %2256 = vmatprep.subr.bf16.mxu0 0
        %2257 = vmatpush1.bf16.msra.mxu0 0
        %2258 = vmatprep.subr.bf16.mxu0 0
        %2259 = vmatpush1.bf16.msra.mxu0 0
        %2260 = vmatprep.subr.bf16.mxu0 0
        %2261 = vmatpush1.bf16.msra.mxu0 0
        %2262 = vmatprep.subr.bf16.mxu0 0
        %2263 = vmatpush1.bf16.msra.mxu0 0
        %2264 = vmatprep.subr.bf16.mxu0 0
        %2265 = vmatpush1.bf16.msra.mxu0 0
        %2266 = vmatprep.subr.bf16.mxu0 0
        %2267 = vmatpush1.bf16.msra.mxu0 0
        %2268 = vmatprep.subr.bf16.mxu0 0
        %2269 = vmatpush1.bf16.msra.mxu0 0
        %2270 = vmatprep.subr.bf16.mxu0 0
        %2271 = vmatpush1.bf16.msra.mxu0 0
        %2272 = vmatprep.mubr.bf16.mxu0 0
        %2273 = vmatmul.mubr.bf16.gmra.mrb[0].mxu0 %v1479
        %v2274 = vpop.f32.mrb[0].mxu0
        %v2275 = vadd.f32 %v2222, %v2274
        %v2276 = vpop.f32.mrb[0].mxu0
        %v2277 = vadd.f32 %v2224, %v2276
        %v2278 = vpop.f32.mrb[0].mxu0
        %v2279 = vadd.f32 %v2226, %v2278
        %v2280 = vpop.f32.mrb[0].mxu0
        %v2281 = vadd.f32 %v2228, %v2280
        %2282 = vmatprep.mubr.bf16.mxu0 0
        %2283 = vmatmul.mubr.bf16.gmra.mrb[0].mxu0 %v1482
        %v2284 = vpop.f32.mrb[0].mxu0
        %v2285 = vadd.f32 %v2232, %v2284
        %v2286 = vpop.f32.mrb[0].mxu0
        %v2287 = vadd.f32 %v2234, %v2286
        %v2288 = vpop.f32.mrb[0].mxu0
        %v2289 = vadd.f32 %v2236, %v2288
        %v2290 = vpop.f32.mrb[0].mxu0
        %v2291 = vadd.f32 %v2238, %v2290
        %2292 = vdwg.mxu0
        %v2293 = vmul.f32 %v2275, 0.5
        %v2294 = vmul.f32 %v2277, 0.5
        %v2295 = vmul.f32 %v2279, 0.5
        %v2296 = vmul.f32 %v2281, 0.5
        %v2297 = vmul.f32 %v2285, 0.5
        %v2298 = vmul.f32 %v2287, 0.5
        %v2299 = vmul.f32 %v2289, 0.5
        %v2300 = vmul.f32 %v2291, 0.5
        %v2301 = vpack.c.bf16 %v2295, %v2293
        %v2302 = vpack.c.bf16 %v2296, %v2294
        %v2303 = vpack.c.bf16 %v2299, %v2297
        %v2304 = vpack.c.bf16 %v2300, %v2298
        %v2306 = vmul.bf16 %v2301, 1069105081
        %v2307 = vpow.bf16.pop %v2306
        %v2309 = vmul.bf16 %v2302, 1069105081
        %v2310 = vpow.bf16.pop %v2309
        %v2312 = vmul.bf16 %v2303, 1069105081
        %v2313 = vpow.bf16.pop %v2312
        %v2315 = vmul.bf16 %v2304, 1069105081
        %v2316 = vpow.bf16.pop %v2315
        %v2317 = vunpack.c.l.bf16 %v2307
        %v2318 = vunpack.c.l.bf16 %v2310
        %v2319 = vunpack.c.h.bf16 %v2307
        %v2320 = vunpack.c.h.bf16 %v2310
        %v2321 = vunpack.c.l.bf16 %v2313
        %v2322 = vunpack.c.l.bf16 %v2316
        %v2323 = vunpack.c.h.bf16 %v2313
        %v2324 = vunpack.c.h.bf16 %v2316
        %v2325 = vld [vmem:[%s478] sm:$0xff]
        %v2326 = vld [vmem:[%s478 + $0x8] sm:$0xff]
        %v2327 = vld [vmem:[%s478 + $0x10] sm:$0xff]
        %v2328 = vld [vmem:[%s478 + $0x18] sm:$0xff]
        %v2329 = vunpack.c.l.bf16 %v2325
        %v2330 = vunpack.c.h.bf16 %v2325
        %v2331 = vunpack.c.l.bf16 %v2326
        %v2332 = vunpack.c.h.bf16 %v2326
        %v2333 = vunpack.c.l.bf16 %v2327
        %v2334 = vunpack.c.h.bf16 %v2327
        %v2335 = vunpack.c.l.bf16 %v2328
        %v2336 = vunpack.c.h.bf16 %v2328
        %v2337 = vmul.f32 %v2329, %v2317
        %v2338 = vmul.f32 %v2330, %v2318
        %v2339 = vmul.f32 %v2331, %v2319
        %v2340 = vmul.f32 %v2332, %v2320
        %v2341 = vmul.f32 %v2333, %v2321
        %v2342 = vmul.f32 %v2334, %v2322
        %v2343 = vmul.f32 %v2335, %v2323
        %v2344 = vmul.f32 %v2336, %v2324
        %v2345 = vadd.f32 %v2169, %v2337
        %v2346 = vadd.f32 %v2171, %v2338
        %v2347 = vadd.f32 %v2173, %v2339
        %v2348 = vadd.f32 %v2175, %v2340
        %v2349 = vadd.f32 %v2179, %v2341
        %v2350 = vadd.f32 %v2181, %v2342
        %v2351 = vadd.f32 %v2183, %v2343
        %v2352 = vadd.f32 %v2185, %v2344
        %v2353 = vpack.c.bf16 %v2347, %v2345
        %v2354 = vpack.c.bf16 %v2348, %v2346
        %v2355 = vpack.c.bf16 %v2351, %v2349
        %v2356 = vpack.c.bf16 %v2352, %v2350
        %v2357 = vld [vmem:[#allocation10] sm:$0xff]
        %v2358 = vld [vmem:[#allocation10 + $0x8] sm:$0xf]
        %v2359 = vld [vmem:[#allocation10 + $0xc] sm:$0xff]
        %v2360 = vld [vmem:[#allocation10 + $0x14] sm:$0xf]
        %v2361 = vld [vmem:[#allocation10 + $0x18] sm:$0xff]
        %v2362 = vld [vmem:[#allocation10 + $0x20] sm:$0xf]
        %v2363 = vld [vmem:[#allocation10 + $0x24] sm:$0xff]
        %v2364 = vld [vmem:[#allocation10 + $0x2c] sm:$0xf]
        %v2365 = vld [vmem:[#allocation10 + $0x30] sm:$0xff]
        %v2366 = vld [vmem:[#allocation10 + $0x38] sm:$0xf]
        %v2367 = vld [vmem:[#allocation10 + $0x3c] sm:$0xff]
        %v2368 = vld [vmem:[#allocation10 + $0x44] sm:$0xf]
        %v2369 = vld [vmem:[#allocation10 + $0x48] sm:$0xff]
        %v2370 = vld [vmem:[#allocation10 + $0x50] sm:$0xf]
        %v2371 = vld [vmem:[#allocation10 + $0x54] sm:$0xff]
        %v2372 = vld [vmem:[#allocation10 + $0x5c] sm:$0xf]
        %v2373 = vld [vmem:[#allocation10 + $0x60] sm:$0xff]
        %v2374 = vld [vmem:[#allocation10 + $0x68] sm:$0xf]
        %v2375 = vld [vmem:[#allocation10 + $0x6c] sm:$0xff]
        %v2376 = vld [vmem:[#allocation10 + $0x74] sm:$0xf]
        %v2377 = vld [vmem:[#allocation10 + $0x78] sm:$0xff]
        %v2378 = vld [vmem:[#allocation10 + $0x80] sm:$0xf]
        %v2379 = vld [vmem:[#allocation10 + $0x84] sm:$0xff]
        %v2380 = vld [vmem:[#allocation10 + $0x8c] sm:$0xf]
        %v2381 = vld [vmem:[#allocation10 + $0x90] sm:$0xff]
        %v2382 = vld [vmem:[#allocation10 + $0x98] sm:$0xf]
        %v2383 = vld [vmem:[#allocation10 + $0x9c] sm:$0xff]
        %v2384 = vld [vmem:[#allocation10 + $0xa4] sm:$0xf]
        %v2385 = vld [vmem:[#allocation10 + $0xa8] sm:$0xff]
        %v2386 = vld [vmem:[#allocation10 + $0xb0] sm:$0xf]
        %v2387 = vld [vmem:[#allocation10 + $0xb4] sm:$0xff]
        %v2388 = vld [vmem:[#allocation10 + $0xbc] sm:$0xf]
        %v2389 = vld [vmem:[#allocation10 + $0xc0] sm:$0xff]
        %v2390 = vld [vmem:[#allocation10 + $0xc8] sm:$0xf]
        %v2391 = vld [vmem:[#allocation10 + $0xcc] sm:$0xff]
        %v2392 = vld [vmem:[#allocation10 + $0xd4] sm:$0xf]
        %v2393 = vld [vmem:[#allocation10 + $0xd8] sm:$0xff]
        %v2394 = vld [vmem:[#allocation10 + $0xe0] sm:$0xf]
        %v2395 = vld [vmem:[#allocation10 + $0xe4] sm:$0xff]
        %v2396 = vld [vmem:[#allocation10 + $0xec] sm:$0xf]
        %v2397 = vld [vmem:[#allocation10 + $0xf0] sm:$0xff]
        %v2398 = vld [vmem:[#allocation10 + $0xf8] sm:$0xf]
        %v2399 = vld [vmem:[#allocation10 + $0xfc] sm:$0xff]
        %v2400 = vld [vmem:[#allocation10 + $0x104] sm:$0xf]
        %v2401 = vld [vmem:[#allocation10 + $0x108] sm:$0xff]
        %v2402 = vld [vmem:[#allocation10 + $0x110] sm:$0xf]
        %v2403 = vld [vmem:[#allocation10 + $0x114] sm:$0xff]
        %v2404 = vld [vmem:[#allocation10 + $0x11c] sm:$0xf]
        %v2405 = vld [vmem:[#allocation10 + $0x120] sm:$0xff]
        %v2406 = vld [vmem:[#allocation10 + $0x128] sm:$0xf]
        %v2407 = vld [vmem:[#allocation10 + $0x12c] sm:$0xff]
        %v2408 = vld [vmem:[#allocation10 + $0x134] sm:$0xf]
        %v2409 = vld [vmem:[#allocation10 + $0x138] sm:$0xff]
        %v2410 = vld [vmem:[#allocation10 + $0x140] sm:$0xf]
        %v2411 = vld [vmem:[#allocation10 + $0x144] sm:$0xff]
        %v2412 = vld [vmem:[#allocation10 + $0x14c] sm:$0xf]
        %v2413 = vld [vmem:[#allocation10 + $0x150] sm:$0xff]
        %v2414 = vld [vmem:[#allocation10 + $0x158] sm:$0xf]
        %v2415 = vld [vmem:[#allocation10 + $0x15c] sm:$0xff]
        %v2416 = vld [vmem:[#allocation10 + $0x164] sm:$0xf]
        %v2417 = vld [vmem:[#allocation10 + $0x168] sm:$0xff]
        %v2418 = vld [vmem:[#allocation10 + $0x170] sm:$0xf]
        %v2419 = vld [vmem:[#allocation10 + $0x174] sm:$0xff]
        %v2420 = vld [vmem:[#allocation10 + $0x17c] sm:$0xf]
        %v2421 = vld [vmem:[%s7] sm:$0x7]
        %v2423 = vlaneseq
        %v2424 = vshrl.u32 %v2423, 7
        %v2425 = vsub.s32 0, %v2424
        %v2426 = vrot.slane %v2421, %v2425
        %v2427 = vlaneseq
        %v2428 = vshrl.u32 %v2427, 7
        %v2429 = vsub.s32 1, %v2428
        %v2430 = vrot.slane %v2421, %v2429
        %v2431 = vlaneseq
        %v2432 = vshrl.u32 %v2431, 7
        %v2433 = vsub.s32 2, %v2432
        %v2434 = vrot.slane %v2421, %v2433
        %v2502 = vunpack.c.l.b16 %v2357
        %v2503 = vunpack.c.h.b16 %v2357
        %v2504 = vunpack.c.l.b16 %v2358
        %v2505 = vunpack.c.l.b16 %v2359
        %v2506 = vunpack.c.h.b16 %v2359
        %v2507 = vunpack.c.l.b16 %v2360
        %v2508 = vunpack.c.l.b16 %v2361
        %v2509 = vunpack.c.h.b16 %v2361
        %v2510 = vunpack.c.l.b16 %v2362
        %v2511 = vunpack.c.l.b16 %v2363
        %v2512 = vunpack.c.h.b16 %v2363
        %v2513 = vunpack.c.l.b16 %v2364
        %v2514 = vunpack.c.l.b16 %v2365
        %v2515 = vunpack.c.h.b16 %v2365
        %v2516 = vunpack.c.l.b16 %v2366
        %v2517 = vunpack.c.l.b16 %v2367
        %v2518 = vunpack.c.h.b16 %v2367
        %v2519 = vunpack.c.l.b16 %v2368
        %v2520 = vunpack.c.l.b16 %v2369
        %v2521 = vunpack.c.h.b16 %v2369
        %v2522 = vunpack.c.l.b16 %v2370
        %v2523 = vunpack.c.l.b16 %v2371
        %v2524 = vunpack.c.h.b16 %v2371
        %v2525 = vunpack.c.l.b16 %v2372
        %v2526 = vunpack.c.l.b16 %v2373
        %v2527 = vunpack.c.h.b16 %v2373
        %v2528 = vunpack.c.l.b16 %v2374
        %v2529 = vunpack.c.l.b16 %v2375
        %v2530 = vunpack.c.h.b16 %v2375
        %v2531 = vunpack.c.l.b16 %v2376
        %v2532 = vunpack.c.l.b16 %v2377
        %v2533 = vunpack.c.h.b16 %v2377
        %v2534 = vunpack.c.l.b16 %v2378
        %v2535 = vunpack.c.l.b16 %v2379
        %v2536 = vunpack.c.h.b16 %v2379
        %v2537 = vunpack.c.l.b16 %v2380
        %v2538 = vunpack.c.l.b16 %v2381
        %v2539 = vunpack.c.h.b16 %v2381
        %v2540 = vunpack.c.l.b16 %v2382
        %v2541 = vunpack.c.l.b16 %v2383
        %v2542 = vunpack.c.h.b16 %v2383
        %v2543 = vunpack.c.l.b16 %v2384
        %v2544 = vunpack.c.l.b16 %v2385
        %v2545 = vunpack.c.h.b16 %v2385
        %v2546 = vunpack.c.l.b16 %v2386
        %v2547 = vunpack.c.l.b16 %v2387
        %v2548 = vunpack.c.h.b16 %v2387
        %v2549 = vunpack.c.l.b16 %v2388
        %v2550 = vunpack.c.l.b16 %v2389
        %v2551 = vunpack.c.h.b16 %v2389
        %v2552 = vunpack.c.l.b16 %v2390
        %v2553 = vunpack.c.l.b16 %v2391
        %v2554 = vunpack.c.h.b16 %v2391
        %v2555 = vunpack.c.l.b16 %v2392
        %v2556 = vunpack.c.l.b16 %v2393
        %v2557 = vunpack.c.h.b16 %v2393
        %v2558 = vunpack.c.l.b16 %v2394
        %v2559 = vunpack.c.l.b16 %v2395
        %v2560 = vunpack.c.h.b16 %v2395
        %v2561 = vunpack.c.l.b16 %v2396
        %v2562 = vunpack.c.l.b16 %v2397
        %v2563 = vunpack.c.h.b16 %v2397
        %v2564 = vunpack.c.l.b16 %v2398
        %v2565 = vunpack.c.l.b16 %v2399
        %v2566 = vunpack.c.h.b16 %v2399
        %v2567 = vunpack.c.l.b16 %v2400
        %v2568 = vunpack.c.l.b16 %v2401
        %v2569 = vunpack.c.h.b16 %v2401
        %v2570 = vunpack.c.l.b16 %v2402
        %v2571 = vunpack.c.l.b16 %v2403
        %v2572 = vunpack.c.h.b16 %v2403
        %v2573 = vunpack.c.l.b16 %v2404
        %v2574 = vunpack.c.l.b16 %v2405
        %v2575 = vunpack.c.h.b16 %v2405
        %v2576 = vunpack.c.l.b16 %v2406
        %v2577 = vunpack.c.l.b16 %v2407
        %v2578 = vunpack.c.h.b16 %v2407
        %v2579 = vunpack.c.l.b16 %v2408
        %v2580 = vunpack.c.l.b16 %v2409
        %v2581 = vunpack.c.h.b16 %v2409
        %v2582 = vunpack.c.l.b16 %v2410
        %v2583 = vunpack.c.l.b16 %v2411
        %v2584 = vunpack.c.h.b16 %v2411
        %v2585 = vunpack.c.l.b16 %v2412
        %v2586 = vunpack.c.l.b16 %v2413
        %v2587 = vunpack.c.h.b16 %v2413
        %v2588 = vunpack.c.l.b16 %v2414
        %v2589 = vunpack.c.l.b16 %v2415
        %v2590 = vunpack.c.h.b16 %v2415
        %v2591 = vunpack.c.l.b16 %v2416
        %v2592 = vunpack.c.l.b16 %v2417
        %v2593 = vunpack.c.h.b16 %v2417
        %v2594 = vunpack.c.l.b16 %v2418
        %v2595 = vunpack.c.l.b16 %v2419
        %v2596 = vunpack.c.h.b16 %v2419
        %v2597 = vunpack.c.l.b16 %v2420
        %v2598 = vpack.c.b16 %v2505, %v2502
        %v2599 = vpack.c.b16 %v2506, %v2503
        %v2600 = vpack.c.b16 %v2507, %v2504
        %v2601 = vpack.c.b16 %v2511, %v2508
        %v2602 = vpack.c.b16 %v2512, %v2509
        %v2603 = vpack.c.b16 %v2513, %v2510
        %v2604 = vpack.c.b16 %v2517, %v2514
        %v2605 = vpack.c.b16 %v2518, %v2515
        %v2606 = vpack.c.b16 %v2519, %v2516
        %v2607 = vpack.c.b16 %v2523, %v2520
        %v2608 = vpack.c.b16 %v2524, %v2521
        %v2609 = vpack.c.b16 %v2525, %v2522
        %v2610 = vpack.c.b16 %v2529, %v2526
        %v2611 = vpack.c.b16 %v2530, %v2527
        %v2612 = vpack.c.b16 %v2531, %v2528
        %v2613 = vpack.c.b16 %v2535, %v2532
        %v2614 = vpack.c.b16 %v2536, %v2533
        %v2615 = vpack.c.b16 %v2537, %v2534
        %v2616 = vpack.c.b16 %v2541, %v2538
        %v2617 = vpack.c.b16 %v2542, %v2539
        %v2618 = vpack.c.b16 %v2543, %v2540
        %v2619 = vpack.c.b16 %v2547, %v2544
        %v2620 = vpack.c.b16 %v2548, %v2545
        %v2621 = vpack.c.b16 %v2549, %v2546
        %v2622 = vpack.c.b16 %v2553, %v2550
        %v2623 = vpack.c.b16 %v2554, %v2551
        %v2624 = vpack.c.b16 %v2555, %v2552
        %v2625 = vpack.c.b16 %v2559, %v2556
        %v2626 = vpack.c.b16 %v2560, %v2557
        %v2627 = vpack.c.b16 %v2561, %v2558
        %v2628 = vpack.c.b16 %v2565, %v2562
        %v2629 = vpack.c.b16 %v2566, %v2563
        %v2630 = vpack.c.b16 %v2567, %v2564
        %v2631 = vpack.c.b16 %v2571, %v2568
        %v2632 = vpack.c.b16 %v2572, %v2569
        %v2633 = vpack.c.b16 %v2573, %v2570
        %v2634 = vpack.c.b16 %v2577, %v2574
        %v2635 = vpack.c.b16 %v2578, %v2575
        %v2636 = vpack.c.b16 %v2579, %v2576
        %v2637 = vpack.c.b16 %v2583, %v2580
        %v2638 = vpack.c.b16 %v2584, %v2581
        %v2639 = vpack.c.b16 %v2585, %v2582
        %v2640 = vpack.c.b16 %v2589, %v2586
        %v2641 = vpack.c.b16 %v2590, %v2587
        %v2642 = vpack.c.b16 %v2591, %v2588
        %v2643 = vpack.c.b16 %v2595, %v2592
        %v2644 = vpack.c.b16 %v2596, %v2593
        %v2645 = vpack.c.b16 %v2597, %v2594
        %2694 = vmatprep.subr.bf16.mxu0 %v2599
        %2695 = vmatpush1.bf16.msra.mxu0 %v2598
        %2696 = vmatprep.subr.bf16.mxu0 %v2602
        %2697 = vmatpush1.bf16.msra.mxu0 %v2601
        %2698 = vmatprep.subr.bf16.mxu0 %v2605
        %2699 = vmatpush1.bf16.msra.mxu0 %v2604
        %2700 = vmatprep.subr.bf16.mxu0 %v2608
        %2701 = vmatpush1.bf16.msra.mxu0 %v2607
        %2702 = vmatprep.subr.bf16.mxu0 %v2611
        %2703 = vmatpush1.bf16.msra.mxu0 %v2610
        %2704 = vmatprep.subr.bf16.mxu0 %v2614
        %2705 = vmatpush1.bf16.msra.mxu0 %v2613
        %2706 = vmatprep.subr.bf16.mxu0 %v2617
        %2707 = vmatpush1.bf16.msra.mxu0 %v2616
        %2708 = vmatprep.subr.bf16.mxu0 %v2620
        %2709 = vmatpush1.bf16.msra.mxu0 %v2619
        %2710 = vmatprep.subr.bf16.mxu0 %v2623
        %2711 = vmatpush1.bf16.msra.mxu0 %v2622
        %2712 = vmatprep.subr.bf16.mxu0 %v2626
        %2713 = vmatpush1.bf16.msra.mxu0 %v2625
        %2714 = vmatprep.subr.bf16.mxu0 %v2629
        %2715 = vmatpush1.bf16.msra.mxu0 %v2628
        %2716 = vmatprep.subr.bf16.mxu0 %v2632
        %2717 = vmatpush1.bf16.msra.mxu0 %v2631
        %2718 = vmatprep.subr.bf16.mxu0 %v2635
        %2719 = vmatpush1.bf16.msra.mxu0 %v2634
        %2720 = vmatprep.subr.bf16.mxu0 %v2638
        %2721 = vmatpush1.bf16.msra.mxu0 %v2637
        %2722 = vmatprep.subr.bf16.mxu0 %v2641
        %2723 = vmatpush1.bf16.msra.mxu0 %v2640
        %2724 = vmatprep.subr.bf16.mxu0 %v2644
        %2725 = vmatpush1.bf16.msra.mxu0 %v2643
        %2726 = vmatprep.mubr.bf16.mxu0 %v2354
        %2727 = vmatmul.mubr.bf16.gmra.mrb[0].mxu0 %v2353
        %v2728 = vpop.f32.mrb[0].mxu0
        %v2729 = vadd.f32 %v2426, %v2728
        %v2730 = vpop.f32.mrb[0].mxu0
        %v2731 = vadd.f32 %v2430, %v2730
        %v2732 = vpop.f32.mrb[0].mxu0
        %v2733 = vadd.f32 %v2426, %v2732
        %v2734 = vpop.f32.mrb[0].mxu0
        %v2735 = vadd.f32 %v2430, %v2734
        %2736 = vmatprep.mubr.bf16.mxu0 %v2356
        %2737 = vmatmul.mubr.bf16.gmra.mrb[0].mxu0 %v2355
        %v2738 = vpop.f32.mrb[0].mxu0
        %v2739 = vadd.f32 %v2426, %v2738
        %v2740 = vpop.f32.mrb[0].mxu0
        %v2741 = vadd.f32 %v2430, %v2740
        %v2742 = vpop.f32.mrb[0].mxu0
        %v2743 = vadd.f32 %v2426, %v2742
        %v2744 = vpop.f32.mrb[0].mxu0
        %v2745 = vadd.f32 %v2430, %v2744
        %2746 = vdwg.mxu0
        %2747 = vmatprep.subr.bf16.mxu0 0
        %2748 = vmatpush1.bf16.msra.mxu0 %v2600
        %2749 = vmatprep.subr.bf16.mxu0 0
        %2750 = vmatpush1.bf16.msra.mxu0 %v2603
        %2751 = vmatprep.subr.bf16.mxu0 0
        %2752 = vmatpush1.bf16.msra.mxu0 %v2606
        %2753 = vmatprep.subr.bf16.mxu0 0
        %2754 = vmatpush1.bf16.msra.mxu0 %v2609
        %2755 = vmatprep.subr.bf16.mxu0 0
        %2756 = vmatpush1.bf16.msra.mxu0 %v2612
        %2757 = vmatprep.subr.bf16.mxu0 0
        %2758 = vmatpush1.bf16.msra.mxu0 %v2615
        %2759 = vmatprep.subr.bf16.mxu0 0
        %2760 = vmatpush1.bf16.msra.mxu0 %v2618
        %2761 = vmatprep.subr.bf16.mxu0 0
        %2762 = vmatpush1.bf16.msra.mxu0 %v2621
        %2763 = vmatprep.subr.bf16.mxu0 0
        %2764 = vmatpush1.bf16.msra.mxu0 %v2624
        %2765 = vmatprep.subr.bf16.mxu0 0
        %2766 = vmatpush1.bf16.msra.mxu0 %v2627
        %2767 = vmatprep.subr.bf16.mxu0 0
        %2768 = vmatpush1.bf16.msra.mxu0 %v2630
        %2769 = vmatprep.subr.bf16.mxu0 0
        %2770 = vmatpush1.bf16.msra.mxu0 %v2633
        %2771 = vmatprep.subr.bf16.mxu0 0
        %2772 = vmatpush1.bf16.msra.mxu0 %v2636
        %2773 = vmatprep.subr.bf16.mxu0 0
        %2774 = vmatpush1.bf16.msra.mxu0 %v2639
        %2775 = vmatprep.subr.bf16.mxu0 0
        %2776 = vmatpush1.bf16.msra.mxu0 %v2642
        %2777 = vmatprep.subr.bf16.mxu0 0
        %2778 = vmatpush1.bf16.msra.mxu0 %v2645
        %2779 = vmatprep.mubr.bf16.mxu0 %v2354
        %2780 = vmatmul.mubr.bf16.gmra.mrb[0].mxu0 %v2353
        %v2781 = vpop.f32.mrb[0].mxu0
        %v2782 = vadd.f32 %v2434, %v2781
        %v2783 = vpop.f32.mrb[0].mxu0
        %v2784 = vpop.f32.mrb[0].mxu0
        %v2785 = vadd.f32 %v2434, %v2784
        %v2786 = vpop.f32.mrb[0].mxu0
        %2787 = vmatprep.mubr.bf16.mxu0 %v2356
        %2788 = vmatmul.mubr.bf16.gmra.mrb[0].mxu0 %v2355
        %v2789 = vpop.f32.mrb[0].mxu0
        %v2790 = vadd.f32 %v2434, %v2789
        %v2791 = vpop.f32.mrb[0].mxu0
        %v2792 = vpop.f32.mrb[0].mxu0
        %v2793 = vadd.f32 %v2434, %v2792
        %v2794 = vpop.f32.mrb[0].mxu0
        %2795 = vdwg.mxu0
        %v2796 = vmax.f32 %v2729, 0.0
        %v2797 = vmax.f32 %v2731, 0.0
        %v2798 = vmax.f32 %v2782, 0.0
        %v2799 = vmax.f32 %v2733, 0.0
        %v2800 = vmax.f32 %v2735, 0.0
        %v2801 = vmax.f32 %v2785, 0.0
        %v2802 = vmax.f32 %v2739, 0.0
        %v2803 = vmax.f32 %v2741, 0.0
        %v2804 = vmax.f32 %v2790, 0.0
        %v2805 = vmax.f32 %v2743, 0.0
        %v2806 = vmax.f32 %v2745, 0.0
        %v2807 = vmax.f32 %v2793, 0.0
        %v2808 = vpack.c.bf16 %v2799, %v2796
        %v2809 = vpack.c.bf16 %v2800, %v2797
        %v2810 = vpack.c.bf16 %v2801, %v2798
        %v2811 = vpack.c.bf16 %v2805, %v2802
        %v2812 = vpack.c.bf16 %v2806, %v2803
        %v2813 = vpack.c.bf16 %v2807, %v2804
        %v2814 = vld [vmem:[#allocation11] sm:$0xff]
        %v2815 = vld [vmem:[#allocation11 + $0x8] sm:$0xff]
        %v2816 = vld [vmem:[#allocation11 + $0x10] sm:$0xff]
        %v2817 = vld [vmem:[#allocation11 + $0x18] sm:$0xff]
        %v2818 = vld [vmem:[#allocation11 + $0x20] sm:$0xff]
        %v2819 = vld [vmem:[#allocation11 + $0x28] sm:$0xff]
        %v2820 = vld [vmem:[#allocation11 + $0x30] sm:$0xff]
        %v2821 = vld [vmem:[#allocation11 + $0x38] sm:$0xff]
        %v2822 = vld [vmem:[#allocation11 + $0x40] sm:$0xff]
        %v2823 = vld [vmem:[#allocation11 + $0x48] sm:$0xff]
        %v2824 = vld [vmem:[#allocation11 + $0x50] sm:$0xff]
        %v2825 = vld [vmem:[#allocation11 + $0x58] sm:$0xff]
        %v2826 = vld [vmem:[#allocation11 + $0x60] sm:$0xff]
        %v2827 = vld [vmem:[#allocation11 + $0x68] sm:$0xff]
        %v2828 = vld [vmem:[#allocation11 + $0x70] sm:$0xff]
        %v2829 = vld [vmem:[#allocation11 + $0x78] sm:$0xff]
        %v2830 = vld [vmem:[#allocation11 + $0x80] sm:$0xff]
        %v2831 = vld [vmem:[#allocation11 + $0x88] sm:$0xff]
        %v2832 = vld [vmem:[#allocation11 + $0x90] sm:$0xff]
        %v2833 = vld [vmem:[#allocation11 + $0x98] sm:$0xff]
        %v2834 = vld [vmem:[#allocation11 + $0xa0] sm:$0xff]
        %v2835 = vld [vmem:[#allocation11 + $0xa8] sm:$0xff]
        %v2836 = vld [vmem:[#allocation11 + $0xb0] sm:$0xff]
        %v2837 = vld [vmem:[#allocation11 + $0xb8] sm:$0xff]
        %v2838 = vld [vmem:[#allocation11 + $0xc0] sm:$0xff]
        %v2839 = vld [vmem:[#allocation11 + $0xc8] sm:$0xff]
        %v2840 = vld [vmem:[#allocation11 + $0xd0] sm:$0xff]
        %v2841 = vld [vmem:[#allocation11 + $0xd8] sm:$0xff]
        %v2842 = vld [vmem:[#allocation11 + $0xe0] sm:$0xff]
        %v2843 = vld [vmem:[#allocation11 + $0xe8] sm:$0xff]
        %v2844 = vld [vmem:[#allocation11 + $0xf0] sm:$0xff]
        %v2845 = vld [vmem:[#allocation11 + $0xf8] sm:$0xff]
        %v2846 = vld [vmem:[#allocation11 + $0x100] sm:$0xff]
        %v2847 = vld [vmem:[#allocation11 + $0x108] sm:$0xff]
        %v2848 = vld [vmem:[#allocation11 + $0x110] sm:$0xff]
        %v2849 = vld [vmem:[#allocation11 + $0x118] sm:$0xff]
        %v2850 = vld [vmem:[#allocation11 + $0x120] sm:$0xff]
        %v2851 = vld [vmem:[#allocation11 + $0x128] sm:$0xff]
        %v2852 = vld [vmem:[#allocation11 + $0x130] sm:$0xff]
        %v2853 = vld [vmem:[#allocation11 + $0x138] sm:$0xff]
        %v2854 = vld [vmem:[#allocation11 + $0x140] sm:$0xff]
        %v2855 = vld [vmem:[#allocation11 + $0x148] sm:$0xff]
        %v2856 = vld [vmem:[#allocation11 + $0x150] sm:$0xff]
        %v2857 = vld [vmem:[#allocation11 + $0x158] sm:$0xff]
        %v2858 = vld [vmem:[#allocation11 + $0x160] sm:$0xff]
        %v2859 = vld [vmem:[#allocation11 + $0x168] sm:$0xff]
        %v2860 = vld [vmem:[#allocation11 + $0x170] sm:$0xff]
        %v2861 = vld [vmem:[#allocation11 + $0x178] sm:$0xff]
        %v2862 = vld [vmem:[#allocation11 + $0x180] sm:$0xff]
        %v2863 = vld [vmem:[#allocation11 + $0x188] sm:$0xff]
        %v2864 = vld [vmem:[#allocation11 + $0x190] sm:$0xff]
        %v2865 = vld [vmem:[#allocation11 + $0x198] sm:$0xff]
        %v2866 = vld [vmem:[#allocation11 + $0x1a0] sm:$0xff]
        %v2867 = vld [vmem:[#allocation11 + $0x1a8] sm:$0xff]
        %v2868 = vld [vmem:[#allocation11 + $0x1b0] sm:$0xff]
        %v2869 = vld [vmem:[#allocation11 + $0x1b8] sm:$0xff]
        %v2870 = vld [vmem:[#allocation11 + $0x1c0] sm:$0xff]
        %v2871 = vld [vmem:[#allocation11 + $0x1c8] sm:$0xff]
        %v2872 = vld [vmem:[#allocation11 + $0x1d0] sm:$0xff]
        %v2873 = vld [vmem:[#allocation11 + $0x1d8] sm:$0xff]
        %v2874 = vld [vmem:[#allocation11 + $0x1e0] sm:$0xff]
        %v2875 = vld [vmem:[#allocation11 + $0x1e8] sm:$0xff]
        %v2876 = vld [vmem:[#allocation11 + $0x1f0] sm:$0xff]
        %v2877 = vld [vmem:[#allocation11 + $0x1f8] sm:$0xff]
        %v2878 = vld [vmem:[#allocation11 + $0x200] sm:$0xff]
        %v2879 = vld [vmem:[#allocation11 + $0x208] sm:$0xff]
        %v2880 = vld [vmem:[#allocation11 + $0x210] sm:$0xff]
        %v2881 = vld [vmem:[#allocation11 + $0x218] sm:$0xff]
        %v2882 = vld [vmem:[#allocation11 + $0x220] sm:$0xff]
        %v2883 = vld [vmem:[#allocation11 + $0x228] sm:$0xff]
        %v2884 = vld [vmem:[#allocation11 + $0x230] sm:$0xff]
        %v2885 = vld [vmem:[#allocation11 + $0x238] sm:$0xff]
        %v2886 = vld [vmem:[#allocation11 + $0x240] sm:$0xff]
        %v2887 = vld [vmem:[#allocation11 + $0x248] sm:$0xff]
        %v2888 = vld [vmem:[#allocation11 + $0x250] sm:$0xff]
        %v2889 = vld [vmem:[#allocation11 + $0x258] sm:$0xff]
        %v2890 = vld [vmem:[#allocation11 + $0x260] sm:$0xff]
        %v2891 = vld [vmem:[#allocation11 + $0x268] sm:$0xff]
        %v2892 = vld [vmem:[#allocation11 + $0x270] sm:$0xff]
        %v2893 = vld [vmem:[#allocation11 + $0x278] sm:$0xff]
        %v2894 = vld [vmem:[#allocation11 + $0x280] sm:$0xff]
        %v2895 = vld [vmem:[#allocation11 + $0x288] sm:$0xff]
        %v2896 = vld [vmem:[#allocation11 + $0x290] sm:$0xff]
        %v2897 = vld [vmem:[#allocation11 + $0x298] sm:$0xff]
        %v2898 = vld [vmem:[#allocation11 + $0x2a0] sm:$0xff]
        %v2899 = vld [vmem:[#allocation11 + $0x2a8] sm:$0xff]
        %v2900 = vld [vmem:[#allocation11 + $0x2b0] sm:$0xff]
        %v2901 = vld [vmem:[#allocation11 + $0x2b8] sm:$0xff]
        %v2902 = vld [vmem:[#allocation11 + $0x2c0] sm:$0xff]
        %v2903 = vld [vmem:[#allocation11 + $0x2c8] sm:$0xff]
        %v2904 = vld [vmem:[#allocation11 + $0x2d0] sm:$0xff]
        %v2905 = vld [vmem:[#allocation11 + $0x2d8] sm:$0xff]
        %v2906 = vld [vmem:[#allocation11 + $0x2e0] sm:$0xff]
        %v2907 = vld [vmem:[#allocation11 + $0x2e8] sm:$0xff]
        %v2908 = vld [vmem:[#allocation11 + $0x2f0] sm:$0xff]
        %v2909 = vld [vmem:[#allocation11 + $0x2f8] sm:$0xff]
        %v2910 = vld [vmem:[%s9] sm:$0xf]
        %v2912 = vlaneseq
        %v2913 = vshrl.u32 %v2912, 7
        %v2914 = vsub.s32 0, %v2913
        %v2915 = vrot.slane %v2910, %v2914
        %v2916 = vlaneseq
        %v2917 = vshrl.u32 %v2916, 7
        %v2918 = vsub.s32 1, %v2917
        %v2919 = vrot.slane %v2910, %v2918
        %v2920 = vlaneseq
        %v2921 = vshrl.u32 %v2920, 7
        %v2922 = vsub.s32 2, %v2921
        %v2923 = vrot.slane %v2910, %v2922
        %v2924 = vlaneseq
        %v2925 = vshrl.u32 %v2924, 7
        %v2926 = vsub.s32 3, %v2925
        %v2927 = vrot.slane %v2910, %v2926
        %v3028 = vunpack.c.l.b16 %v2814
        %v3029 = vunpack.c.h.b16 %v2814
        %v3030 = vunpack.c.l.b16 %v2815
        %v3031 = vunpack.c.h.b16 %v2815
        %v3032 = vunpack.c.l.b16 %v2816
        %v3033 = vunpack.c.h.b16 %v2816
        %v3034 = vunpack.c.l.b16 %v2817
        %v3035 = vunpack.c.h.b16 %v2817
        %v3036 = vunpack.c.l.b16 %v2818
        %v3037 = vunpack.c.h.b16 %v2818
        %v3038 = vunpack.c.l.b16 %v2819
        %v3039 = vunpack.c.h.b16 %v2819
        %v3040 = vunpack.c.l.b16 %v2820
        %v3041 = vunpack.c.h.b16 %v2820
        %v3042 = vunpack.c.l.b16 %v2821
        %v3043 = vunpack.c.h.b16 %v2821
        %v3044 = vunpack.c.l.b16 %v2822
        %v3045 = vunpack.c.h.b16 %v2822
        %v3046 = vunpack.c.l.b16 %v2823
        %v3047 = vunpack.c.h.b16 %v2823
        %v3048 = vunpack.c.l.b16 %v2824
        %v3049 = vunpack.c.h.b16 %v2824
        %v3050 = vunpack.c.l.b16 %v2825
        %v3051 = vunpack.c.h.b16 %v2825
        %v3052 = vunpack.c.l.b16 %v2826
        %v3053 = vunpack.c.h.b16 %v2826
        %v3054 = vunpack.c.l.b16 %v2827
        %v3055 = vunpack.c.h.b16 %v2827
        %v3056 = vunpack.c.l.b16 %v2828
        %v3057 = vunpack.c.h.b16 %v2828
        %v3058 = vunpack.c.l.b16 %v2829
        %v3059 = vunpack.c.h.b16 %v2829
        %v3060 = vunpack.c.l.b16 %v2830
        %v3061 = vunpack.c.h.b16 %v2830
        %v3062 = vunpack.c.l.b16 %v2831
        %v3063 = vunpack.c.h.b16 %v2831
        %v3064 = vunpack.c.l.b16 %v2832
        %v3065 = vunpack.c.h.b16 %v2832
        %v3066 = vunpack.c.l.b16 %v2833
        %v3067 = vunpack.c.h.b16 %v2833
        %v3068 = vunpack.c.l.b16 %v2834
        %v3069 = vunpack.c.h.b16 %v2834
        %v3070 = vunpack.c.l.b16 %v2835
        %v3071 = vunpack.c.h.b16 %v2835
        %v3072 = vunpack.c.l.b16 %v2836
        %v3073 = vunpack.c.h.b16 %v2836
        %v3074 = vunpack.c.l.b16 %v2837
        %v3075 = vunpack.c.h.b16 %v2837
        %v3076 = vunpack.c.l.b16 %v2838
        %v3077 = vunpack.c.h.b16 %v2838
        %v3078 = vunpack.c.l.b16 %v2839
        %v3079 = vunpack.c.h.b16 %v2839
        %v3080 = vunpack.c.l.b16 %v2840
        %v3081 = vunpack.c.h.b16 %v2840
        %v3082 = vunpack.c.l.b16 %v2841
        %v3083 = vunpack.c.h.b16 %v2841
        %v3084 = vunpack.c.l.b16 %v2842
        %v3085 = vunpack.c.h.b16 %v2842
        %v3086 = vunpack.c.l.b16 %v2843
        %v3087 = vunpack.c.h.b16 %v2843
        %v3088 = vunpack.c.l.b16 %v2844
        %v3089 = vunpack.c.h.b16 %v2844
        %v3090 = vunpack.c.l.b16 %v2845
        %v3091 = vunpack.c.h.b16 %v2845
        %v3092 = vunpack.c.l.b16 %v2846
        %v3093 = vunpack.c.h.b16 %v2846
        %v3094 = vunpack.c.l.b16 %v2847
        %v3095 = vunpack.c.h.b16 %v2847
        %v3096 = vunpack.c.l.b16 %v2848
        %v3097 = vunpack.c.h.b16 %v2848
        %v3098 = vunpack.c.l.b16 %v2849
        %v3099 = vunpack.c.h.b16 %v2849
        %v3100 = vunpack.c.l.b16 %v2850
        %v3101 = vunpack.c.h.b16 %v2850
        %v3102 = vunpack.c.l.b16 %v2851
        %v3103 = vunpack.c.h.b16 %v2851
        %v3104 = vunpack.c.l.b16 %v2852
        %v3105 = vunpack.c.h.b16 %v2852
        %v3106 = vunpack.c.l.b16 %v2853
        %v3107 = vunpack.c.h.b16 %v2853
        %v3108 = vunpack.c.l.b16 %v2854
        %v3109 = vunpack.c.h.b16 %v2854
        %v3110 = vunpack.c.l.b16 %v2855
        %v3111 = vunpack.c.h.b16 %v2855
        %v3112 = vunpack.c.l.b16 %v2856
        %v3113 = vunpack.c.h.b16 %v2856
        %v3114 = vunpack.c.l.b16 %v2857
        %v3115 = vunpack.c.h.b16 %v2857
        %v3116 = vunpack.c.l.b16 %v2858
        %v3117 = vunpack.c.h.b16 %v2858
        %v3118 = vunpack.c.l.b16 %v2859
        %v3119 = vunpack.c.h.b16 %v2859
        %v3120 = vunpack.c.l.b16 %v2860
        %v3121 = vunpack.c.h.b16 %v2860
        %v3122 = vunpack.c.l.b16 %v2861
        %v3123 = vunpack.c.h.b16 %v2861
        %v3124 = vunpack.c.l.b16 %v2862
        %v3125 = vunpack.c.h.b16 %v2862
        %v3126 = vunpack.c.l.b16 %v2863
        %v3127 = vunpack.c.h.b16 %v2863
        %v3128 = vunpack.c.l.b16 %v2864
        %v3129 = vunpack.c.h.b16 %v2864
        %v3130 = vunpack.c.l.b16 %v2865
        %v3131 = vunpack.c.h.b16 %v2865
        %v3132 = vunpack.c.l.b16 %v2866
        %v3133 = vunpack.c.h.b16 %v2866
        %v3134 = vunpack.c.l.b16 %v2867
        %v3135 = vunpack.c.h.b16 %v2867
        %v3136 = vunpack.c.l.b16 %v2868
        %v3137 = vunpack.c.h.b16 %v2868
        %v3138 = vunpack.c.l.b16 %v2869
        %v3139 = vunpack.c.h.b16 %v2869
        %v3140 = vunpack.c.l.b16 %v2870
        %v3141 = vunpack.c.h.b16 %v2870
        %v3142 = vunpack.c.l.b16 %v2871
        %v3143 = vunpack.c.h.b16 %v2871
        %v3144 = vunpack.c.l.b16 %v2872
        %v3145 = vunpack.c.h.b16 %v2872
        %v3146 = vunpack.c.l.b16 %v2873
        %v3147 = vunpack.c.h.b16 %v2873
        %v3148 = vunpack.c.l.b16 %v2874
        %v3149 = vunpack.c.h.b16 %v2874
        %v3150 = vunpack.c.l.b16 %v2875
        %v3151 = vunpack.c.h.b16 %v2875
        %v3152 = vunpack.c.l.b16 %v2876
        %v3153 = vunpack.c.h.b16 %v2876
        %v3154 = vunpack.c.l.b16 %v2877
        %v3155 = vunpack.c.h.b16 %v2877
        %v3156 = vunpack.c.l.b16 %v2878
        %v3157 = vunpack.c.h.b16 %v2878
        %v3158 = vunpack.c.l.b16 %v2879
        %v3159 = vunpack.c.h.b16 %v2879
        %v3160 = vunpack.c.l.b16 %v2880
        %v3161 = vunpack.c.h.b16 %v2880
        %v3162 = vunpack.c.l.b16 %v2881
        %v3163 = vunpack.c.h.b16 %v2881
        %v3164 = vunpack.c.l.b16 %v2882
        %v3165 = vunpack.c.h.b16 %v2882
        %v3166 = vunpack.c.l.b16 %v2883
        %v3167 = vunpack.c.h.b16 %v2883
        %v3168 = vunpack.c.l.b16 %v2884
        %v3169 = vunpack.c.h.b16 %v2884
        %v3170 = vunpack.c.l.b16 %v2885
        %v3171 = vunpack.c.h.b16 %v2885
        %v3172 = vunpack.c.l.b16 %v2886
        %v3173 = vunpack.c.h.b16 %v2886
        %v3174 = vunpack.c.l.b16 %v2887
        %v3175 = vunpack.c.h.b16 %v2887
        %v3176 = vunpack.c.l.b16 %v2888
        %v3177 = vunpack.c.h.b16 %v2888
        %v3178 = vunpack.c.l.b16 %v2889
        %v3179 = vunpack.c.h.b16 %v2889
        %v3180 = vunpack.c.l.b16 %v2890
        %v3181 = vunpack.c.h.b16 %v2890
        %v3182 = vunpack.c.l.b16 %v2891
        %v3183 = vunpack.c.h.b16 %v2891
        %v3184 = vunpack.c.l.b16 %v2892
        %v3185 = vunpack.c.h.b16 %v2892
        %v3186 = vunpack.c.l.b16 %v2893
        %v3187 = vunpack.c.h.b16 %v2893
        %v3188 = vunpack.c.l.b16 %v2894
        %v3189 = vunpack.c.h.b16 %v2894
        %v3190 = vunpack.c.l.b16 %v2895
        %v3191 = vunpack.c.h.b16 %v2895
        %v3192 = vunpack.c.l.b16 %v2896
        %v3193 = vunpack.c.h.b16 %v2896
        %v3194 = vunpack.c.l.b16 %v2897
        %v3195 = vunpack.c.h.b16 %v2897
        %v3196 = vunpack.c.l.b16 %v2898
        %v3197 = vunpack.c.h.b16 %v2898
        %v3198 = vunpack.c.l.b16 %v2899
        %v3199 = vunpack.c.h.b16 %v2899
        %v3200 = vunpack.c.l.b16 %v2900
        %v3201 = vunpack.c.h.b16 %v2900
        %v3202 = vunpack.c.l.b16 %v2901
        %v3203 = vunpack.c.h.b16 %v2901
        %v3204 = vunpack.c.l.b16 %v2902
        %v3205 = vunpack.c.h.b16 %v2902
        %v3206 = vunpack.c.l.b16 %v2903
        %v3207 = vunpack.c.h.b16 %v2903
        %v3208 = vunpack.c.l.b16 %v2904
        %v3209 = vunpack.c.h.b16 %v2904
        %v3210 = vunpack.c.l.b16 %v2905
        %v3211 = vunpack.c.h.b16 %v2905
        %v3212 = vunpack.c.l.b16 %v2906
        %v3213 = vunpack.c.h.b16 %v2906
        %v3214 = vunpack.c.l.b16 %v2907
        %v3215 = vunpack.c.h.b16 %v2907
        %v3216 = vunpack.c.l.b16 %v2908
        %v3217 = vunpack.c.h.b16 %v2908
        %v3218 = vunpack.c.l.b16 %v2909
        %v3219 = vunpack.c.h.b16 %v2909
        %v3220 = vpack.c.b16 %v3032, %v3028
        %v3221 = vpack.c.b16 %v3033, %v3029
        %v3222 = vpack.c.b16 %v3034, %v3030
        %v3223 = vpack.c.b16 %v3035, %v3031
        %v3224 = vpack.c.b16 %v3040, %v3036
        %v3225 = vpack.c.b16 %v3041, %v3037
        %v3226 = vpack.c.b16 %v3042, %v3038
        %v3227 = vpack.c.b16 %v3043, %v3039
        %v3228 = vpack.c.b16 %v3048, %v3044
        %v3229 = vpack.c.b16 %v3049, %v3045
        %v3230 = vpack.c.b16 %v3050, %v3046
        %v3231 = vpack.c.b16 %v3051, %v3047
        %v3232 = vpack.c.b16 %v3056, %v3052
        %v3233 = vpack.c.b16 %v3057, %v3053
        %v3234 = vpack.c.b16 %v3058, %v3054
        %v3235 = vpack.c.b16 %v3059, %v3055
        %v3236 = vpack.c.b16 %v3064, %v3060
        %v3237 = vpack.c.b16 %v3065, %v3061
        %v3238 = vpack.c.b16 %v3066, %v3062
        %v3239 = vpack.c.b16 %v3067, %v3063
        %v3240 = vpack.c.b16 %v3072, %v3068
        %v3241 = vpack.c.b16 %v3073, %v3069
        %v3242 = vpack.c.b16 %v3074, %v3070
        %v3243 = vpack.c.b16 %v3075, %v3071
        %v3244 = vpack.c.b16 %v3080, %v3076
        %v3245 = vpack.c.b16 %v3081, %v3077
        %v3246 = vpack.c.b16 %v3082, %v3078
        %v3247 = vpack.c.b16 %v3083, %v3079
        %v3248 = vpack.c.b16 %v3088, %v3084
        %v3249 = vpack.c.b16 %v3089, %v3085
        %v3250 = vpack.c.b16 %v3090, %v3086
        %v3251 = vpack.c.b16 %v3091, %v3087
        %v3252 = vpack.c.b16 %v3096, %v3092
        %v3253 = vpack.c.b16 %v3097, %v3093
        %v3254 = vpack.c.b16 %v3098, %v3094
        %v3255 = vpack.c.b16 %v3099, %v3095
        %v3256 = vpack.c.b16 %v3104, %v3100
        %v3257 = vpack.c.b16 %v3105, %v3101
        %v3258 = vpack.c.b16 %v3106, %v3102
        %v3259 = vpack.c.b16 %v3107, %v3103
        %v3260 = vpack.c.b16 %v3112, %v3108
        %v3261 = vpack.c.b16 %v3113, %v3109
        %v3262 = vpack.c.b16 %v3114, %v3110
        %v3263 = vpack.c.b16 %v3115, %v3111
        %v3264 = vpack.c.b16 %v3120, %v3116
        %v3265 = vpack.c.b16 %v3121, %v3117
        %v3266 = vpack.c.b16 %v3122, %v3118
        %v3267 = vpack.c.b16 %v3123, %v3119
        %v3268 = vpack.c.b16 %v3128, %v3124
        %v3269 = vpack.c.b16 %v3129, %v3125
        %v3270 = vpack.c.b16 %v3130, %v3126
        %v3271 = vpack.c.b16 %v3131, %v3127
        %v3272 = vpack.c.b16 %v3136, %v3132
        %v3273 = vpack.c.b16 %v3137, %v3133
        %v3274 = vpack.c.b16 %v3138, %v3134
        %v3275 = vpack.c.b16 %v3139, %v3135
        %v3276 = vpack.c.b16 %v3144, %v3140
        %v3277 = vpack.c.b16 %v3145, %v3141
        %v3278 = vpack.c.b16 %v3146, %v3142
        %v3279 = vpack.c.b16 %v3147, %v3143
        %v3280 = vpack.c.b16 %v3152, %v3148
        %v3281 = vpack.c.b16 %v3153, %v3149
        %v3282 = vpack.c.b16 %v3154, %v3150
        %v3283 = vpack.c.b16 %v3155, %v3151
        %v3284 = vpack.c.b16 %v3160, %v3156
        %v3285 = vpack.c.b16 %v3161, %v3157
        %v3286 = vpack.c.b16 %v3162, %v3158
        %v3287 = vpack.c.b16 %v3163, %v3159
        %v3288 = vpack.c.b16 %v3168, %v3164
        %v3289 = vpack.c.b16 %v3169, %v3165
        %v3290 = vpack.c.b16 %v3170, %v3166
        %v3291 = vpack.c.b16 %v3171, %v3167
        %v3292 = vpack.c.b16 %v3176, %v3172
        %v3293 = vpack.c.b16 %v3177, %v3173
        %v3294 = vpack.c.b16 %v3178, %v3174
        %v3295 = vpack.c.b16 %v3179, %v3175
        %v3296 = vpack.c.b16 %v3184, %v3180
        %v3297 = vpack.c.b16 %v3185, %v3181
        %v3298 = vpack.c.b16 %v3186, %v3182
        %v3299 = vpack.c.b16 %v3187, %v3183
        %v3300 = vpack.c.b16 %v3192, %v3188
        %v3301 = vpack.c.b16 %v3193, %v3189
        %v3302 = vpack.c.b16 %v3194, %v3190
        %v3303 = vpack.c.b16 %v3195, %v3191
        %v3304 = vpack.c.b16 %v3200, %v3196
        %v3305 = vpack.c.b16 %v3201, %v3197
        %v3306 = vpack.c.b16 %v3202, %v3198
        %v3307 = vpack.c.b16 %v3203, %v3199
        %v3308 = vpack.c.b16 %v3208, %v3204
        %v3309 = vpack.c.b16 %v3209, %v3205
        %v3310 = vpack.c.b16 %v3210, %v3206
        %v3311 = vpack.c.b16 %v3211, %v3207
        %v3312 = vpack.c.b16 %v3216, %v3212
        %v3313 = vpack.c.b16 %v3217, %v3213
        %v3314 = vpack.c.b16 %v3218, %v3214
        %v3315 = vpack.c.b16 %v3219, %v3215
        %3412 = vmatprep.subr.bf16.mxu0 %v3221
        %3413 = vmatpush1.bf16.msra.mxu0 %v3220
        %3414 = vmatprep.subr.bf16.mxu0 %v3225
        %3415 = vmatpush1.bf16.msra.mxu0 %v3224
        %3416 = vmatprep.subr.bf16.mxu0 %v3229
        %3417 = vmatpush1.bf16.msra.mxu0 %v3228
        %3418 = vmatprep.subr.bf16.mxu0 %v3233
        %3419 = vmatpush1.bf16.msra.mxu0 %v3232
        %3420 = vmatprep.subr.bf16.mxu0 %v3237
        %3421 = vmatpush1.bf16.msra.mxu0 %v3236
        %3422 = vmatprep.subr.bf16.mxu0 %v3241
        %3423 = vmatpush1.bf16.msra.mxu0 %v3240
        %3424 = vmatprep.subr.bf16.mxu0 %v3245
        %3425 = vmatpush1.bf16.msra.mxu0 %v3244
        %3426 = vmatprep.subr.bf16.mxu0 %v3249
        %3427 = vmatpush1.bf16.msra.mxu0 %v3248
        %3428 = vmatprep.subr.bf16.mxu0 %v3253
        %3429 = vmatpush1.bf16.msra.mxu0 %v3252
        %3430 = vmatprep.subr.bf16.mxu0 %v3257
        %3431 = vmatpush1.bf16.msra.mxu0 %v3256
        %3432 = vmatprep.subr.bf16.mxu0 %v3261
        %3433 = vmatpush1.bf16.msra.mxu0 %v3260
        %3434 = vmatprep.subr.bf16.mxu0 %v3265
        %3435 = vmatpush1.bf16.msra.mxu0 %v3264
        %3436 = vmatprep.subr.bf16.mxu0 %v3269
        %3437 = vmatpush1.bf16.msra.mxu0 %v3268
        %3438 = vmatprep.subr.bf16.mxu0 %v3273
        %3439 = vmatpush1.bf16.msra.mxu0 %v3272
        %3440 = vmatprep.subr.bf16.mxu0 %v3277
        %3441 = vmatpush1.bf16.msra.mxu0 %v3276
        %3442 = vmatprep.subr.bf16.mxu0 %v3281
        %3443 = vmatpush1.bf16.msra.mxu0 %v3280
        %3444 = vmatprep.mubr.bf16.mxu0 %v2809
        %3445 = vmatmul.mubr.bf16.gmra.mrb[0].mxu0 %v2808
        %v3446 = vpop.f32.mrb[0].mxu0
        %v3447 = vadd.f32 %v2915, %v3446
        %v3448 = vpop.f32.mrb[0].mxu0
        %v3449 = vadd.f32 %v2919, %v3448
        %v3450 = vpop.f32.mrb[0].mxu0
        %v3451 = vadd.f32 %v2915, %v3450
        %v3452 = vpop.f32.mrb[0].mxu0
        %v3453 = vadd.f32 %v2919, %v3452
        %3454 = vmatprep.mubr.bf16.mxu0 %v2812
        %3455 = vmatmul.mubr.bf16.gmra.mrb[0].mxu0 %v2811
        %v3456 = vpop.f32.mrb[0].mxu0
        %v3457 = vadd.f32 %v2915, %v3456
        %v3458 = vpop.f32.mrb[0].mxu0
        %v3459 = vadd.f32 %v2919, %v3458
        %v3460 = vpop.f32.mrb[0].mxu0
        %v3461 = vadd.f32 %v2915, %v3460
        %v3462 = vpop.f32.mrb[0].mxu0
        %v3463 = vadd.f32 %v2919, %v3462
        %3464 = vdwg.mxu0
        %3465 = vmatprep.subr.bf16.mxu0 %v3285
        %3466 = vmatpush1.bf16.msra.mxu0 %v3284
        %3467 = vmatprep.subr.bf16.mxu0 %v3289
        %3468 = vmatpush1.bf16.msra.mxu0 %v3288
        %3469 = vmatprep.subr.bf16.mxu0 %v3293
        %3470 = vmatpush1.bf16.msra.mxu0 %v3292
        %3471 = vmatprep.subr.bf16.mxu0 %v3297
        %3472 = vmatpush1.bf16.msra.mxu0 %v3296
        %3473 = vmatprep.subr.bf16.mxu0 %v3301
        %3474 = vmatpush1.bf16.msra.mxu0 %v3300
        %3475 = vmatprep.subr.bf16.mxu0 %v3305
        %3476 = vmatpush1.bf16.msra.mxu0 %v3304
        %3477 = vmatprep.subr.bf16.mxu0 %v3309
        %3478 = vmatpush1.bf16.msra.mxu0 %v3308
        %3479 = vmatprep.subr.bf16.mxu0 %v3313
        %3480 = vmatpush1.bf16.msra.mxu0 %v3312
        %3481 = vmatprep.subr.bf16.mxu0 0
        %3482 = vmatpush1.bf16.msra.mxu0 0
        %3483 = vmatprep.subr.bf16.mxu0 0
        %3484 = vmatpush1.bf16.msra.mxu0 0
        %3485 = vmatprep.subr.bf16.mxu0 0
        %3486 = vmatpush1.bf16.msra.mxu0 0
        %3487 = vmatprep.subr.bf16.mxu0 0
        %3488 = vmatpush1.bf16.msra.mxu0 0
        %3489 = vmatprep.subr.bf16.mxu0 0
        %3490 = vmatpush1.bf16.msra.mxu0 0
        %3491 = vmatprep.subr.bf16.mxu0 0
        %3492 = vmatpush1.bf16.msra.mxu0 0
        %3493 = vmatprep.subr.bf16.mxu0 0
        %3494 = vmatpush1.bf16.msra.mxu0 0
        %3495 = vmatprep.subr.bf16.mxu0 0
        %3496 = vmatpush1.bf16.msra.mxu0 0
        %3497 = vmatprep.mubr.bf16.mxu0 0
        %3498 = vmatmul.mubr.bf16.gmra.mrb[0].mxu0 %v2810
        %v3499 = vpop.f32.mrb[0].mxu0
        %v3500 = vadd.f32 %v3447, %v3499
        %v3501 = vpop.f32.mrb[0].mxu0
        %v3502 = vadd.f32 %v3449, %v3501
        %v3503 = vpop.f32.mrb[0].mxu0
        %v3504 = vadd.f32 %v3451, %v3503
        %v3505 = vpop.f32.mrb[0].mxu0
        %v3506 = vadd.f32 %v3453, %v3505
        %3507 = vmatprep.mubr.bf16.mxu0 0
        %3508 = vmatmul.mubr.bf16.gmra.mrb[0].mxu0 %v2813
        %v3509 = vpop.f32.mrb[0].mxu0
        %v3510 = vadd.f32 %v3457, %v3509
        %v3511 = vpop.f32.mrb[0].mxu0
        %v3512 = vadd.f32 %v3459, %v3511
        %v3513 = vpop.f32.mrb[0].mxu0
        %v3514 = vadd.f32 %v3461, %v3513
        %v3515 = vpop.f32.mrb[0].mxu0
        %v3516 = vadd.f32 %v3463, %v3515
        %3517 = vdwg.mxu0
        %3518 = vmatprep.subr.bf16.mxu0 %v3223
        %3519 = vmatpush1.bf16.msra.mxu0 %v3222
        %3520 = vmatprep.subr.bf16.mxu0 %v3227
        %3521 = vmatpush1.bf16.msra.mxu0 %v3226
        %3522 = vmatprep.subr.bf16.mxu0 %v3231
        %3523 = vmatpush1.bf16.msra.mxu0 %v3230
        %3524 = vmatprep.subr.bf16.mxu0 %v3235
        %3525 = vmatpush1.bf16.msra.mxu0 %v3234
        %3526 = vmatprep.subr.bf16.mxu0 %v3239
        %3527 = vmatpush1.bf16.msra.mxu0 %v3238
        %3528 = vmatprep.subr.bf16.mxu0 %v3243
        %3529 = vmatpush1.bf16.msra.mxu0 %v3242
        %3530 = vmatprep.subr.bf16.mxu0 %v3247
        %3531 = vmatpush1.bf16.msra.mxu0 %v3246
        %3532 = vmatprep.subr.bf16.mxu0 %v3251
        %3533 = vmatpush1.bf16.msra.mxu0 %v3250
        %3534 = vmatprep.subr.bf16.mxu0 %v3255
        %3535 = vmatpush1.bf16.msra.mxu0 %v3254
        %3536 = vmatprep.subr.bf16.mxu0 %v3259
        %3537 = vmatpush1.bf16.msra.mxu0 %v3258
        %3538 = vmatprep.subr.bf16.mxu0 %v3263
        %3539 = vmatpush1.bf16.msra.mxu0 %v3262
        %3540 = vmatprep.subr.bf16.mxu0 %v3267
        %3541 = vmatpush1.bf16.msra.mxu0 %v3266
        %3542 = vmatprep.subr.bf16.mxu0 %v3271
        %3543 = vmatpush1.bf16.msra.mxu0 %v3270
        %3544 = vmatprep.subr.bf16.mxu0 %v3275
        %3545 = vmatpush1.bf16.msra.mxu0 %v3274
        %3546 = vmatprep.subr.bf16.mxu0 %v3279
        %3547 = vmatpush1.bf16.msra.mxu0 %v3278
        %3548 = vmatprep.subr.bf16.mxu0 %v3283
        %3549 = vmatpush1.bf16.msra.mxu0 %v3282
        %3550 = vmatprep.mubr.bf16.mxu0 %v2809
        %3551 = vmatmul.mubr.bf16.gmra.mrb[0].mxu0 %v2808
        %v3552 = vpop.f32.mrb[0].mxu0
        %v3553 = vadd.f32 %v2923, %v3552
        %v3554 = vpop.f32.mrb[0].mxu0
        %v3555 = vadd.f32 %v2927, %v3554
        %v3556 = vpop.f32.mrb[0].mxu0
        %v3557 = vadd.f32 %v2923, %v3556
        %v3558 = vpop.f32.mrb[0].mxu0
        %v3559 = vadd.f32 %v2927, %v3558
        %3560 = vmatprep.mubr.bf16.mxu0 %v2812
        %3561 = vmatmul.mubr.bf16.gmra.mrb[0].mxu0 %v2811
        %v3562 = vpop.f32.mrb[0].mxu0
        %v3563 = vadd.f32 %v2923, %v3562
        %v3564 = vpop.f32.mrb[0].mxu0
        %v3565 = vadd.f32 %v2927, %v3564
        %v3566 = vpop.f32.mrb[0].mxu0
        %v3567 = vadd.f32 %v2923, %v3566
        %v3568 = vpop.f32.mrb[0].mxu0
        %v3569 = vadd.f32 %v2927, %v3568
        %3570 = vdwg.mxu0
        %3571 = vmatprep.subr.bf16.mxu0 %v3287
        %3572 = vmatpush1.bf16.msra.mxu0 %v3286
        %3573 = vmatprep.subr.bf16.mxu0 %v3291
        %3574 = vmatpush1.bf16.msra.mxu0 %v3290
        %3575 = vmatprep.subr.bf16.mxu0 %v3295
        %3576 = vmatpush1.bf16.msra.mxu0 %v3294
        %3577 = vmatprep.subr.bf16.mxu0 %v3299
        %3578 = vmatpush1.bf16.msra.mxu0 %v3298
        %3579 = vmatprep.subr.bf16.mxu0 %v3303
        %3580 = vmatpush1.bf16.msra.mxu0 %v3302
        %3581 = vmatprep.subr.bf16.mxu0 %v3307
        %3582 = vmatpush1.bf16.msra.mxu0 %v3306
        %3583 = vmatprep.subr.bf16.mxu0 %v3311
        %3584 = vmatpush1.bf16.msra.mxu0 %v3310
        %3585 = vmatprep.subr.bf16.mxu0 %v3315
        %3586 = vmatpush1.bf16.msra.mxu0 %v3314
        %3587 = vmatprep.subr.bf16.mxu0 0
        %3588 = vmatpush1.bf16.msra.mxu0 0
        %3589 = vmatprep.subr.bf16.mxu0 0
        %3590 = vmatpush1.bf16.msra.mxu0 0
        %3591 = vmatprep.subr.bf16.mxu0 0
        %3592 = vmatpush1.bf16.msra.mxu0 0
        %3593 = vmatprep.subr.bf16.mxu0 0
        %3594 = vmatpush1.bf16.msra.mxu0 0
        %3595 = vmatprep.subr.bf16.mxu0 0
        %3596 = vmatpush1.bf16.msra.mxu0 0
        %3597 = vmatprep.subr.bf16.mxu0 0
        %3598 = vmatpush1.bf16.msra.mxu0 0
        %3599 = vmatprep.subr.bf16.mxu0 0
        %3600 = vmatpush1.bf16.msra.mxu0 0
        %3601 = vmatprep.subr.bf16.mxu0 0
        %3602 = vmatpush1.bf16.msra.mxu0 0
        %3603 = vmatprep.mubr.bf16.mxu0 0
        %3604 = vmatmul.mubr.bf16.gmra.mrb[0].mxu0 %v2810
        %v3605 = vpop.f32.mrb[0].mxu0
        %v3606 = vadd.f32 %v3553, %v3605
        %v3607 = vpop.f32.mrb[0].mxu0
        %v3608 = vadd.f32 %v3555, %v3607
        %v3609 = vpop.f32.mrb[0].mxu0
        %v3610 = vadd.f32 %v3557, %v3609
        %v3611 = vpop.f32.mrb[0].mxu0
        %v3612 = vadd.f32 %v3559, %v3611
        %3613 = vmatprep.mubr.bf16.mxu0 0
        %3614 = vmatmul.mubr.bf16.gmra.mrb[0].mxu0 %v2813
        %v3615 = vpop.f32.mrb[0].mxu0
        %v3616 = vadd.f32 %v3563, %v3615
        %v3617 = vpop.f32.mrb[0].mxu0
        %v3618 = vadd.f32 %v3565, %v3617
        %v3619 = vpop.f32.mrb[0].mxu0
        %v3620 = vadd.f32 %v3567, %v3619
        %v3621 = vpop.f32.mrb[0].mxu0
        %v3622 = vadd.f32 %v3569, %v3621
        %3623 = vdwg.mxu0
        %v3624 = vpack.c.bf16 %v3504, %v3500
        %v3625 = vpack.c.bf16 %v3506, %v3502
        %v3626 = vpack.c.bf16 %v3610, %v3606
        %v3627 = vpack.c.bf16 %v3612, %v3608
        %v3628 = vpack.c.bf16 %v3514, %v3510
        %v3629 = vpack.c.bf16 %v3516, %v3512
        %v3630 = vpack.c.bf16 %v3620, %v3616
        %v3631 = vpack.c.bf16 %v3622, %v3618
        %v3632 = vtanh.bf16.pop %v3624
        %v3633 = vtanh.bf16.pop %v3625
        %v3634 = vtanh.bf16.pop %v3626
        %v3635 = vtanh.bf16.pop %v3627
        %v3636 = vtanh.bf16.pop %v3628
        %v3637 = vtanh.bf16.pop %v3629
        %v3638 = vtanh.bf16.pop %v3630
        %v3639 = vtanh.bf16.pop %v3631
        %v3648 = vunpack.c.l.b16 %v3632
        %v3649 = vunpack.c.l.b16 %v3633
        %v3650 = vunpack.c.l.b16 %v3634
        %v3651 = vunpack.c.l.b16 %v3635
        %v3652 = vunpack.c.h.b16 %v3632
        %v3653 = vunpack.c.h.b16 %v3633
        %v3654 = vunpack.c.h.b16 %v3634
        %v3655 = vunpack.c.h.b16 %v3635
        %v3656 = vunpack.c.l.b16 %v3636
        %v3657 = vunpack.c.l.b16 %v3637
        %v3658 = vunpack.c.l.b16 %v3638
        %v3659 = vunpack.c.l.b16 %v3639
        %v3660 = vunpack.c.h.b16 %v3636
        %v3661 = vunpack.c.h.b16 %v3637
        %v3662 = vunpack.c.h.b16 %v3638
        %v3663 = vunpack.c.h.b16 %v3639
        %v3664 = vpack.c.b16 %v3649, %v3648
        %v3665 = vpack.c.b16 %v3651, %v3650
        %v3666 = vpack.c.b16 %v3653, %v3652
        %v3667 = vpack.c.b16 %v3655, %v3654
        %v3668 = vpack.c.b16 %v3657, %v3656
        %v3669 = vpack.c.b16 %v3659, %v3658
        %v3670 = vpack.c.b16 %v3661, %v3660
        %v3671 = vpack.c.b16 %v3663, %v3662
        %3680 = vst [vmem:[%s535] sm:$0xff] %v3664
        %3681 = vst [vmem:[%s535 + $0x8] sm:$0xff] %v3665
        %3682 = vst [vmem:[%s535 + $0x10] sm:$0xff] %v3666
        %3683 = vst [vmem:[%s535 + $0x18] sm:$0xff] %v3667
        %3684 = vst [vmem:[%s535 + $0x20] sm:$0xff] %v3668
        %3685 = vst [vmem:[%s535 + $0x28] sm:$0xff] %v3669
        %3686 = vst [vmem:[%s535 + $0x30] sm:$0xff] %v3670
        %3687 = vst [vmem:[%s535 + $0x38] sm:$0xff] %v3671
        %3688 = vst [vmem:[%s542] sm:$0xff] %v2169
        %3689 = vst [vmem:[%s542 + $0x8] sm:$0xff] %v2171
        %3690 = vst [vmem:[%s542 + $0x10] sm:$0xff] %v2173
        %3691 = vst [vmem:[%s542 + $0x18] sm:$0xff] %v2175
        %3692 = vst [vmem:[%s542 + $0x20] sm:$0xff] %v2179
        %3693 = vst [vmem:[%s542 + $0x28] sm:$0xff] %v2181
        %3694 = vst [vmem:[%s542 + $0x30] sm:$0xff] %v2183
        %3695 = vst [vmem:[%s542 + $0x38] sm:$0xff] %v2185
        %3696 = vst [vmem:[%s549] sm:$0xff] %v2275
        %3697 = vst [vmem:[%s549 + $0x8] sm:$0xff] %v2277
        %3698 = vst [vmem:[%s549 + $0x10] sm:$0xff] %v2279
        %3699 = vst [vmem:[%s549 + $0x18] sm:$0xff] %v2281
        %3700 = vst [vmem:[%s549 + $0x20] sm:$0xff] %v2285
        %3701 = vst [vmem:[%s549 + $0x28] sm:$0xff] %v2287
        %3702 = vst [vmem:[%s549 + $0x30] sm:$0xff] %v2289
        %3703 = vst [vmem:[%s549 + $0x38] sm:$0xff] %v2291
        %s3704 = sand.u32 %s266, 1
        %s3705 = scalar_lea.sflag [#allocation4], %s3704
        %s3706 = sand.u32 %s266, 1
        %s3707 = smul.addr %s3706, 64
        %s3708 = scalar_lea.vmem [#allocation13], %s3707
        %s3709 = sand.u32 %s38, 1
        %s3710 = scalar_lea.sflag [#allocation15], %s3709
        %s3711 = sand.u32 %s292, 1
        %s3712 = smul.addr %s3711, 64
        %s3713 = scalar_lea.vmem [#allocation14], %s3712
        %s3714 = sand.u32 %s38, 1
        %s3715 = scalar_lea.sflag [#allocation15], %s3714
        %s3716 = sand.u32 %s318, 1
        %s3717 = smul.addr %s3716, 64
        %s3718 = scalar_lea.vmem [#allocation16], %s3717
        // Predicated region
        $region85: #{tpu_custom_call.1} parent=59 // pred_check
          %p3719 = pneg %p276
        $region86: #{tpu_custom_call.1} parent=59 // pred_check_branch
          %3721 = sbr.rel (%p3719) target = $region88
        $region87: #{tpu_custom_call.1} parent=59 // pred_region
          %s3722 = smul.u32 4, %s38
          %s3724 = ssub.s32 1024, 1024
          %3725 = vsyncadd %s3705, %s3724
          %s3726 = smul.addr %s3722, 4
          %s3727 = smul.addr %s3726, 64
          %s3728 = scalar_lea.hbm %s10, %s3727
          %s3729 = sshll.u32 %s3708, 4
          %s3730 = int_to_ptr.vmem [resolvable:$true] %s3729
          %3735 = dma.vmem_to_hbm [thread:$0]  %s3730, 1024, %s3728, %s3705, 256, 256, 16
        $region88: #{tpu_custom_call.1} parent=59 // pred_fallthru
          _
        // Predicated region
        $region89: #{tpu_custom_call.1} parent=59 // pred_check
          %p3736 = pneg %p302
        $region90: #{tpu_custom_call.1} parent=59 // pred_check_branch
          %3738 = sbr.rel (%p3736) target = $region92
        $region91: #{tpu_custom_call.1} parent=59 // pred_region
          %s3739 = smul.u32 4, %s38
          %s3741 = ssub.s32 1024, 1024
          %3742 = vsyncadd %s3710, %s3741
          %s3743 = smul.addr %s3739, 2
          %s3744 = smul.addr %s3743, 128
          %s3745 = scalar_lea.hbm %s11, %s3744
          %s3746 = sshll.u32 %s3713, 4
          %s3747 = int_to_ptr.vmem [resolvable:$true] %s3746
          %3752 = dma.vmem_to_hbm [thread:$0]  %s3747, 1024, %s3745, %s3710, 256, 256, 16
        $region92: #{tpu_custom_call.1} parent=59 // pred_fallthru
          _
        // Predicated region
        $region93: #{tpu_custom_call.1} parent=59 // pred_check
          %p3753 = pneg %p328
        $region94: #{tpu_custom_call.1} parent=59 // pred_check_branch
          %3755 = sbr.rel (%p3753) target = $region96
        $region95: #{tpu_custom_call.1} parent=59 // pred_region
          %s3756 = smul.u32 4, %s38
          %s3758 = ssub.s32 1024, 1024
          %3759 = vsyncadd %s3715, %s3758
          %s3760 = smul.addr %s3756, 2
          %s3761 = smul.addr %s3760, 128
          %s3762 = scalar_lea.hbm %s12, %s3761
          %s3763 = sshll.u32 %s3718, 4
          %s3764 = int_to_ptr.vmem [resolvable:$true] %s3763
          %3769 = dma.vmem_to_hbm [thread:$0]  %s3764, 1024, %s3762, %s3715, 256, 256, 16
        $region96: #{tpu_custom_call.1} parent=59 // pred_fallthru
          _
      $region60: #{tpu_custom_call.1} parent=5 // pred_fallthru
        _
      %p3770 = scmp.le.s32.totalorder 2, %s33
      // Predicated region
      $region97: #{tpu_custom_call.1} parent=5 // pred_check
        %p3771 = pneg %p3770
      $region98: #{tpu_custom_call.1} parent=5 // pred_check_branch
        %3773 = sbr.rel (%p3771) target = $region100
      $region99: #{tpu_custom_call.1} parent=5 // pred_region
        %s3774 = ssub.s32 %s33, 2
        // Predicated region
        $region101: #{tpu_custom_call.1} parent=99 // pred_check
          %p3775 = pneg %p282
        $region102: #{tpu_custom_call.1} parent=99 // pred_check_branch
          %3777 = sbr.rel (%p3775) target = $region104
        $region103: #{tpu_custom_call.1} parent=99 // pred_region
          %s3778 = sand.u32 %s267, 1
          %s3779 = scalar_lea.sflag [#allocation4], %s3778
          %s3780 = sand.u32 %s267, 1
          %s3781 = smul.addr %s3780, 64
          %s3782 = scalar_lea.vmem [#allocation13], %s3781
          %3783 = dma.done %s3779, 1024
        $region104: #{tpu_custom_call.1} parent=99 // pred_fallthru
          _
        // Predicated region
        $region105: #{tpu_custom_call.1} parent=99 // pred_check
          %p3784 = pneg %p308
        $region106: #{tpu_custom_call.1} parent=99 // pred_check_branch
          %3786 = sbr.rel (%p3784) target = $region108
        $region107: #{tpu_custom_call.1} parent=99 // pred_region
          %s3787 = sand.u32 %s39, 1
          %s3788 = scalar_lea.sflag [#allocation15], %s3787
          %s3789 = sand.u32 %s293, 1
          %s3790 = smul.addr %s3789, 64
          %s3791 = scalar_lea.vmem [#allocation14], %s3790
          %3792 = dma.done %s3788, 1024
        $region108: #{tpu_custom_call.1} parent=99 // pred_fallthru
          _
        // Predicated region
        $region109: #{tpu_custom_call.1} parent=99 // pred_check
          %p3793 = pneg %p334
        $region110: #{tpu_custom_call.1} parent=99 // pred_check_branch
          %3795 = sbr.rel (%p3793) target = $region112
        $region111: #{tpu_custom_call.1} parent=99 // pred_region
          %s3796 = sand.u32 %s39, 1
          %s3797 = scalar_lea.sflag [#allocation15], %s3796
          %s3798 = sand.u32 %s319, 1
          %s3799 = smul.addr %s3798, 64
          %s3800 = scalar_lea.vmem [#allocation16], %s3799
          %3801 = dma.done %s3797, 1024
        $region112: #{tpu_custom_call.1} parent=99 // pred_fallthru
          _
      $region100: #{tpu_custom_call.1} parent=5 // pred_fallthru
        _
    $region6: #{tpu_custom_call.1} parent=1 // loop_footer
      %s37 = sadd.s32 1, %s33
    $region7: #{tpu_custom_call.1} parent=1 // loop_footer_branch
      %32 = sbr.rel target = $region3
    $region8: #{tpu_custom_call.1} parent=1 // loop_exit
      _
    %3802 = vsyncpa [#allocation3], 1
    %s3803 = scalar_lea.sflag [#allocation3], 1
    %3804 = vsyncpa %s3803, 1
    %3805 = vsyncpa [#allocation6], 1
    %s3806 = scalar_lea.sflag [#allocation6], 1
    %3807 = vsyncpa %s3806, 1
    %3808 = vsyncpa [#allocation9], 1
    %3809 = vsyncpa [#allocation12], 1
    %3810 = vsyncpa [#allocation4], 1
    %s3811 = scalar_lea.sflag [#allocation4], 1
    %3812 = vsyncpa %s3811, 1
    %3813 = vsyncpa [#allocation15], 1
    %s3814 = scalar_lea.sflag [#allocation15], 1
    %3815 = vsyncpa %s3814, 1

</llo_original>
